<compile_context>
chip_gen: v6e
topology: v6e:2x2x1
jax: 0.10.0
libtpu: 0.0.40
codegen_flags: <defaults>
</compile_context>

<pallas_src>
import jax
import jax.numpy as jnp
from jax.experimental import pallas as pl
from jax.experimental.pallas import tpu as pltpu

_PHASES = ((0, 0), (0, 1), (1, 0), (1, 1))   # (py, px): phase index = 2*py + px
_TAPS = ((0, 0), (0, 1), (1, 0), (1, 1))     # (ty, tx): tap index   = 2*ty + tx


def _upsample_conv_kernel(x_ref, w_ref, b_ref, o_ref):
    """x_ref: (1, th+2, w+2, C_in)  bf16 halo'd source row-tile (original res)
       w_ref: (4, 4, C_in, CO_T)    bf16 folded per-phase 2x2 weights
       b_ref: (1, CO_T)             f32 bias
       o_ref: (1, 4, th*w, CO_T)    per-output-phase planes for this row tile
    """
    thp2, wp2, c_in = x_ref.shape[1], x_ref.shape[2], x_ref.shape[3]
    th, w = thp2 - 2, wp2 - 2
    m = th * w

    # 9 shifted tap slabs, materialized once and re-used by all 4 phases.
    taps = [[x_ref[0, ky:ky + th, kx:kx + w, :].reshape(m, c_in)
             for kx in range(3)] for ky in range(3)]
    bias = b_ref[...]                                    # (1, CO_T) f32

    for ph, (py, px) in enumerate(_PHASES):
        acc = None
        for t, (ty, tx) in enumerate(_TAPS):
            d = jnp.dot(taps[py + ty][px + tx], w_ref[ph, t],
                        preferred_element_type=jnp.float32)   # bf16 MXU, f32 acc
            acc = d if acc is None else acc + d
        o_ref[0, ph] = (acc + bias).astype(o_ref.dtype)        # dense store


def _fold_weights(weight_oihw):
    """Fold a 3x3 OIHW kernel into 4 per-output-phase 2x2 kernels (f32).

    Returns (4, 4, C_in, C_out): axis0 = phase (2*py+px), axis1 = tap (2*ty+tx).
    """
    co, ci = weight_oihw.shape[0], weight_oihw.shape[1]
    w9 = jnp.transpose(weight_oihw, (2, 3, 1, 0)).astype(jnp.float32)  # (kh,kw,I,O)
    # Row folding: phase 0 -> {kh0, kh1+kh2}; phase 1 -> {kh0+kh1, kh2}.
    rows = (jnp.stack([w9[0], w9[1] + w9[2]], axis=0),
            jnp.stack([w9[0] + w9[1], w9[2]], axis=0))

    def fold_cols(r, px):                                 # same rule along kw
        if px == 0:
            return jnp.stack([r[:, 0], r[:, 1] + r[:, 2]], axis=1)
        return jnp.stack([r[:, 0] + r[:, 1], r[:, 2]], axis=1)

    w_fold = jnp.stack([fold_cols(rows[py], px) for (py, px) in _PHASES], axis=0)
    return w_fold.reshape(4, 4, ci, co)                   # keep f32; cast later


def _device_knobs():
    try:
        kind = jax.devices()[0].device_kind.lower()
    except Exception:
        kind = ""
    old_gen = any(t in kind for t in ("v2", "v3", "v4", "v5"))
    prefer_256 = not old_gen                      # v6e/v7x: 256-wide MXU tiles
    if any(t in kind for t in ("v5", "v6")):      # 128 MiB physical VMEM
        vmem_cap = 100 * 1024 * 1024
    else:                                         # v7x: 64 MiB physical; be safe
        vmem_cap = 48 * 1024 * 1024
    return prefer_256, vmem_cap


def _pick_row_tile(h, w, c_in, co_tile, out_bytes, budget):
    """Largest divisor of h whose per-step blocks (+ temps, 2x buffering) fit."""
    for th in range(h, 0, -1):
        if h % th:
            continue
        in_b = (th + 2) * (w + 2) * c_in * 2
        out_b = 4 * th * w * co_tile * out_bytes
        tmp_b = 9 * th * w * c_in * 2 + 8 * th * w * co_tile * 4
        if 2 * (in_b + out_b) + tmp_b <= budget:
            return th
    return 1


def upsample_forward(x_nchw, weight_oihw, bias, *, row_tile=None):
    """UpSample.forward: F.interpolate(scale=2,'nearest') -> Conv2d(3x3,s=1,p=1)."""
    n, c, h, w = x_nchw.shape
    H, W = 2 * h, 2 * w
    co = weight_oihw.shape[0]
    out_dtype = x_nchw.dtype

    prefer_256, vmem_cap = _device_knobs()
    if co % 128 == 0:                      # realistic VAE channels: lane-dense
        cop = co
        co_tile = 256 if (prefer_256 and co % 256 == 0) else 128
    else:                                  # tiny channel counts: skip padding
        cop, co_tile = co, co
    n_co = cop // co_tile

    out_bytes = jnp.dtype(out_dtype).itemsize
    if row_tile is None:
        row_tile = _pick_row_tile(h, w, c, co_tile, out_bytes, vmem_cap // 3)
    assert h % row_tile == 0, "row_tile must divide input height"
    th = row_tile
    n_rows = h // th

    # --- layout glue (original resolution only): NCHW->NHWC, 1px zero halo,
    # bf16 MXU operands.
    x_pad = jnp.pad(jnp.transpose(x_nchw, (0, 2, 3, 1)),
                    ((0, 0), (1, 1), (1, 1), (0, 0))).astype(jnp.bfloat16)
    # Overlapping row windows: halos are the *neighbouring* rows of the padded
    # image, so inter-tile boundaries are exact (never re-zero-padded).
    if n_rows == 1:
        x_tiles = x_pad                                  # (n, h+2, w+2, c)
    else:
        x_tiles = jnp.stack(
            [x_pad[:, r * th: r * th + th + 2] for r in range(n_rows)], axis=1)
        x_tiles = x_tiles.reshape(n * n_rows, th + 2, w + 2, c)

    # --- fold 3x3 weights -> per-phase 2x2 kernels in f32, cast to bf16 last.
    w_fold = _fold_weights(weight_oihw)                   # (4,4,C,co) f32
    b_pad = bias.astype(jnp.float32).reshape(1, co)
    if cop != co:
        w_fold = jnp.pad(w_fold, ((0, 0), (0, 0), (0, 0), (0, cop - co)))
        b_pad = jnp.pad(b_pad, ((0, 0), (0, cop - co)))
    w_fold = w_fold.astype(jnp.bfloat16)

    out_phases = pl.pallas_call(
        _upsample_conv_kernel,
        out_shape=jax.ShapeDtypeStruct((n, 4, h * w, cop), out_dtype),
        grid_spec=pltpu.PrefetchScalarGridSpec(
            num_scalar_prefetch=0,
            grid=(n, n_rows, n_co),
            in_specs=[
                # Image row-tile: changes with (b, r), re-used across C_out tiles.
                pl.BlockSpec((1, th + 2, w + 2, c),
                             lambda b, r, j: (b * n_rows + r, 0, 0, 0)),
                # Folded weights / bias: resident per C_out tile.
                pl.BlockSpec((4, 4, c, co_tile), lambda b, r, j: (0, 0, 0, j)),
                pl.BlockSpec((1, co_tile), lambda b, r, j: (0, j)),
            ],
            out_specs=pl.BlockSpec((1, 4, th * w, co_tile),
                                   lambda b, r, j: (b, 0, r, j)),
        ),
        compiler_params=pltpu.CompilerParams(
            dimension_semantics=("parallel", "parallel", "parallel"),
            vmem_limit_bytes=int(vmem_cap),
            allow_input_fusion=[True, False, False]),
    )(x_tiles, w_fold, b_pad)

    # --- single fused epilogue: drop lane padding (no-op when co%128==0) and
    # interleave the 4 phases inside the mandatory NHWC->NCHW transpose.
    out = out_phases[..., :co] if cop != co else out_phases
    out = out.reshape(n, 2, 2, h, w, co)                  # (n, py, px, y, x, c)
    return jnp.transpose(out, (0, 5, 3, 1, 4, 2)).reshape(n, co, H, W)


def _reference(x_nchw, weight_oihw, bias):
    """Pure-JAX f32 reference of the PyTorch UpSample forward."""
    co = weight_oihw.shape[0]
    x_up = jnp.repeat(jnp.repeat(x_nchw, 2, axis=2), 2, axis=3)
    out = jax.lax.conv_general_dilated(
        x_up, weight_oihw, window_strides=(1, 1),
        padding=((1, 1), (1, 1)),
        dimension_numbers=("NCHW", "OIHW", "NCHW"))
    return out + bias.reshape(1, co, 1, 1)


if __name__ == "__main__":
    key = jax.random.PRNGKey(0)
    kx, kw, kb = jax.random.split(key, 3)

    N, C, Hin, Win = 2, 4, 16, 16
    x = jax.random.normal(kx, (N, C, Hin, Win), dtype=jnp.float32)

    # Conv2d(ch, ch, 3, 1, 1) params, kaiming_normal_(fan_out, relu):
    # std = sqrt(2 / fan_out), fan_out = out_ch * 3 * 3.  (Module inits bias to
    # zero; a small random bias is used here so the bias path is exercised.)
    fan_out = C * 3 * 3
    std = (2.0 / fan_out) ** 0.5
    weight = std * jax.random.normal(kw, (C, C, 3, 3), dtype=jnp.float32)
    bias = 0.1 * jax.random.normal(kb, (C,), dtype=jnp.float32)

    fwd = jax.jit(upsample_forward, static_argnames=("row_tile",))
    ref = _reference(x, weight, bias)

    # Multi-row-tile path (exercises the inter-tile halo handling).
    out = jax.block_until_ready(fwd(x, weight, bias, row_tile=8))
    assert out.shape == (N, C, 2 * Hin, 2 * Win), out.shape
    err = float(jnp.max(jnp.abs(out - ref)))
    # bf16 MXU operands -> QAT-appropriate tolerance vs. the f32 reference.
    assert jnp.allclose(out, ref, atol=5e-2, rtol=5e-2), err

    # Auto-picked tiling (single row tile at this toy size).
    out2 = jax.block_until_ready(fwd(x, weight, bias))
    err2 = float(jnp.max(jnp.abs(out2 - ref)))
    assert jnp.allclose(out2, ref, atol=5e-2, rtol=5e-2), err2

    print("KERNEL_OK")
</pallas_src>

<mosaic_0001>
module attributes {stable_mosaic.version = 11 : i64} {
  func.func @_upsample_conv_kernel(%arg0: i32, %arg1: i32, %arg2: i32, %arg3: memref<1x10x18x4xbf16, #tpu.memory_space<vmem>>, %arg4: memref<4x4x4x4xbf16, #tpu.memory_space<vmem>>, %arg5: memref<1x4xf32, #tpu.memory_space<vmem>>, %arg6: memref<1x4x128x4xf32, #tpu.memory_space<vmem>>) attributes {dimension_semantics = [#tpu.dimension_semantics<parallel>, #tpu.dimension_semantics<parallel>, #tpu.dimension_semantics<parallel>], iteration_bounds = array<i64: 2, 2, 1>, scalar_prefetch = 0 : i64, scratch_operands = 0 : i64, tpu.core_type = #tpu.core_type<tc>, window_params = [{transform_indices = @transform_0, window_bounds = array<i64: 1, 10, 18, 4>}, {transform_indices = @transform_1, window_bounds = array<i64: 4, 4, 4, 4>}, {transform_indices = @transform_2, window_bounds = array<i64: 1, 4>}, {transform_indices = @transform_3, window_bounds = array<i64: 1, 4, 128, 4>}]} {
    %c0 = arith.constant 0 : index
    %c0_0 = arith.constant 0 : index
    %c0_1 = arith.constant 0 : index
    %c0_2 = arith.constant 0 : index
    %0 = vector.load %arg3[%c0, %c0_0, %c0_1, %c0_2] : memref<1x10x18x4xbf16, #tpu.memory_space<vmem>>, vector<1x8x16x4xbf16>
    %1 = vector.shape_cast %0 : vector<1x8x16x4xbf16> to vector<8x16x4xbf16>
    %2 = vector.shape_cast %1 : vector<8x16x4xbf16> to vector<128x4xbf16>
    %c0_3 = arith.constant 0 : index
    %c0_4 = arith.constant 0 : index
    %c1 = arith.constant 1 : index
    %c0_5 = arith.constant 0 : index
    %3 = vector.load %arg3[%c0_3, %c0_4, %c1, %c0_5] : memref<1x10x18x4xbf16, #tpu.memory_space<vmem>>, vector<1x8x16x4xbf16>
    %4 = vector.shape_cast %3 : vector<1x8x16x4xbf16> to vector<8x16x4xbf16>
    %5 = vector.shape_cast %4 : vector<8x16x4xbf16> to vector<128x4xbf16>
    %c0_6 = arith.constant 0 : index
    %c0_7 = arith.constant 0 : index
    %c2 = arith.constant 2 : index
    %c0_8 = arith.constant 0 : index
    %6 = vector.load %arg3[%c0_6, %c0_7, %c2, %c0_8] : memref<1x10x18x4xbf16, #tpu.memory_space<vmem>>, vector<1x8x16x4xbf16>
    %7 = vector.shape_cast %6 : vector<1x8x16x4xbf16> to vector<8x16x4xbf16>
    %8 = vector.shape_cast %7 : vector<8x16x4xbf16> to vector<128x4xbf16>
    %c0_9 = arith.constant 0 : index
    %c1_10 = arith.constant 1 : index
    %c0_11 = arith.constant 0 : index
    %c0_12 = arith.constant 0 : index
    %9 = vector.load %arg3[%c0_9, %c1_10, %c0_11, %c0_12] : memref<1x10x18x4xbf16, #tpu.memory_space<vmem>>, vector<1x8x16x4xbf16>
    %10 = vector.shape_cast %9 : vector<1x8x16x4xbf16> to vector<8x16x4xbf16>
    %11 = vector.shape_cast %10 : vector<8x16x4xbf16> to vector<128x4xbf16>
    %c0_13 = arith.constant 0 : index
    %c1_14 = arith.constant 1 : index
    %c1_15 = arith.constant 1 : index
    %c0_16 = arith.constant 0 : index
    %12 = vector.load %arg3[%c0_13, %c1_14, %c1_15, %c0_16] : memref<1x10x18x4xbf16, #tpu.memory_space<vmem>>, vector<1x8x16x4xbf16>
    %13 = vector.shape_cast %12 : vector<1x8x16x4xbf16> to vector<8x16x4xbf16>
    %14 = vector.shape_cast %13 : vector<8x16x4xbf16> to vector<128x4xbf16>
    %c0_17 = arith.constant 0 : index
    %c1_18 = arith.constant 1 : index
    %c2_19 = arith.constant 2 : index
    %c0_20 = arith.constant 0 : index
    %15 = vector.load %arg3[%c0_17, %c1_18, %c2_19, %c0_20] : memref<1x10x18x4xbf16, #tpu.memory_space<vmem>>, vector<1x8x16x4xbf16>
    %16 = vector.shape_cast %15 : vector<1x8x16x4xbf16> to vector<8x16x4xbf16>
    %17 = vector.shape_cast %16 : vector<8x16x4xbf16> to vector<128x4xbf16>
    %c0_21 = arith.constant 0 : index
    %c2_22 = arith.constant 2 : index
    %c0_23 = arith.constant 0 : index
    %c0_24 = arith.constant 0 : index
    %18 = vector.load %arg3[%c0_21, %c2_22, %c0_23, %c0_24] : memref<1x10x18x4xbf16, #tpu.memory_space<vmem>>, vector<1x8x16x4xbf16>
    %19 = vector.shape_cast %18 : vector<1x8x16x4xbf16> to vector<8x16x4xbf16>
    %20 = vector.shape_cast %19 : vector<8x16x4xbf16> to vector<128x4xbf16>
    %c0_25 = arith.constant 0 : index
    %c2_26 = arith.constant 2 : index
    %c1_27 = arith.constant 1 : index
    %c0_28 = arith.constant 0 : index
    %21 = vector.load %arg3[%c0_25, %c2_26, %c1_27, %c0_28] : memref<1x10x18x4xbf16, #tpu.memory_space<vmem>>, vector<1x8x16x4xbf16>
    %22 = vector.shape_cast %21 : vector<1x8x16x4xbf16> to vector<8x16x4xbf16>
    %23 = vector.shape_cast %22 : vector<8x16x4xbf16> to vector<128x4xbf16>
    %c0_29 = arith.constant 0 : index
    %c2_30 = arith.constant 2 : index
    %c2_31 = arith.constant 2 : index
    %c0_32 = arith.constant 0 : index
    %24 = vector.load %arg3[%c0_29, %c2_30, %c2_31, %c0_32] : memref<1x10x18x4xbf16, #tpu.memory_space<vmem>>, vector<1x8x16x4xbf16>
    %25 = vector.shape_cast %24 : vector<1x8x16x4xbf16> to vector<8x16x4xbf16>
    %26 = vector.shape_cast %25 : vector<8x16x4xbf16> to vector<128x4xbf16>
    %c0_33 = arith.constant 0 : index
    %c0_34 = arith.constant 0 : index
    %27 = vector.load %arg5[%c0_33, %c0_34] : memref<1x4xf32, #tpu.memory_space<vmem>>, vector<1x4xf32>
    %c0_35 = arith.constant 0 : index
    %c0_36 = arith.constant 0 : index
    %c0_37 = arith.constant 0 : index
    %c0_38 = arith.constant 0 : index
    %28 = vector.load %arg4[%c0_35, %c0_36, %c0_37, %c0_38] : memref<4x4x4x4xbf16, #tpu.memory_space<vmem>>, vector<1x1x4x4xbf16>
    %29 = vector.shape_cast %28 : vector<1x1x4x4xbf16> to vector<4x4xbf16>
    %cst = arith.constant dense<0.000000e+00> : vector<128x4xf32>
    %30 = tpu.matmul %2, %29, %cst {dimension_numbers = #tpu.dot_dimension_numbers<[1], [0], [0], [1], [0, 0, 1, 1], [], []>} : vector<128x4xbf16>, vector<4x4xbf16>, vector<128x4xf32> -> vector<128x4xf32>
    %c0_39 = arith.constant 0 : index
    %c1_40 = arith.constant 1 : index
    %c0_41 = arith.constant 0 : index
    %c0_42 = arith.constant 0 : index
    %31 = vector.load %arg4[%c0_39, %c1_40, %c0_41, %c0_42] : memref<4x4x4x4xbf16, #tpu.memory_space<vmem>>, vector<1x1x4x4xbf16>
    %32 = vector.shape_cast %31 : vector<1x1x4x4xbf16> to vector<4x4xbf16>
    %cst_43 = arith.constant dense<0.000000e+00> : vector<128x4xf32>
    %33 = tpu.matmul %5, %32, %cst_43 {dimension_numbers = #tpu.dot_dimension_numbers<[1], [0], [0], [1], [0, 0, 1, 1], [], []>} : vector<128x4xbf16>, vector<4x4xbf16>, vector<128x4xf32> -> vector<128x4xf32>
    %34 = arith.addf %30, %33 : vector<128x4xf32>
    %c0_44 = arith.constant 0 : index
    %c2_45 = arith.constant 2 : index
    %c0_46 = arith.constant 0 : index
    %c0_47 = arith.constant 0 : index
    %35 = vector.load %arg4[%c0_44, %c2_45, %c0_46, %c0_47] : memref<4x4x4x4xbf16, #tpu.memory_space<vmem>>, vector<1x1x4x4xbf16>
    %36 = vector.shape_cast %35 : vector<1x1x4x4xbf16> to vector<4x4xbf16>
    %cst_48 = arith.constant dense<0.000000e+00> : vector<128x4xf32>
    %37 = tpu.matmul %11, %36, %cst_48 {dimension_numbers = #tpu.dot_dimension_numbers<[1], [0], [0], [1], [0, 0, 1, 1], [], []>} : vector<128x4xbf16>, vector<4x4xbf16>, vector<128x4xf32> -> vector<128x4xf32>
    %38 = arith.addf %34, %37 : vector<128x4xf32>
    %c0_49 = arith.constant 0 : index
    %c3 = arith.constant 3 : index
    %c0_50 = arith.constant 0 : index
    %c0_51 = arith.constant 0 : index
    %39 = vector.load %arg4[%c0_49, %c3, %c0_50, %c0_51] : memref<4x4x4x4xbf16, #tpu.memory_space<vmem>>, vector<1x1x4x4xbf16>
    %40 = vector.shape_cast %39 : vector<1x1x4x4xbf16> to vector<4x4xbf16>
    %cst_52 = arith.constant dense<0.000000e+00> : vector<128x4xf32>
    %41 = tpu.matmul %14, %40, %cst_52 {dimension_numbers = #tpu.dot_dimension_numbers<[1], [0], [0], [1], [0, 0, 1, 1], [], []>} : vector<128x4xbf16>, vector<4x4xbf16>, vector<128x4xf32> -> vector<128x4xf32>
    %42 = arith.addf %38, %41 : vector<128x4xf32>
    %43 = vector.broadcast %27 : vector<1x4xf32> to vector<128x4xf32>
    %44 = arith.addf %42, %43 : vector<128x4xf32>
    %c0_53 = arith.constant 0 : index
    %c0_54 = arith.constant 0 : index
    %c0_55 = arith.constant 0 : index
    %c0_56 = arith.constant 0 : index
    %45 = vector.load %arg6[%c0_53, %c0_54, %c0_55, %c0_56] : memref<1x4x128x4xf32, #tpu.memory_space<vmem>>, vector<1x1x128x4xf32>
    %46 = vector.shape_cast %45 : vector<1x1x128x4xf32> to vector<128x4xf32>
    %47 = vector.shape_cast %44 : vector<128x4xf32> to vector<1x1x128x4xf32>
    tpu.vector_store %arg6[%c0_53, %c0_54, %c0_55, %c0_56], %47 {strides = array<i32>} : memref<1x4x128x4xf32, #tpu.memory_space<vmem>>, vector<1x1x128x4xf32>,
    %c1_57 = arith.constant 1 : index
    %c0_58 = arith.constant 0 : index
    %c0_59 = arith.constant 0 : index
    %c0_60 = arith.constant 0 : index
    %48 = vector.load %arg4[%c1_57, %c0_58, %c0_59, %c0_60] : memref<4x4x4x4xbf16, #tpu.memory_space<vmem>>, vector<1x1x4x4xbf16>
    %49 = vector.shape_cast %48 : vector<1x1x4x4xbf16> to vector<4x4xbf16>
    %cst_61 = arith.constant dense<0.000000e+00> : vector<128x4xf32>
    %50 = tpu.matmul %5, %49, %cst_61 {dimension_numbers = #tpu.dot_dimension_numbers<[1], [0], [0], [1], [0, 0, 1, 1], [], []>} : vector<128x4xbf16>, vector<4x4xbf16>, vector<128x4xf32> -> vector<128x4xf32>
    %c1_62 = arith.constant 1 : index
    %c1_63 = arith.constant 1 : index
    %c0_64 = arith.constant 0 : index
    %c0_65 = arith.constant 0 : index
    %51 = vector.load %arg4[%c1_62, %c1_63, %c0_64, %c0_65] : memref<4x4x4x4xbf16, #tpu.memory_space<vmem>>, vector<1x1x4x4xbf16>
    %52 = vector.shape_cast %51 : vector<1x1x4x4xbf16> to vector<4x4xbf16>
    %cst_66 = arith.constant dense<0.000000e+00> : vector<128x4xf32>
    %53 = tpu.matmul %8, %52, %cst_66 {dimension_numbers = #tpu.dot_dimension_numbers<[1], [0], [0], [1], [0, 0, 1, 1], [], []>} : vector<128x4xbf16>, vector<4x4xbf16>, vector<128x4xf32> -> vector<128x4xf32>
    %54 = arith.addf %50, %53 : vector<128x4xf32>
    %c1_67 = arith.constant 1 : index
    %c2_68 = arith.constant 2 : index
    %c0_69 = arith.constant 0 : index
    %c0_70 = arith.constant 0 : index
    %55 = vector.load %arg4[%c1_67, %c2_68, %c0_69, %c0_70] : memref<4x4x4x4xbf16, #tpu.memory_space<vmem>>, vector<1x1x4x4xbf16>
    %56 = vector.shape_cast %55 : vector<1x1x4x4xbf16> to vector<4x4xbf16>
    %cst_71 = arith.constant dense<0.000000e+00> : vector<128x4xf32>
    %57 = tpu.matmul %14, %56, %cst_71 {dimension_numbers = #tpu.dot_dimension_numbers<[1], [0], [0], [1], [0, 0, 1, 1], [], []>} : vector<128x4xbf16>, vector<4x4xbf16>, vector<128x4xf32> -> vector<128x4xf32>
    %58 = arith.addf %54, %57 : vector<128x4xf32>
    %c1_72 = arith.constant 1 : index
    %c3_73 = arith.constant 3 : index
    %c0_74 = arith.constant 0 : index
    %c0_75 = arith.constant 0 : index
    %59 = vector.load %arg4[%c1_72, %c3_73, %c0_74, %c0_75] : memref<4x4x4x4xbf16, #tpu.memory_space<vmem>>, vector<1x1x4x4xbf16>
    %60 = vector.shape_cast %59 : vector<1x1x4x4xbf16> to vector<4x4xbf16>
    %cst_76 = arith.constant dense<0.000000e+00> : vector<128x4xf32>
    %61 = tpu.matmul %17, %60, %cst_76 {dimension_numbers = #tpu.dot_dimension_numbers<[1], [0], [0], [1], [0, 0, 1, 1], [], []>} : vector<128x4xbf16>, vector<4x4xbf16>, vector<128x4xf32> -> vector<128x4xf32>
    %62 = arith.addf %58, %61 : vector<128x4xf32>
    %63 = vector.broadcast %27 : vector<1x4xf32> to vector<128x4xf32>
    %64 = arith.addf %62, %63 : vector<128x4xf32>
    %c0_77 = arith.constant 0 : index
    %c1_78 = arith.constant 1 : index
    %c0_79 = arith.constant 0 : index
    %c0_80 = arith.constant 0 : index
    %65 = vector.load %arg6[%c0_77, %c1_78, %c0_79, %c0_80] : memref<1x4x128x4xf32, #tpu.memory_space<vmem>>, vector<1x1x128x4xf32>
    %66 = vector.shape_cast %65 : vector<1x1x128x4xf32> to vector<128x4xf32>
    %67 = vector.shape_cast %64 : vector<128x4xf32> to vector<1x1x128x4xf32>
    tpu.vector_store %arg6[%c0_77, %c1_78, %c0_79, %c0_80], %67 {strides = array<i32>} : memref<1x4x128x4xf32, #tpu.memory_space<vmem>>, vector<1x1x128x4xf32>,
    %c2_81 = arith.constant 2 : index
    %c0_82 = arith.constant 0 : index
    %c0_83 = arith.constant 0 : index
    %c0_84 = arith.constant 0 : index
    %68 = vector.load %arg4[%c2_81, %c0_82, %c0_83, %c0_84] : memref<4x4x4x4xbf16, #tpu.memory_space<vmem>>, vector<1x1x4x4xbf16>
    %69 = vector.shape_cast %68 : vector<1x1x4x4xbf16> to vector<4x4xbf16>
    %cst_85 = arith.constant dense<0.000000e+00> : vector<128x4xf32>
    %70 = tpu.matmul %11, %69, %cst_85 {dimension_numbers = #tpu.dot_dimension_numbers<[1], [0], [0], [1], [0, 0, 1, 1], [], []>} : vector<128x4xbf16>, vector<4x4xbf16>, vector<128x4xf32> -> vector<128x4xf32>
    %c2_86 = arith.constant 2 : index
    %c1_87 = arith.constant 1 : index
    %c0_88 = arith.constant 0 : index
    %c0_89 = arith.constant 0 : index
    %71 = vector.load %arg4[%c2_86, %c1_87, %c0_88, %c0_89] : memref<4x4x4x4xbf16, #tpu.memory_space<vmem>>, vector<1x1x4x4xbf16>
    %72 = vector.shape_cast %71 : vector<1x1x4x4xbf16> to vector<4x4xbf16>
    %cst_90 = arith.constant dense<0.000000e+00> : vector<128x4xf32>
    %73 = tpu.matmul %14, %72, %cst_90 {dimension_numbers = #tpu.dot_dimension_numbers<[1], [0], [0], [1], [0, 0, 1, 1], [], []>} : vector<128x4xbf16>, vector<4x4xbf16>, vector<128x4xf32> -> vector<128x4xf32>
    %74 = arith.addf %70, %73 : vector<128x4xf32>
    %c2_91 = arith.constant 2 : index
    %c2_92 = arith.constant 2 : index
    %c0_93 = arith.constant 0 : index
    %c0_94 = arith.constant 0 : index
    %75 = vector.load %arg4[%c2_91, %c2_92, %c0_93, %c0_94] : memref<4x4x4x4xbf16, #tpu.memory_space<vmem>>, vector<1x1x4x4xbf16>
    %76 = vector.shape_cast %75 : vector<1x1x4x4xbf16> to vector<4x4xbf16>
    %cst_95 = arith.constant dense<0.000000e+00> : vector<128x4xf32>
    %77 = tpu.matmul %20, %76, %cst_95 {dimension_numbers = #tpu.dot_dimension_numbers<[1], [0], [0], [1], [0, 0, 1, 1], [], []>} : vector<128x4xbf16>, vector<4x4xbf16>, vector<128x4xf32> -> vector<128x4xf32>
    %78 = arith.addf %74, %77 : vector<128x4xf32>
    %c2_96 = arith.constant 2 : index
    %c3_97 = arith.constant 3 : index
    %c0_98 = arith.constant 0 : index
    %c0_99 = arith.constant 0 : index
    %79 = vector.load %arg4[%c2_96, %c3_97, %c0_98, %c0_99] : memref<4x4x4x4xbf16, #tpu.memory_space<vmem>>, vector<1x1x4x4xbf16>
    %80 = vector.shape_cast %79 : vector<1x1x4x4xbf16> to vector<4x4xbf16>
    %cst_100 = arith.constant dense<0.000000e+00> : vector<128x4xf32>
    %81 = tpu.matmul %23, %80, %cst_100 {dimension_numbers = #tpu.dot_dimension_numbers<[1], [0], [0], [1], [0, 0, 1, 1], [], []>} : vector<128x4xbf16>, vector<4x4xbf16>, vector<128x4xf32> -> vector<128x4xf32>
    %82 = arith.addf %78, %81 : vector<128x4xf32>
    %83 = vector.broadcast %27 : vector<1x4xf32> to vector<128x4xf32>
    %84 = arith.addf %82, %83 : vector<128x4xf32>
    %c0_101 = arith.constant 0 : index
    %c2_102 = arith.constant 2 : index
    %c0_103 = arith.constant 0 : index
    %c0_104 = arith.constant 0 : index
    %85 = vector.load %arg6[%c0_101, %c2_102, %c0_103, %c0_104] : memref<1x4x128x4xf32, #tpu.memory_space<vmem>>, vector<1x1x128x4xf32>
    %86 = vector.shape_cast %85 : vector<1x1x128x4xf32> to vector<128x4xf32>
    %87 = vector.shape_cast %84 : vector<128x4xf32> to vector<1x1x128x4xf32>
    tpu.vector_store %arg6[%c0_101, %c2_102, %c0_103, %c0_104], %87 {strides = array<i32>} : memref<1x4x128x4xf32, #tpu.memory_space<vmem>>, vector<1x1x128x4xf32>,
    %c3_105 = arith.constant 3 : index
    %c0_106 = arith.constant 0 : index
    %c0_107 = arith.constant 0 : index
    %c0_108 = arith.constant 0 : index
    %88 = vector.load %arg4[%c3_105, %c0_106, %c0_107, %c0_108] : memref<4x4x4x4xbf16, #tpu.memory_space<vmem>>, vector<1x1x4x4xbf16>
    %89 = vector.shape_cast %88 : vector<1x1x4x4xbf16> to vector<4x4xbf16>
    %cst_109 = arith.constant dense<0.000000e+00> : vector<128x4xf32>
    %90 = tpu.matmul %14, %89, %cst_109 {dimension_numbers = #tpu.dot_dimension_numbers<[1], [0], [0], [1], [0, 0, 1, 1], [], []>} : vector<128x4xbf16>, vector<4x4xbf16>, vector<128x4xf32> -> vector<128x4xf32>
    %c3_110 = arith.constant 3 : index
    %c1_111 = arith.constant 1 : index
    %c0_112 = arith.constant 0 : index
    %c0_113 = arith.constant 0 : index
    %91 = vector.load %arg4[%c3_110, %c1_111, %c0_112, %c0_113] : memref<4x4x4x4xbf16, #tpu.memory_space<vmem>>, vector<1x1x4x4xbf16>
    %92 = vector.shape_cast %91 : vector<1x1x4x4xbf16> to vector<4x4xbf16>
    %cst_114 = arith.constant dense<0.000000e+00> : vector<128x4xf32>
    %93 = tpu.matmul %17, %92, %cst_114 {dimension_numbers = #tpu.dot_dimension_numbers<[1], [0], [0], [1], [0, 0, 1, 1], [], []>} : vector<128x4xbf16>, vector<4x4xbf16>, vector<128x4xf32> -> vector<128x4xf32>
    %94 = arith.addf %90, %93 : vector<128x4xf32>
    %c3_115 = arith.constant 3 : index
    %c2_116 = arith.constant 2 : index
    %c0_117 = arith.constant 0 : index
    %c0_118 = arith.constant 0 : index
    %95 = vector.load %arg4[%c3_115, %c2_116, %c0_117, %c0_118] : memref<4x4x4x4xbf16, #tpu.memory_space<vmem>>, vector<1x1x4x4xbf16>
    %96 = vector.shape_cast %95 : vector<1x1x4x4xbf16> to vector<4x4xbf16>
    %cst_119 = arith.constant dense<0.000000e+00> : vector<128x4xf32>
    %97 = tpu.matmul %23, %96, %cst_119 {dimension_numbers = #tpu.dot_dimension_numbers<[1], [0], [0], [1], [0, 0, 1, 1], [], []>} : vector<128x4xbf16>, vector<4x4xbf16>, vector<128x4xf32> -> vector<128x4xf32>
    %98 = arith.addf %94, %97 : vector<128x4xf32>
    %c3_120 = arith.constant 3 : index
    %c3_121 = arith.constant 3 : index
    %c0_122 = arith.constant 0 : index
    %c0_123 = arith.constant 0 : index
    %99 = vector.load %arg4[%c3_120, %c3_121, %c0_122, %c0_123] : memref<4x4x4x4xbf16, #tpu.memory_space<vmem>>, vector<1x1x4x4xbf16>
    %100 = vector.shape_cast %99 : vector<1x1x4x4xbf16> to vector<4x4xbf16>
    %cst_124 = arith.constant dense<0.000000e+00> : vector<128x4xf32>
    %101 = tpu.matmul %26, %100, %cst_124 {dimension_numbers = #tpu.dot_dimension_numbers<[1], [0], [0], [1], [0, 0, 1, 1], [], []>} : vector<128x4xbf16>, vector<4x4xbf16>, vector<128x4xf32> -> vector<128x4xf32>
    %102 = arith.addf %98, %101 : vector<128x4xf32>
    %103 = vector.broadcast %27 : vector<1x4xf32> to vector<128x4xf32>
    %104 = arith.addf %102, %103 : vector<128x4xf32>
    %c0_125 = arith.constant 0 : index
    %c3_126 = arith.constant 3 : index
    %c0_127 = arith.constant 0 : index
    %c0_128 = arith.constant 0 : index
    %105 = vector.load %arg6[%c0_125, %c3_126, %c0_127, %c0_128] : memref<1x4x128x4xf32, #tpu.memory_space<vmem>>, vector<1x1x128x4xf32>
    %106 = vector.shape_cast %105 : vector<1x1x128x4xf32> to vector<128x4xf32>
    %107 = vector.shape_cast %104 : vector<128x4xf32> to vector<1x1x128x4xf32>
    tpu.vector_store %arg6[%c0_125, %c3_126, %c0_127, %c0_128], %107 {strides = array<i32>} : memref<1x4x128x4xf32, #tpu.memory_space<vmem>>, vector<1x1x128x4xf32>,
    return
  }
  func.func @transform_0(%arg0: i32, %arg1: i32, %arg2: i32) -> (i32, i32, i32, i32) {
    %c2_i32 = arith.constant 2 : i32
    %0 = arith.muli %arg0, %c2_i32 : i32
    %1 = arith.addi %0, %arg1 : i32
    %c0_i32 = arith.constant 0 : i32
    %c0_i32_0 = arith.constant 0 : i32
    %c0_i32_1 = arith.constant 0 : i32
    %c0_i32_2 = arith.constant 0 : i32
    return %1, %c0_i32, %c0_i32_0, %c0_i32_1 : i32, i32, i32, i32
  }
  func.func @transform_1(%arg0: i32, %arg1: i32, %arg2: i32) -> (i32, i32, i32, i32) {
    %c0_i32 = arith.constant 0 : i32
    %c0_i32_0 = arith.constant 0 : i32
    %c0_i32_1 = arith.constant 0 : i32
    %c0_i32_2 = arith.constant 0 : i32
    return %c0_i32, %c0_i32_0, %c0_i32_1, %arg2 : i32, i32, i32, i32
  }
  func.func @transform_2(%arg0: i32, %arg1: i32, %arg2: i32) -> (i32, i32) {
    %c0_i32 = arith.constant 0 : i32
    %c0_i32_0 = arith.constant 0 : i32
    return %c0_i32, %arg2 : i32, i32
  }
  func.func @transform_3(%arg0: i32, %arg1: i32, %arg2: i32) -> (i32, i32, i32, i32) {
    %c0_i32 = arith.constant 0 : i32
    %c0_i32_0 = arith.constant 0 : i32
    return %arg0, %c0_i32, %arg1, %arg2 : i32, i32, i32, i32
  }
}

</mosaic_0001>

<llo_original>
// kernel: upsample_forward.1
$region0: #{upsample_forward.1}
  #allocation0 [shape = 'u32[]', space=smem, size = 0x4, offset = 0x4, fixed_abs, tag = 'smem constant byte address 0x4 - core index']
  #allocation1 [shape = 'u32[144,128]{1,0:T(1,128)}', space=vmem, size = 0x12000, scoped, tag = 'internal scratch']
  %s0 = inlined_call_operand.vmem [shape: bf16[4,10,18,4], index: 0, kind: input, shape index: {}]
  %s1 = inlined_call_operand.vmem [shape: bf16[4,4,4,4], index: 1, kind: input, shape index: {}]
  %s2 = inlined_call_operand.vmem [shape: f32[1,4], index: 2, kind: input, shape index: {}]
  %s3 = inlined_call_operand.vmem [shape: f32[2,4,256,4], index: 3, kind: output, shape index: {}]
  %s4 = sld [smem:[#allocation0]]
  $region79: #{upsample_forward.1} parent=0
    _
  %s6 = ssub.s32 1, %s4
  %s7 = scalar_select 0, %s6, %s4
  $region1: #{upsample_forward.1} parent=0
    #allocation2 [shape = 'u8[524288]{0}', space=vmem, size = 0x80000, scoped, tag = 'output window, operand 0']
    loop: start=0, step=1, limit=6
    $region2: #{upsample_forward.1} parent=1 // loop_pre_header
      _
    $region3: #{upsample_forward.1} parent=1 // loop_header
      %s9 = sphi 0, %s13
      %p10 = scmp.ge.s32.totalorder %s9, 6
      %s16 = sphi 0, %s35
      %s17 = sphi 0, %s31
      %s18 = sphi 0, %s27
      %s19 = sphi 0, %s16
      %s20 = sphi 0, %s17
      %s21 = sphi 0, %s18
      %s22 = sphi 0, %s19
      %s23 = sphi 0, %s20
      %s24 = sphi 0, %s21
      %s42 = sphi 0, %s44
      %s45 = sphi 0, %s42
      %s46 = sphi 0, %s45
      %s62 = sphi 0, %s46
      %s68 = sphi 0, %s70
      %s71 = sphi 0, %s68
      %s72 = sphi 0, %s71
      %s88 = sphi 0, %s72
      %s94 = sphi 0, %s96
      %s97 = sphi 0, %s94
      %s98 = sphi 0, %s97
      %s114 = sphi 0, %s98
      %s124 = sphi 0, %s126
      %s127 = sphi 0, %s124
      %s128 = sphi 0, %s127
      %s144 = sphi 0, %s128
    $region4: #{upsample_forward.1} parent=1 // loop_header_branch
      %12 = sbr.rel (%p10) target = $region8
    $region5: #{upsample_forward.1} parent=1 // loop_body
      %s14 = ssub.s32 %s9, 1
      %s15 = ssub.s32 %s9, 2
      %s25 = sadd.s32 1, %s18
      %p26 = scmp.ge.s32.totalorder %s25, 1
      %s27 = scalar_select %p26, 0, %s25
      %s28 = sadd.s32 1, %s17
      %s29 = scalar_select %p26, %s28, %s17
      %p30 = scmp.ge.s32.totalorder %s29, 2
      %s31 = scalar_select %p30, 0, %s29
      %s32 = sadd.s32 1, %s16
      %s33 = scalar_select %p30, %s32, %s16
      %p34 = scmp.ge.s32.totalorder %s33, 2
      %s35 = scalar_select %p34, 0, %s33
      %s36 = smul.u32 %s16, 2
      %s37 = sadd.s32 %s36, %s17
      %s38 = smul.u32 %s35, 2
      %s39 = sadd.s32 %s38, %s31
      %s40 = ssub.s32 %s37, %s39
      %p41 = scmp.eq.s32.totalorder %s40, 0
      %s43 = sadd.s32 %s42, 1
      %s44 = scalar_select %p41, %s42, %s43
      %p47 = pneg %p41
      %p48 = scmp.eq.s32.totalorder %s9, 3
      %p49 = por %p47, %p48
      %p50 = scmp.ne.s32.totalorder %s42, %s45
      %p51 = scmp.eq.s32.totalorder %s9, 0
      %p52 = por %p50, %p51
      %p53 = scmp.ne.s32.totalorder %s42, %s45
      %p54 = scmp.eq.s32.totalorder %s14, 3
      %p55 = por %p53, %p54
      %p56 = scmp.ne.s32.totalorder %s45, %s46
      %p57 = scmp.eq.s32.totalorder %s14, 0
      %p58 = por %p56, %p57
      %p59 = scmp.ne.s32.totalorder %s45, %s46
      %p60 = scmp.eq.s32.totalorder %s15, 3
      %p61 = por %p59, %p60
      %p63 = scmp.ne.s32.totalorder %s46, %s62
      %p64 = scmp.eq.s32.totalorder %s15, 0
      %p65 = por %p63, %p64
      %s66 = ssub.s32 %s18, %s27
      %p67 = scmp.eq.s32.totalorder %s66, 0
      %s69 = sadd.s32 %s68, 1
      %s70 = scalar_select %p67, %s68, %s69
      %p73 = pneg %p67
      %p74 = scmp.eq.s32.totalorder %s9, 3
      %p75 = por %p73, %p74
      %p76 = scmp.ne.s32.totalorder %s68, %s71
      %p77 = scmp.eq.s32.totalorder %s9, 0
      %p78 = por %p76, %p77
      %p79 = scmp.ne.s32.totalorder %s68, %s71
      %p80 = scmp.eq.s32.totalorder %s14, 3
      %p81 = por %p79, %p80
      %p82 = scmp.ne.s32.totalorder %s71, %s72
      %p83 = scmp.eq.s32.totalorder %s14, 0
      %p84 = por %p82, %p83
      %p85 = scmp.ne.s32.totalorder %s71, %s72
      %p86 = scmp.eq.s32.totalorder %s15, 3
      %p87 = por %p85, %p86
      %p89 = scmp.ne.s32.totalorder %s72, %s88
      %p90 = scmp.eq.s32.totalorder %s15, 0
      %p91 = por %p89, %p90
      %s92 = ssub.s32 %s18, %s27
      %p93 = scmp.eq.s32.totalorder %s92, 0
      %s95 = sadd.s32 %s94, 1
      %s96 = scalar_select %p93, %s94, %s95
      %p99 = pneg %p93
      %p100 = scmp.eq.s32.totalorder %s9, 3
      %p101 = por %p99, %p100
      %p102 = scmp.ne.s32.totalorder %s94, %s97
      %p103 = scmp.eq.s32.totalorder %s9, 0
      %p104 = por %p102, %p103
      %p105 = scmp.ne.s32.totalorder %s94, %s97
      %p106 = scmp.eq.s32.totalorder %s14, 3
      %p107 = por %p105, %p106
      %p108 = scmp.ne.s32.totalorder %s97, %s98
      %p109 = scmp.eq.s32.totalorder %s14, 0
      %p110 = por %p108, %p109
      %p111 = scmp.ne.s32.totalorder %s97, %s98
      %p112 = scmp.eq.s32.totalorder %s15, 3
      %p113 = por %p111, %p112
      %p115 = scmp.ne.s32.totalorder %s98, %s114
      %p116 = scmp.eq.s32.totalorder %s15, 0
      %p117 = por %p115, %p116
      %s118 = ssub.s32 %s16, %s35
      %s119 = ssub.s32 %s17, %s31
      %s120 = sor.u32 %s118, %s119
      %s121 = ssub.s32 %s18, %s27
      %s122 = sor.u32 %s120, %s121
      %p123 = scmp.eq.s32.totalorder %s122, 0
      %s125 = sadd.s32 %s124, 1
      %s126 = scalar_select %p123, %s124, %s125
      %p129 = pneg %p123
      %p130 = scmp.eq.s32.totalorder %s9, 3
      %p131 = por %p129, %p130
      %p132 = scmp.ne.s32.totalorder %s124, %s127
      %p133 = scmp.eq.s32.totalorder %s9, 0
      %p134 = por %p132, %p133
      %p135 = scmp.ne.s32.totalorder %s124, %s127
      %p136 = scmp.eq.s32.totalorder %s14, 3
      %p137 = por %p135, %p136
      %p138 = scmp.ne.s32.totalorder %s127, %s128
      %p139 = scmp.eq.s32.totalorder %s14, 0
      %p140 = por %p138, %p139
      %p141 = scmp.ne.s32.totalorder %s127, %s128
      %p142 = scmp.eq.s32.totalorder %s15, 3
      %p143 = por %p141, %p142
      %p145 = scmp.ne.s32.totalorder %s128, %s144
      %p146 = scmp.eq.s32.totalorder %s15, 0
      %p147 = por %p145, %p146
      %p148 = scmp.le.s32.totalorder 1, %s9
      %p149 = scmp.lt.s32.totalorder %s9, 5
      %p150 = pnand %p148, %p149
      %p151 = pneg %p150
      // Predicated region
      $region9: #{upsample_forward.1} parent=5 // pred_check
        _
      $region10: #{upsample_forward.1} parent=5 // pred_check_branch
        %153 = sbr.rel (%p150) target = $region12
      $region11: #{upsample_forward.1} parent=5 // pred_region
        %s154 = ssub.s32 %s9, 1
        // Predicated region
        $region13: #{upsample_forward.1} parent=11 // pred_check
          %p155 = pneg %p84
        $region14: #{upsample_forward.1} parent=11 // pred_check_branch
          %157 = sbr.rel (%p155) target = $region16
        $region15: #{upsample_forward.1} parent=11 // pred_region
          %p158 = scmp.lt.s32.totalorder %s21, 0
          %s159 = scalar_select %p158, %s21, 0
          %s160 = smul.addr %s159, 2
          %s161 = scalar_lea.vmem %s1, %s160
        $region16: #{upsample_forward.1} parent=11 // pred_fallthru
          _
        // Predicated region
        $region17: #{upsample_forward.1} parent=11 // pred_check
          %p162 = pneg %p110
        $region18: #{upsample_forward.1} parent=11 // pred_check_branch
          %164 = sbr.rel (%p162) target = $region20
        $region19: #{upsample_forward.1} parent=11 // pred_region
          %p165 = scmp.lt.s32.totalorder %s21, 0
          %s166 = scalar_select %p165, %s21, 0
          %s167 = scalar_lea.vmem %s2, %s166
        $region20: #{upsample_forward.1} parent=11 // pred_fallthru
          _
      $region12: #{upsample_forward.1} parent=5 // pred_fallthru
        _
      %p168 = scmp.lt.s32.totalorder %s9, 4
      // Predicated region
      $region21: #{upsample_forward.1} parent=5 // pred_check
        %p169 = pneg %p168
      $region22: #{upsample_forward.1} parent=5 // pred_check_branch
        %171 = sbr.rel (%p169) target = $region24
      $region23: #{upsample_forward.1} parent=5 // pred_region
        // Predicated region
        $region25: #{upsample_forward.1} parent=23 // pred_check
          %p172 = pneg %p52
        $region26: #{upsample_forward.1} parent=23 // pred_check_branch
          %174 = sbr.rel (%p172) target = $region28
        $region27: #{upsample_forward.1} parent=23 // pred_region
          %s175 = smul.u32 %s16, 2
          %s176 = sadd.s32 %s175, %s17
          %p177 = scmp.lt.s32.totalorder %s176, 3
          %s178 = scalar_select %p177, %s176, 3
          %s179 = smul.addr %s178, 30
          %s180 = smul.addr %s179, 4
          %s181 = scalar_lea.vmem %s0, %s180
          %s182 = smul.u32 %s16, 2
          %s183 = sadd.s32 %s182, %s17
        $region28: #{upsample_forward.1} parent=23 // pred_fallthru
          _
      $region24: #{upsample_forward.1} parent=5 // pred_fallthru
        _
      %p184 = scmp.le.s32.totalorder 1, %s9
      %p185 = scmp.lt.s32.totalorder %s9, 5
      %p186 = pnand %p184, %p185
      %p187 = pneg %p186
      // Predicated region
      $region29: #{upsample_forward.1} parent=5 // pred_check
        _
      $region30: #{upsample_forward.1} parent=5 // pred_check_branch
        %189 = sbr.rel (%p186) target = $region32
      $region31: #{upsample_forward.1} parent=5 // pred_region
        %s190 = ssub.s32 %s9, 1
        %s191 = smul.u32 %s19, 2
        %s192 = sadd.s32 %s191, %s20
        %p193 = scmp.lt.s32.totalorder %s192, 3
        %s194 = scalar_select %p193, %s192, 3
        %s195 = smul.addr %s194, 30
        %s196 = smul.addr %s195, 4
        %s197 = scalar_lea.vmem %s0, %s196
        %p198 = pneg %p58
        %p199 = pneg %p55
        %p200 = scmp.lt.s32.totalorder %s21, 0
        %s201 = scalar_select %p200, %s21, 0
        %s202 = smul.addr %s201, 2
        %s203 = scalar_lea.vmem %s1, %s202
        %p204 = pneg %p84
        %p205 = pneg %p81
        %p206 = scmp.lt.s32.totalorder %s21, 0
        %s207 = scalar_select %p206, %s21, 0
        %s208 = scalar_lea.vmem %s2, %s207
        %p209 = pneg %p110
        %p210 = pneg %p107
        %p211 = pneg %p140
        %p212 = pneg %p137
        %s213 = sand.u32 %s127, 1
        %s214 = sand.u32 %s127, 1
        %s215 = smul.addr %s214, 512
        %s216 = scalar_lea.vmem [#allocation2], %s215
        %s217 = smul.u32 %s19, 2
        %s218 = sadd.s32 %s217, %s20
        %p219 = scmp.lt.s32.totalorder %s218, 3
        %s220 = scalar_select %p219, %s218, 3
        %s221 = smul.addr %s220, 30
        %s222 = smul.addr %s221, 4
        %s223 = scalar_lea.vmem %s0, %s222
        %s224 = smul.u32 %s19, 2
        %s225 = sadd.s32 %s224, %s20
        %p226 = scmp.lt.s32.totalorder %s21, 0
        %s227 = scalar_select %p226, %s21, 0
        %s228 = smul.addr %s227, 2
        %s229 = scalar_lea.vmem %s1, %s228
        %p230 = scmp.lt.s32.totalorder %s21, 0
        %s231 = scalar_select %p230, %s21, 0
        %s232 = scalar_lea.vmem %s2, %s231
        %s233 = smul.u32 16, %s20
        %v235 = vld [vmem:[%s223] sm:$0xf]
        %v236 = vld [vmem:[%s223 + $0x4] sm:$0xf]
        %v237 = vld [vmem:[%s223 + $0xc] sm:$0xf]
        %v238 = vld [vmem:[%s223 + $0x10] sm:$0xf]
        %v239 = vld [vmem:[%s223 + $0x18] sm:$0xf]
        %v240 = vld [vmem:[%s223 + $0x1c] sm:$0xf]
        %v241 = vld [vmem:[%s223 + $0x24] sm:$0xf]
        %v242 = vld [vmem:[%s223 + $0x28] sm:$0xf]
        %v243 = vld [vmem:[%s223 + $0x30] sm:$0xf]
        %v244 = vld [vmem:[%s223 + $0x34] sm:$0xf]
        %v245 = vld [vmem:[%s223 + $0x3c] sm:$0xf]
        %v246 = vld [vmem:[%s223 + $0x40] sm:$0xf]
        %v247 = vld [vmem:[%s223 + $0x48] sm:$0xf]
        %v248 = vld [vmem:[%s223 + $0x4c] sm:$0xf]
        %v249 = vld [vmem:[%s223 + $0x54] sm:$0xf]
        %v250 = vld [vmem:[%s223 + $0x58] sm:$0xf]
        %v251 = vld [vmem:[%s223 + $0x8] sm:$0x1]
        %v252 = vld [vmem:[%s223 + $0x14] sm:$0x1]
        %v253 = vld [vmem:[%s223 + $0x20] sm:$0x1]
        %v254 = vld [vmem:[%s223 + $0x2c] sm:$0x1]
        %v255 = vld [vmem:[%s223 + $0x38] sm:$0x1]
        %v256 = vld [vmem:[%s223 + $0x44] sm:$0x1]
        %v257 = vld [vmem:[%s223 + $0x50] sm:$0x1]
        %v258 = vld [vmem:[%s223 + $0x5c] sm:$0x1]
        %vm259 = vsmask.f32 3328
        %vm260 = vsmask.f32 7440
        %vm261 = vmor %vm259, %vm260
        %v263 = vshrl.u32 %v235, 16
        %v265 = vrot.slane %v263, 4
        %v266 = vshll.u32 %v235, 16
        %v268 = vrot.slane %v266, 5
        %v269 = vor.u32 %v265, %v268
        %v270 = vrot.slane %v269, 4
        %v272 = vshll.u32 %v236, 16
        %v274 = vrot.slane %v272, 5
        %v275 = vsel %vm261, %v270, %v274
        %v276 = vshrl.u32 %v236, 16
        %v278 = vrot.slane %v276, 4
        %v279 = vor.u32 %v278, %v274
        %v280 = vrot.slane %v279, 4
        %v282 = vshll.u32 %v251, 16
        %v284 = vrot.slane %v282, 5
        %v285 = vsel %vm261, %v280, %v284
        %v287 = vshrl.u32 %v237, 16
        %v289 = vrot.slane %v287, 4
        %v290 = vshll.u32 %v237, 16
        %v292 = vrot.slane %v290, 5
        %v293 = vor.u32 %v289, %v292
        %v294 = vrot.slane %v293, 4
        %v296 = vshll.u32 %v238, 16
        %v298 = vrot.slane %v296, 5
        %v299 = vsel %vm261, %v294, %v298
        %v300 = vshrl.u32 %v238, 16
        %v302 = vrot.slane %v300, 4
        %v303 = vor.u32 %v302, %v298
        %v304 = vrot.slane %v303, 4
        %v306 = vshll.u32 %v252, 16
        %v308 = vrot.slane %v306, 5
        %v309 = vsel %vm261, %v304, %v308
        %v311 = vshrl.u32 %v239, 16
        %v313 = vrot.slane %v311, 4
        %v314 = vshll.u32 %v239, 16
        %v316 = vrot.slane %v314, 5
        %v317 = vor.u32 %v313, %v316
        %v318 = vrot.slane %v317, 4
        %v320 = vshll.u32 %v240, 16
        %v322 = vrot.slane %v320, 5
        %v323 = vsel %vm261, %v318, %v322
        %v324 = vshrl.u32 %v240, 16
        %v326 = vrot.slane %v324, 4
        %v327 = vor.u32 %v326, %v322
        %v328 = vrot.slane %v327, 4
        %v330 = vshll.u32 %v253, 16
        %v332 = vrot.slane %v330, 5
        %v333 = vsel %vm261, %v328, %v332
        %v335 = vshrl.u32 %v241, 16
        %v337 = vrot.slane %v335, 4
        %v338 = vshll.u32 %v241, 16
        %v340 = vrot.slane %v338, 5
        %v341 = vor.u32 %v337, %v340
        %v342 = vrot.slane %v341, 4
        %v344 = vshll.u32 %v242, 16
        %v346 = vrot.slane %v344, 5
        %v347 = vsel %vm261, %v342, %v346
        %v348 = vshrl.u32 %v242, 16
        %v350 = vrot.slane %v348, 4
        %v351 = vor.u32 %v350, %v346
        %v352 = vrot.slane %v351, 4
        %v354 = vshll.u32 %v254, 16
        %v356 = vrot.slane %v354, 5
        %v357 = vsel %vm261, %v352, %v356
        %v359 = vshrl.u32 %v243, 16
        %v361 = vrot.slane %v359, 4
        %v362 = vshll.u32 %v243, 16
        %v364 = vrot.slane %v362, 5
        %v365 = vor.u32 %v361, %v364
        %v366 = vrot.slane %v365, 4
        %v368 = vshll.u32 %v244, 16
        %v370 = vrot.slane %v368, 5
        %v371 = vsel %vm261, %v366, %v370
        %v372 = vshrl.u32 %v244, 16
        %v374 = vrot.slane %v372, 4
        %v375 = vor.u32 %v374, %v370
        %v376 = vrot.slane %v375, 4
        %v378 = vshll.u32 %v255, 16
        %v380 = vrot.slane %v378, 5
        %v381 = vsel %vm261, %v376, %v380
        %v383 = vshrl.u32 %v245, 16
        %v385 = vrot.slane %v383, 4
        %v386 = vshll.u32 %v245, 16
        %v388 = vrot.slane %v386, 5
        %v389 = vor.u32 %v385, %v388
        %v390 = vrot.slane %v389, 4
        %v392 = vshll.u32 %v246, 16
        %v394 = vrot.slane %v392, 5
        %v395 = vsel %vm261, %v390, %v394
        %v396 = vshrl.u32 %v246, 16
        %v398 = vrot.slane %v396, 4
        %v399 = vor.u32 %v398, %v394
        %v400 = vrot.slane %v399, 4
        %v402 = vshll.u32 %v256, 16
        %v404 = vrot.slane %v402, 5
        %v405 = vsel %vm261, %v400, %v404
        %v407 = vshrl.u32 %v247, 16
        %v409 = vrot.slane %v407, 4
        %v410 = vshll.u32 %v247, 16
        %v412 = vrot.slane %v410, 5
        %v413 = vor.u32 %v409, %v412
        %v414 = vrot.slane %v413, 4
        %v416 = vshll.u32 %v248, 16
        %v418 = vrot.slane %v416, 5
        %v419 = vsel %vm261, %v414, %v418
        %v420 = vshrl.u32 %v248, 16
        %v422 = vrot.slane %v420, 4
        %v423 = vor.u32 %v422, %v418
        %v424 = vrot.slane %v423, 4
        %v426 = vshll.u32 %v257, 16
        %v428 = vrot.slane %v426, 5
        %v429 = vsel %vm261, %v424, %v428
        %v431 = vshrl.u32 %v249, 16
        %v433 = vrot.slane %v431, 4
        %v434 = vshll.u32 %v249, 16
        %v436 = vrot.slane %v434, 5
        %v437 = vor.u32 %v433, %v436
        %v438 = vrot.slane %v437, 4
        %v440 = vshll.u32 %v250, 16
        %v442 = vrot.slane %v440, 5
        %v443 = vsel %vm261, %v438, %v442
        %v444 = vshrl.u32 %v250, 16
        %v446 = vrot.slane %v444, 4
        %v447 = vor.u32 %v446, %v442
        %v448 = vrot.slane %v447, 4
        %v450 = vshll.u32 %v258, 16
        %v452 = vrot.slane %v450, 5
        %v453 = vsel %vm261, %v448, %v452
        %v454 = vld [vmem:[%s223] sm:$0xe]
        %v455 = vld [vmem:[%s223 + $0xc] sm:$0xe]
        %v456 = vld [vmem:[%s223 + $0x18] sm:$0xe]
        %v457 = vld [vmem:[%s223 + $0x24] sm:$0xe]
        %v458 = vld [vmem:[%s223 + $0x30] sm:$0xe]
        %v459 = vld [vmem:[%s223 + $0x3c] sm:$0xe]
        %v460 = vld [vmem:[%s223 + $0x48] sm:$0xe]
        %v461 = vld [vmem:[%s223 + $0x54] sm:$0xe]
        %vm486 = vcmask 1042432
        %vm487 = vcmask 1046532
        %vm488 = vmor %vm486, %vm487
        %v489 = vrot.slane %v454, 5
        %v490 = vrot.slane %v489, 4
        %v491 = vrot.slane %v236, 5
        %v492 = vsel %vm488, %v490, %v491
        %v493 = vrot.slane %v491, 4
        %v494 = vrot.slane %v251, 5
        %v495 = vsel %vm488, %v493, %v494
        %v496 = vrot.slane %v455, 5
        %v497 = vrot.slane %v496, 4
        %v498 = vrot.slane %v238, 5
        %v499 = vsel %vm488, %v497, %v498
        %v500 = vrot.slane %v498, 4
        %v501 = vrot.slane %v252, 5
        %v502 = vsel %vm488, %v500, %v501
        %v503 = vrot.slane %v456, 5
        %v504 = vrot.slane %v503, 4
        %v505 = vrot.slane %v240, 5
        %v506 = vsel %vm488, %v504, %v505
        %v507 = vrot.slane %v505, 4
        %v508 = vrot.slane %v253, 5
        %v509 = vsel %vm488, %v507, %v508
        %v510 = vrot.slane %v457, 5
        %v511 = vrot.slane %v510, 4
        %v512 = vrot.slane %v242, 5
        %v513 = vsel %vm488, %v511, %v512
        %v514 = vrot.slane %v512, 4
        %v515 = vrot.slane %v254, 5
        %v516 = vsel %vm488, %v514, %v515
        %v517 = vrot.slane %v458, 5
        %v518 = vrot.slane %v517, 4
        %v519 = vrot.slane %v244, 5
        %v520 = vsel %vm488, %v518, %v519
        %v521 = vrot.slane %v519, 4
        %v522 = vrot.slane %v255, 5
        %v523 = vsel %vm488, %v521, %v522
        %v524 = vrot.slane %v459, 5
        %v525 = vrot.slane %v524, 4
        %v526 = vrot.slane %v246, 5
        %v527 = vsel %vm488, %v525, %v526
        %v528 = vrot.slane %v526, 4
        %v529 = vrot.slane %v256, 5
        %v530 = vsel %vm488, %v528, %v529
        %v531 = vrot.slane %v460, 5
        %v532 = vrot.slane %v531, 4
        %v533 = vrot.slane %v248, 5
        %v534 = vsel %vm488, %v532, %v533
        %v535 = vrot.slane %v533, 4
        %v536 = vrot.slane %v257, 5
        %v537 = vsel %vm488, %v535, %v536
        %v538 = vrot.slane %v461, 5
        %v539 = vrot.slane %v538, 4
        %v540 = vrot.slane %v250, 5
        %v541 = vsel %vm488, %v539, %v540
        %v542 = vrot.slane %v540, 4
        %v543 = vrot.slane %v258, 5
        %v544 = vsel %vm488, %v542, %v543
        %s545 = scalar_lea.vmem %s223, 12
        %v546 = vld [vmem:[%s545] sm:$0xf]
        %v547 = vld [vmem:[%s545 + $0x4] sm:$0xf]
        %v548 = vld [vmem:[%s545 + $0xc] sm:$0xf]
        %v549 = vld [vmem:[%s545 + $0x10] sm:$0xf]
        %v550 = vld [vmem:[%s545 + $0x18] sm:$0xf]
        %v551 = vld [vmem:[%s545 + $0x1c] sm:$0xf]
        %v552 = vld [vmem:[%s545 + $0x24] sm:$0xf]
        %v553 = vld [vmem:[%s545 + $0x28] sm:$0xf]
        %v554 = vld [vmem:[%s545 + $0x30] sm:$0xf]
        %v555 = vld [vmem:[%s545 + $0x34] sm:$0xf]
        %v556 = vld [vmem:[%s545 + $0x3c] sm:$0xf]
        %v557 = vld [vmem:[%s545 + $0x40] sm:$0xf]
        %v558 = vld [vmem:[%s545 + $0x48] sm:$0xf]
        %v559 = vld [vmem:[%s545 + $0x4c] sm:$0xf]
        %v560 = vld [vmem:[%s545 + $0x54] sm:$0xf]
        %v561 = vld [vmem:[%s545 + $0x58] sm:$0xf]
        %v562 = vld [vmem:[%s545 + $0x8] sm:$0x1]
        %v563 = vld [vmem:[%s545 + $0x14] sm:$0x1]
        %v564 = vld [vmem:[%s545 + $0x20] sm:$0x1]
        %v565 = vld [vmem:[%s545 + $0x2c] sm:$0x1]
        %v566 = vld [vmem:[%s545 + $0x38] sm:$0x1]
        %v567 = vld [vmem:[%s545 + $0x44] sm:$0x1]
        %v568 = vld [vmem:[%s545 + $0x50] sm:$0x1]
        %v569 = vld [vmem:[%s545 + $0x5c] sm:$0x1]
        %v571 = vshrl.u32 %v546, 16
        %v573 = vrot.slane %v571, 4
        %v574 = vshll.u32 %v546, 16
        %v576 = vrot.slane %v574, 5
        %v577 = vor.u32 %v573, %v576
        %v578 = vrot.slane %v577, 4
        %v580 = vshll.u32 %v547, 16
        %v582 = vrot.slane %v580, 5
        %v583 = vsel %vm261, %v578, %v582
        %v584 = vshrl.u32 %v547, 16
        %v586 = vrot.slane %v584, 4
        %v587 = vor.u32 %v586, %v582
        %v588 = vrot.slane %v587, 4
        %v590 = vshll.u32 %v562, 16
        %v592 = vrot.slane %v590, 5
        %v593 = vsel %vm261, %v588, %v592
        %v595 = vshrl.u32 %v548, 16
        %v597 = vrot.slane %v595, 4
        %v598 = vshll.u32 %v548, 16
        %v600 = vrot.slane %v598, 5
        %v601 = vor.u32 %v597, %v600
        %v602 = vrot.slane %v601, 4
        %v604 = vshll.u32 %v549, 16
        %v606 = vrot.slane %v604, 5
        %v607 = vsel %vm261, %v602, %v606
        %v608 = vshrl.u32 %v549, 16
        %v610 = vrot.slane %v608, 4
        %v611 = vor.u32 %v610, %v606
        %v612 = vrot.slane %v611, 4
        %v614 = vshll.u32 %v563, 16
        %v616 = vrot.slane %v614, 5
        %v617 = vsel %vm261, %v612, %v616
        %v619 = vshrl.u32 %v550, 16
        %v621 = vrot.slane %v619, 4
        %v622 = vshll.u32 %v550, 16
        %v624 = vrot.slane %v622, 5
        %v625 = vor.u32 %v621, %v624
        %v626 = vrot.slane %v625, 4
        %v628 = vshll.u32 %v551, 16
        %v630 = vrot.slane %v628, 5
        %v631 = vsel %vm261, %v626, %v630
        %v632 = vshrl.u32 %v551, 16
        %v634 = vrot.slane %v632, 4
        %v635 = vor.u32 %v634, %v630
        %v636 = vrot.slane %v635, 4
        %v638 = vshll.u32 %v564, 16
        %v640 = vrot.slane %v638, 5
        %v641 = vsel %vm261, %v636, %v640
        %v643 = vshrl.u32 %v552, 16
        %v645 = vrot.slane %v643, 4
        %v646 = vshll.u32 %v552, 16
        %v648 = vrot.slane %v646, 5
        %v649 = vor.u32 %v645, %v648
        %v650 = vrot.slane %v649, 4
        %v652 = vshll.u32 %v553, 16
        %v654 = vrot.slane %v652, 5
        %v655 = vsel %vm261, %v650, %v654
        %v656 = vshrl.u32 %v553, 16
        %v658 = vrot.slane %v656, 4
        %v659 = vor.u32 %v658, %v654
        %v660 = vrot.slane %v659, 4
        %v662 = vshll.u32 %v565, 16
        %v664 = vrot.slane %v662, 5
        %v665 = vsel %vm261, %v660, %v664
        %v667 = vshrl.u32 %v554, 16
        %v669 = vrot.slane %v667, 4
        %v670 = vshll.u32 %v554, 16
        %v672 = vrot.slane %v670, 5
        %v673 = vor.u32 %v669, %v672
        %v674 = vrot.slane %v673, 4
        %v676 = vshll.u32 %v555, 16
        %v678 = vrot.slane %v676, 5
        %v679 = vsel %vm261, %v674, %v678
        %v680 = vshrl.u32 %v555, 16
        %v682 = vrot.slane %v680, 4
        %v683 = vor.u32 %v682, %v678
        %v684 = vrot.slane %v683, 4
        %v686 = vshll.u32 %v566, 16
        %v688 = vrot.slane %v686, 5
        %v689 = vsel %vm261, %v684, %v688
        %v691 = vshrl.u32 %v556, 16
        %v693 = vrot.slane %v691, 4
        %v694 = vshll.u32 %v556, 16
        %v696 = vrot.slane %v694, 5
        %v697 = vor.u32 %v693, %v696
        %v698 = vrot.slane %v697, 4
        %v700 = vshll.u32 %v557, 16
        %v702 = vrot.slane %v700, 5
        %v703 = vsel %vm261, %v698, %v702
        %v704 = vshrl.u32 %v557, 16
        %v706 = vrot.slane %v704, 4
        %v707 = vor.u32 %v706, %v702
        %v708 = vrot.slane %v707, 4
        %v710 = vshll.u32 %v567, 16
        %v712 = vrot.slane %v710, 5
        %v713 = vsel %vm261, %v708, %v712
        %v715 = vshrl.u32 %v558, 16
        %v717 = vrot.slane %v715, 4
        %v718 = vshll.u32 %v558, 16
        %v720 = vrot.slane %v718, 5
        %v721 = vor.u32 %v717, %v720
        %v722 = vrot.slane %v721, 4
        %v724 = vshll.u32 %v559, 16
        %v726 = vrot.slane %v724, 5
        %v727 = vsel %vm261, %v722, %v726
        %v728 = vshrl.u32 %v559, 16
        %v730 = vrot.slane %v728, 4
        %v731 = vor.u32 %v730, %v726
        %v732 = vrot.slane %v731, 4
        %v734 = vshll.u32 %v568, 16
        %v736 = vrot.slane %v734, 5
        %v737 = vsel %vm261, %v732, %v736
        %v739 = vshrl.u32 %v560, 16
        %v741 = vrot.slane %v739, 4
        %v742 = vshll.u32 %v560, 16
        %v744 = vrot.slane %v742, 5
        %v745 = vor.u32 %v741, %v744
        %v746 = vrot.slane %v745, 4
        %v748 = vshll.u32 %v561, 16
        %v750 = vrot.slane %v748, 5
        %v751 = vsel %vm261, %v746, %v750
        %v752 = vshrl.u32 %v561, 16
        %v754 = vrot.slane %v752, 4
        %v755 = vor.u32 %v754, %v750
        %v756 = vrot.slane %v755, 4
        %v758 = vshll.u32 %v569, 16
        %v760 = vrot.slane %v758, 5
        %v761 = vsel %vm261, %v756, %v760
        %v762 = vld [vmem:[%s545] sm:$0xe]
        %v763 = vld [vmem:[%s545 + $0xc] sm:$0xe]
        %v764 = vld [vmem:[%s545 + $0x18] sm:$0xe]
        %v765 = vld [vmem:[%s545 + $0x24] sm:$0xe]
        %v766 = vld [vmem:[%s545 + $0x30] sm:$0xe]
        %v767 = vld [vmem:[%s545 + $0x3c] sm:$0xe]
        %v768 = vld [vmem:[%s545 + $0x48] sm:$0xe]
        %v769 = vld [vmem:[%s545 + $0x54] sm:$0xe]
        %v794 = vrot.slane %v762, 5
        %v795 = vrot.slane %v794, 4
        %v796 = vrot.slane %v547, 5
        %v797 = vsel %vm488, %v795, %v796
        %v798 = vrot.slane %v796, 4
        %v799 = vrot.slane %v562, 5
        %v800 = vsel %vm488, %v798, %v799
        %v801 = vrot.slane %v763, 5
        %v802 = vrot.slane %v801, 4
        %v803 = vrot.slane %v549, 5
        %v804 = vsel %vm488, %v802, %v803
        %v805 = vrot.slane %v803, 4
        %v806 = vrot.slane %v563, 5
        %v807 = vsel %vm488, %v805, %v806
        %v808 = vrot.slane %v764, 5
        %v809 = vrot.slane %v808, 4
        %v810 = vrot.slane %v551, 5
        %v811 = vsel %vm488, %v809, %v810
        %v812 = vrot.slane %v810, 4
        %v813 = vrot.slane %v564, 5
        %v814 = vsel %vm488, %v812, %v813
        %v815 = vrot.slane %v765, 5
        %v816 = vrot.slane %v815, 4
        %v817 = vrot.slane %v553, 5
        %v818 = vsel %vm488, %v816, %v817
        %v819 = vrot.slane %v817, 4
        %v820 = vrot.slane %v565, 5
        %v821 = vsel %vm488, %v819, %v820
        %v822 = vrot.slane %v766, 5
        %v823 = vrot.slane %v822, 4
        %v824 = vrot.slane %v555, 5
        %v825 = vsel %vm488, %v823, %v824
        %v826 = vrot.slane %v824, 4
        %v827 = vrot.slane %v566, 5
        %v828 = vsel %vm488, %v826, %v827
        %v829 = vrot.slane %v767, 5
        %v830 = vrot.slane %v829, 4
        %v831 = vrot.slane %v557, 5
        %v832 = vsel %vm488, %v830, %v831
        %v833 = vrot.slane %v831, 4
        %v834 = vrot.slane %v567, 5
        %v835 = vsel %vm488, %v833, %v834
        %v836 = vrot.slane %v768, 5
        %v837 = vrot.slane %v836, 4
        %v838 = vrot.slane %v559, 5
        %v839 = vsel %vm488, %v837, %v838
        %v840 = vrot.slane %v838, 4
        %v841 = vrot.slane %v568, 5
        %v842 = vsel %vm488, %v840, %v841
        %v843 = vrot.slane %v769, 5
        %v844 = vrot.slane %v843, 4
        %v845 = vrot.slane %v561, 5
        %v846 = vsel %vm488, %v844, %v845
        %v847 = vrot.slane %v845, 4
        %v848 = vrot.slane %v569, 5
        %v849 = vsel %vm488, %v847, %v848
        %s850 = scalar_lea.vmem %s223, 24
        %v851 = vld [vmem:[%s850] sm:$0xf]
        %v852 = vld [vmem:[%s850 + $0x4] sm:$0xf]
        %v853 = vld [vmem:[%s850 + $0xc] sm:$0xf]
        %v854 = vld [vmem:[%s850 + $0x10] sm:$0xf]
        %v855 = vld [vmem:[%s850 + $0x18] sm:$0xf]
        %v856 = vld [vmem:[%s850 + $0x1c] sm:$0xf]
        %v857 = vld [vmem:[%s850 + $0x24] sm:$0xf]
        %v858 = vld [vmem:[%s850 + $0x28] sm:$0xf]
        %v859 = vld [vmem:[%s850 + $0x30] sm:$0xf]
        %v860 = vld [vmem:[%s850 + $0x34] sm:$0xf]
        %v861 = vld [vmem:[%s850 + $0x3c] sm:$0xf]
        %v862 = vld [vmem:[%s850 + $0x40] sm:$0xf]
        %v863 = vld [vmem:[%s850 + $0x48] sm:$0xf]
        %v864 = vld [vmem:[%s850 + $0x4c] sm:$0xf]
        %v865 = vld [vmem:[%s850 + $0x54] sm:$0xf]
        %v866 = vld [vmem:[%s850 + $0x58] sm:$0xf]
        %v867 = vld [vmem:[%s850 + $0x8] sm:$0x1]
        %v868 = vld [vmem:[%s850 + $0x14] sm:$0x1]
        %v869 = vld [vmem:[%s850 + $0x20] sm:$0x1]
        %v870 = vld [vmem:[%s850 + $0x2c] sm:$0x1]
        %v871 = vld [vmem:[%s850 + $0x38] sm:$0x1]
        %v872 = vld [vmem:[%s850 + $0x44] sm:$0x1]
        %v873 = vld [vmem:[%s850 + $0x50] sm:$0x1]
        %v874 = vld [vmem:[%s850 + $0x5c] sm:$0x1]
        %v876 = vshrl.u32 %v851, 16
        %v878 = vrot.slane %v876, 4
        %v879 = vshll.u32 %v851, 16
        %v881 = vrot.slane %v879, 5
        %v882 = vor.u32 %v878, %v881
        %v883 = vrot.slane %v882, 4
        %v885 = vshll.u32 %v852, 16
        %v887 = vrot.slane %v885, 5
        %v888 = vsel %vm261, %v883, %v887
        %v889 = vshrl.u32 %v852, 16
        %v891 = vrot.slane %v889, 4
        %v892 = vor.u32 %v891, %v887
        %v893 = vrot.slane %v892, 4
        %v895 = vshll.u32 %v867, 16
        %v897 = vrot.slane %v895, 5
        %v898 = vsel %vm261, %v893, %v897
        %v900 = vshrl.u32 %v853, 16
        %v902 = vrot.slane %v900, 4
        %v903 = vshll.u32 %v853, 16
        %v905 = vrot.slane %v903, 5
        %v906 = vor.u32 %v902, %v905
        %v907 = vrot.slane %v906, 4
        %v909 = vshll.u32 %v854, 16
        %v911 = vrot.slane %v909, 5
        %v912 = vsel %vm261, %v907, %v911
        %v913 = vshrl.u32 %v854, 16
        %v915 = vrot.slane %v913, 4
        %v916 = vor.u32 %v915, %v911
        %v917 = vrot.slane %v916, 4
        %v919 = vshll.u32 %v868, 16
        %v921 = vrot.slane %v919, 5
        %v922 = vsel %vm261, %v917, %v921
        %v924 = vshrl.u32 %v855, 16
        %v926 = vrot.slane %v924, 4
        %v927 = vshll.u32 %v855, 16
        %v929 = vrot.slane %v927, 5
        %v930 = vor.u32 %v926, %v929
        %v931 = vrot.slane %v930, 4
        %v933 = vshll.u32 %v856, 16
        %v935 = vrot.slane %v933, 5
        %v936 = vsel %vm261, %v931, %v935
        %v937 = vshrl.u32 %v856, 16
        %v939 = vrot.slane %v937, 4
        %v940 = vor.u32 %v939, %v935
        %v941 = vrot.slane %v940, 4
        %v943 = vshll.u32 %v869, 16
        %v945 = vrot.slane %v943, 5
        %v946 = vsel %vm261, %v941, %v945
        %v948 = vshrl.u32 %v857, 16
        %v950 = vrot.slane %v948, 4
        %v951 = vshll.u32 %v857, 16
        %v953 = vrot.slane %v951, 5
        %v954 = vor.u32 %v950, %v953
        %v955 = vrot.slane %v954, 4
        %v957 = vshll.u32 %v858, 16
        %v959 = vrot.slane %v957, 5
        %v960 = vsel %vm261, %v955, %v959
        %v961 = vshrl.u32 %v858, 16
        %v963 = vrot.slane %v961, 4
        %v964 = vor.u32 %v963, %v959
        %v965 = vrot.slane %v964, 4
        %v967 = vshll.u32 %v870, 16
        %v969 = vrot.slane %v967, 5
        %v970 = vsel %vm261, %v965, %v969
        %v972 = vshrl.u32 %v859, 16
        %v974 = vrot.slane %v972, 4
        %v975 = vshll.u32 %v859, 16
        %v977 = vrot.slane %v975, 5
        %v978 = vor.u32 %v974, %v977
        %v979 = vrot.slane %v978, 4
        %v981 = vshll.u32 %v860, 16
        %v983 = vrot.slane %v981, 5
        %v984 = vsel %vm261, %v979, %v983
        %v985 = vshrl.u32 %v860, 16
        %v987 = vrot.slane %v985, 4
        %v988 = vor.u32 %v987, %v983
        %v989 = vrot.slane %v988, 4
        %v991 = vshll.u32 %v871, 16
        %v993 = vrot.slane %v991, 5
        %v994 = vsel %vm261, %v989, %v993
        %v996 = vshrl.u32 %v861, 16
        %v998 = vrot.slane %v996, 4
        %v999 = vshll.u32 %v861, 16
        %v1001 = vrot.slane %v999, 5
        %v1002 = vor.u32 %v998, %v1001
        %v1003 = vrot.slane %v1002, 4
        %v1005 = vshll.u32 %v862, 16
        %v1007 = vrot.slane %v1005, 5
        %v1008 = vsel %vm261, %v1003, %v1007
        %v1009 = vshrl.u32 %v862, 16
        %v1011 = vrot.slane %v1009, 4
        %v1012 = vor.u32 %v1011, %v1007
        %v1013 = vrot.slane %v1012, 4
        %v1015 = vshll.u32 %v872, 16
        %v1017 = vrot.slane %v1015, 5
        %v1018 = vsel %vm261, %v1013, %v1017
        %v1020 = vshrl.u32 %v863, 16
        %v1022 = vrot.slane %v1020, 4
        %v1023 = vshll.u32 %v863, 16
        %v1025 = vrot.slane %v1023, 5
        %v1026 = vor.u32 %v1022, %v1025
        %v1027 = vrot.slane %v1026, 4
        %v1029 = vshll.u32 %v864, 16
        %v1031 = vrot.slane %v1029, 5
        %v1032 = vsel %vm261, %v1027, %v1031
        %v1033 = vshrl.u32 %v864, 16
        %v1035 = vrot.slane %v1033, 4
        %v1036 = vor.u32 %v1035, %v1031
        %v1037 = vrot.slane %v1036, 4
        %v1039 = vshll.u32 %v873, 16
        %v1041 = vrot.slane %v1039, 5
        %v1042 = vsel %vm261, %v1037, %v1041
        %v1044 = vshrl.u32 %v865, 16
        %v1046 = vrot.slane %v1044, 4
        %v1047 = vshll.u32 %v865, 16
        %v1049 = vrot.slane %v1047, 5
        %v1050 = vor.u32 %v1046, %v1049
        %v1051 = vrot.slane %v1050, 4
        %v1053 = vshll.u32 %v866, 16
        %v1055 = vrot.slane %v1053, 5
        %v1056 = vsel %vm261, %v1051, %v1055
        %v1057 = vshrl.u32 %v866, 16
        %v1059 = vrot.slane %v1057, 4
        %v1060 = vor.u32 %v1059, %v1055
        %v1061 = vrot.slane %v1060, 4
        %v1063 = vshll.u32 %v874, 16
        %v1065 = vrot.slane %v1063, 5
        %v1066 = vsel %vm261, %v1061, %v1065
        %v1067 = vld [vmem:[%s850] sm:$0xe]
        %v1068 = vld [vmem:[%s850 + $0xc] sm:$0xe]
        %v1069 = vld [vmem:[%s850 + $0x18] sm:$0xe]
        %v1070 = vld [vmem:[%s850 + $0x24] sm:$0xe]
        %v1071 = vld [vmem:[%s850 + $0x30] sm:$0xe]
        %v1072 = vld [vmem:[%s850 + $0x3c] sm:$0xe]
        %v1073 = vld [vmem:[%s850 + $0x48] sm:$0xe]
        %v1074 = vld [vmem:[%s850 + $0x54] sm:$0xe]
        %v1099 = vrot.slane %v1067, 5
        %v1100 = vrot.slane %v1099, 4
        %v1101 = vrot.slane %v852, 5
        %v1102 = vsel %vm488, %v1100, %v1101
        %v1103 = vrot.slane %v1101, 4
        %v1104 = vrot.slane %v867, 5
        %v1105 = vsel %vm488, %v1103, %v1104
        %v1106 = vrot.slane %v1068, 5
        %v1107 = vrot.slane %v1106, 4
        %v1108 = vrot.slane %v854, 5
        %v1109 = vsel %vm488, %v1107, %v1108
        %v1110 = vrot.slane %v1108, 4
        %v1111 = vrot.slane %v868, 5
        %v1112 = vsel %vm488, %v1110, %v1111
        %v1113 = vrot.slane %v1069, 5
        %v1114 = vrot.slane %v1113, 4
        %v1115 = vrot.slane %v856, 5
        %v1116 = vsel %vm488, %v1114, %v1115
        %v1117 = vrot.slane %v1115, 4
        %v1118 = vrot.slane %v869, 5
        %v1119 = vsel %vm488, %v1117, %v1118
        %v1120 = vrot.slane %v1070, 5
        %v1121 = vrot.slane %v1120, 4
        %v1122 = vrot.slane %v858, 5
        %v1123 = vsel %vm488, %v1121, %v1122
        %v1124 = vrot.slane %v1122, 4
        %v1125 = vrot.slane %v870, 5
        %v1126 = vsel %vm488, %v1124, %v1125
        %v1127 = vrot.slane %v1071, 5
        %v1128 = vrot.slane %v1127, 4
        %v1129 = vrot.slane %v860, 5
        %v1130 = vsel %vm488, %v1128, %v1129
        %v1131 = vrot.slane %v1129, 4
        %v1132 = vrot.slane %v871, 5
        %v1133 = vsel %vm488, %v1131, %v1132
        %v1134 = vrot.slane %v1072, 5
        %v1135 = vrot.slane %v1134, 4
        %v1136 = vrot.slane %v862, 5
        %v1137 = vsel %vm488, %v1135, %v1136
        %v1138 = vrot.slane %v1136, 4
        %v1139 = vrot.slane %v872, 5
        %v1140 = vsel %vm488, %v1138, %v1139
        %v1141 = vrot.slane %v1073, 5
        %v1142 = vrot.slane %v1141, 4
        %v1143 = vrot.slane %v864, 5
        %v1144 = vsel %vm488, %v1142, %v1143
        %v1145 = vrot.slane %v1143, 4
        %v1146 = vrot.slane %v873, 5
        %v1147 = vsel %vm488, %v1145, %v1146
        %v1148 = vrot.slane %v1074, 5
        %v1149 = vrot.slane %v1148, 4
        %v1150 = vrot.slane %v866, 5
        %v1151 = vsel %vm488, %v1149, %v1150
        %v1152 = vrot.slane %v1150, 4
        %v1153 = vrot.slane %v874, 5
        %v1154 = vsel %vm488, %v1152, %v1153
        %v1155 = vld [vmem:[%s232] sm:$0x1]
        %v1156 = vld [vmem:[%s229] sm:$0x3]
        %s1157 = scalar_lea.vmem %s229, 2
        %v1158 = vld [vmem:[%s1157] sm:$0x3]
        %v1159 = vunpack.c.l.b16 %v275
        %v1160 = vunpack.c.l.b16 %v285
        %v1161 = vunpack.c.l.b16 %v299
        %v1162 = vunpack.c.l.b16 %v309
        %v1163 = vunpack.c.l.b16 %v323
        %v1164 = vunpack.c.l.b16 %v333
        %v1165 = vunpack.c.l.b16 %v347
        %v1166 = vunpack.c.l.b16 %v357
        %v1167 = vunpack.c.l.b16 %v371
        %v1168 = vunpack.c.l.b16 %v381
        %v1169 = vunpack.c.l.b16 %v395
        %v1170 = vunpack.c.l.b16 %v405
        %v1171 = vunpack.c.l.b16 %v419
        %v1172 = vunpack.c.l.b16 %v429
        %v1173 = vunpack.c.l.b16 %v443
        %v1174 = vunpack.c.l.b16 %v453
        %v1175 = vpack.c.b16 %v1160, %v1159
        %v1176 = vpack.c.b16 %v1162, %v1161
        %v1177 = vpack.c.b16 %v1164, %v1163
        %v1178 = vpack.c.b16 %v1166, %v1165
        %v1179 = vpack.c.b16 %v1168, %v1167
        %v1180 = vpack.c.b16 %v1170, %v1169
        %v1181 = vpack.c.b16 %v1172, %v1171
        %v1182 = vpack.c.b16 %v1174, %v1173
        %vm1183 = vcmask 31744
        %v1185 = vsel %vm1183, %v1175, 0
        %v1188 = vsel %vm1183, %v1176, 0
        %v1191 = vsel %vm1183, %v1177, 0
        %v1194 = vsel %vm1183, %v1178, 0
        %v1197 = vsel %vm1183, %v1179, 0
        %v1200 = vsel %vm1183, %v1180, 0
        %v1203 = vsel %vm1183, %v1181, 0
        %v1206 = vsel %vm1183, %v1182, 0
        %vm1208 = vcmask 1041408
        %v1210 = vsel %vm1208, %v1158, 0
        %1212 = vmatprep.subr.bf16.mxu0 0
        %1213 = vmatpush1.bf16.msra.mxu0 0
        %1214 = vmatprep.subr.bf16.mxu0 0
        %1215 = vmatpush1.bf16.msra.mxu0 0
        %1216 = vmatprep.subr.bf16.mxu0 0
        %1217 = vmatpush1.bf16.msra.mxu0 0
        %1218 = vmatprep.subr.bf16.mxu0 0
        %1219 = vmatpush1.bf16.msra.mxu0 0
        %1220 = vmatprep.subr.bf16.mxu0 0
        %1221 = vmatpush1.bf16.msra.mxu0 0
        %1222 = vmatprep.subr.bf16.mxu0 0
        %1223 = vmatpush1.bf16.msra.mxu0 0
        %1224 = vmatprep.subr.bf16.mxu0 0
        %1225 = vmatpush1.bf16.msra.mxu0 0
        %1226 = vmatprep.subr.bf16.mxu0 0
        %1227 = vmatpush1.bf16.msra.mxu0 %v1210
        %1228 = vmatprep.subr.bf16.mxu0 0
        %1229 = vmatpush2.bf16.msra.mxu0 0
        %1230 = vmatprep.subr.bf16.mxu0 0
        %1231 = vmatpush2.bf16.msra.mxu0 0
        %1232 = vmatprep.subr.bf16.mxu0 0
        %1233 = vmatpush2.bf16.msra.mxu0 0
        %1234 = vmatprep.subr.bf16.mxu0 0
        %1235 = vmatpush2.bf16.msra.mxu0 0
        %1236 = vmatprep.subr.bf16.mxu0 0
        %1237 = vmatpush2.bf16.msra.mxu0 0
        %1238 = vmatprep.subr.bf16.mxu0 0
        %1239 = vmatpush2.bf16.msra.mxu0 0
        %1240 = vmatprep.subr.bf16.mxu0 0
        %1241 = vmatpush2.bf16.msra.mxu0 0
        %1242 = vmatprep.subr.bf16.mxu0 0
        %1243 = vmatpush2.bf16.msra.mxu0 0
        %1244 = vmatprep.mubr.bf16.mxu0 0
        %1245 = vmatmul.mubr.bf16.gmra.mxu0 %v1185
        %v1246 = vpop.f32.mrf.mxu0
        %v1247 = vadd.f32 0.0, %v1246
        %v1248 = vpop.f32.mrf.mxu0
        %v1249 = vpop.f32.mrf.mxu0
        %v1250 = vadd.f32 0.0, %v1249
        %v1251 = vpop.f32.mrf.mxu0
        %1252 = vmatprep.mubr.bf16.mxu0 0
        %1253 = vmatmul.mubr.bf16.gmra.mxu0 %v1188
        %v1254 = vpop.f32.mrf.mxu0
        %v1255 = vadd.f32 0.0, %v1254
        %v1256 = vpop.f32.mrf.mxu0
        %v1257 = vpop.f32.mrf.mxu0
        %v1258 = vadd.f32 0.0, %v1257
        %v1259 = vpop.f32.mrf.mxu0
        %1260 = vmatprep.mubr.bf16.mxu0 0
        %1261 = vmatmul.mubr.bf16.gmra.mxu0 %v1191
        %v1262 = vpop.f32.mrf.mxu0
        %v1263 = vadd.f32 0.0, %v1262
        %v1264 = vpop.f32.mrf.mxu0
        %v1265 = vpop.f32.mrf.mxu0
        %v1266 = vadd.f32 0.0, %v1265
        %v1267 = vpop.f32.mrf.mxu0
        %1268 = vmatprep.mubr.bf16.mxu0 0
        %1269 = vmatmul.mubr.bf16.gmra.mxu0 %v1194
        %v1270 = vpop.f32.mrf.mxu0
        %v1271 = vadd.f32 0.0, %v1270
        %v1272 = vpop.f32.mrf.mxu0
        %v1273 = vpop.f32.mrf.mxu0
        %v1274 = vadd.f32 0.0, %v1273
        %v1275 = vpop.f32.mrf.mxu0
        %1276 = vmatprep.mubr.bf16.mxu0 0
        %1277 = vmatmul.mubr.bf16.gmra.mxu0 %v1197
        %v1278 = vpop.f32.mrf.mxu0
        %v1279 = vadd.f32 0.0, %v1278
        %v1280 = vpop.f32.mrf.mxu0
        %v1281 = vpop.f32.mrf.mxu0
        %v1282 = vadd.f32 0.0, %v1281
        %v1283 = vpop.f32.mrf.mxu0
        %1284 = vmatprep.mubr.bf16.mxu0 0
        %1285 = vmatmul.mubr.bf16.gmra.mxu0 %v1200
        %v1286 = vpop.f32.mrf.mxu0
        %v1287 = vadd.f32 0.0, %v1286
        %v1288 = vpop.f32.mrf.mxu0
        %v1289 = vpop.f32.mrf.mxu0
        %v1290 = vadd.f32 0.0, %v1289
        %v1291 = vpop.f32.mrf.mxu0
        %1292 = vmatprep.mubr.bf16.mxu0 0
        %1293 = vmatmul.mubr.bf16.gmra.mxu0 %v1203
        %v1294 = vpop.f32.mrf.mxu0
        %v1295 = vadd.f32 0.0, %v1294
        %v1296 = vpop.f32.mrf.mxu0
        %v1297 = vpop.f32.mrf.mxu0
        %v1298 = vadd.f32 0.0, %v1297
        %v1299 = vpop.f32.mrf.mxu0
        %1300 = vmatprep.mubr.bf16.mxu0 0
        %1301 = vmatmul.mubr.bf16.gmra.mxu0 %v1206
        %v1302 = vpop.f32.mrf.mxu0
        %v1303 = vadd.f32 0.0, %v1302
        %v1304 = vpop.f32.mrf.mxu0
        %v1305 = vpop.f32.mrf.mxu0
        %v1306 = vadd.f32 0.0, %v1305
        %v1307 = vpop.f32.mrf.mxu0
        %1308 = vdwg.mxu0
        %v1317 = vunpack.c.l.b16 %v235
        %v1318 = vunpack.c.l.b16 %v236
        %v1319 = vunpack.c.l.b16 %v237
        %v1320 = vunpack.c.l.b16 %v238
        %v1321 = vunpack.c.l.b16 %v239
        %v1322 = vunpack.c.l.b16 %v240
        %v1323 = vunpack.c.l.b16 %v241
        %v1324 = vunpack.c.l.b16 %v242
        %v1325 = vunpack.c.l.b16 %v243
        %v1326 = vunpack.c.l.b16 %v244
        %v1327 = vunpack.c.l.b16 %v245
        %v1328 = vunpack.c.l.b16 %v246
        %v1329 = vunpack.c.l.b16 %v247
        %v1330 = vunpack.c.l.b16 %v248
        %v1331 = vunpack.c.l.b16 %v249
        %v1332 = vunpack.c.l.b16 %v250
        %v1333 = vpack.c.b16 %v1318, %v1317
        %v1334 = vpack.c.b16 %v1320, %v1319
        %v1335 = vpack.c.b16 %v1322, %v1321
        %v1336 = vpack.c.b16 %v1324, %v1323
        %v1337 = vpack.c.b16 %v1326, %v1325
        %v1338 = vpack.c.b16 %v1328, %v1327
        %v1339 = vpack.c.b16 %v1330, %v1329
        %v1340 = vpack.c.b16 %v1332, %v1331
        %v1342 = vsel %vm1183, %v1333, 0
        %v1345 = vsel %vm1183, %v1334, 0
        %v1348 = vsel %vm1183, %v1335, 0
        %v1351 = vsel %vm1183, %v1336, 0
        %v1354 = vsel %vm1183, %v1337, 0
        %v1357 = vsel %vm1183, %v1338, 0
        %v1360 = vsel %vm1183, %v1339, 0
        %v1363 = vsel %vm1183, %v1340, 0
        %v1366 = vsel %vm1208, %v1156, 0
        %1368 = vmatprep.subr.bf16.mxu0 0
        %1369 = vmatpush1.bf16.msra.mxu0 0
        %1370 = vmatprep.subr.bf16.mxu0 0
        %1371 = vmatpush1.bf16.msra.mxu0 0
        %1372 = vmatprep.subr.bf16.mxu0 0
        %1373 = vmatpush1.bf16.msra.mxu0 0
        %1374 = vmatprep.subr.bf16.mxu0 0
        %1375 = vmatpush1.bf16.msra.mxu0 0
        %1376 = vmatprep.subr.bf16.mxu0 0
        %1377 = vmatpush1.bf16.msra.mxu0 0
        %1378 = vmatprep.subr.bf16.mxu0 0
        %1379 = vmatpush1.bf16.msra.mxu0 0
        %1380 = vmatprep.subr.bf16.mxu0 0
        %1381 = vmatpush1.bf16.msra.mxu0 0
        %1382 = vmatprep.subr.bf16.mxu0 0
        %1383 = vmatpush1.bf16.msra.mxu0 %v1366
        %1384 = vmatprep.subr.bf16.mxu0 0
        %1385 = vmatpush2.bf16.msra.mxu0 0
        %1386 = vmatprep.subr.bf16.mxu0 0
        %1387 = vmatpush2.bf16.msra.mxu0 0
        %1388 = vmatprep.subr.bf16.mxu0 0
        %1389 = vmatpush2.bf16.msra.mxu0 0
        %1390 = vmatprep.subr.bf16.mxu0 0
        %1391 = vmatpush2.bf16.msra.mxu0 0
        %1392 = vmatprep.subr.bf16.mxu0 0
        %1393 = vmatpush2.bf16.msra.mxu0 0
        %1394 = vmatprep.subr.bf16.mxu0 0
        %1395 = vmatpush2.bf16.msra.mxu0 0
        %1396 = vmatprep.subr.bf16.mxu0 0
        %1397 = vmatpush2.bf16.msra.mxu0 0
        %1398 = vmatprep.subr.bf16.mxu0 0
        %1399 = vmatpush2.bf16.msra.mxu0 0
        %1400 = vmatprep.mubr.bf16.mxu0 0
        %1401 = vmatmul.mubr.bf16.gmra.mxu0 %v1342
        %v1402 = vpop.f32.mrf.mxu0
        %v1403 = vadd.f32 %v1247, %v1402
        %v1404 = vpop.f32.mrf.mxu0
        %v1405 = vpop.f32.mrf.mxu0
        %v1406 = vadd.f32 %v1250, %v1405
        %v1407 = vpop.f32.mrf.mxu0
        %1408 = vmatprep.mubr.bf16.mxu0 0
        %1409 = vmatmul.mubr.bf16.gmra.mxu0 %v1345
        %v1410 = vpop.f32.mrf.mxu0
        %v1411 = vadd.f32 %v1255, %v1410
        %v1412 = vpop.f32.mrf.mxu0
        %v1413 = vpop.f32.mrf.mxu0
        %v1414 = vadd.f32 %v1258, %v1413
        %v1415 = vpop.f32.mrf.mxu0
        %1416 = vmatprep.mubr.bf16.mxu0 0
        %1417 = vmatmul.mubr.bf16.gmra.mxu0 %v1348
        %v1418 = vpop.f32.mrf.mxu0
        %v1419 = vadd.f32 %v1263, %v1418
        %v1420 = vpop.f32.mrf.mxu0
        %v1421 = vpop.f32.mrf.mxu0
        %v1422 = vadd.f32 %v1266, %v1421
        %v1423 = vpop.f32.mrf.mxu0
        %1424 = vmatprep.mubr.bf16.mxu0 0
        %1425 = vmatmul.mubr.bf16.gmra.mxu0 %v1351
        %v1426 = vpop.f32.mrf.mxu0
        %v1427 = vadd.f32 %v1271, %v1426
        %v1428 = vpop.f32.mrf.mxu0
        %v1429 = vpop.f32.mrf.mxu0
        %v1430 = vadd.f32 %v1274, %v1429
        %v1431 = vpop.f32.mrf.mxu0
        %1432 = vmatprep.mubr.bf16.mxu0 0
        %1433 = vmatmul.mubr.bf16.gmra.mxu0 %v1354
        %v1434 = vpop.f32.mrf.mxu0
        %v1435 = vadd.f32 %v1279, %v1434
        %v1436 = vpop.f32.mrf.mxu0
        %v1437 = vpop.f32.mrf.mxu0
        %v1438 = vadd.f32 %v1282, %v1437
        %v1439 = vpop.f32.mrf.mxu0
        %1440 = vmatprep.mubr.bf16.mxu0 0
        %1441 = vmatmul.mubr.bf16.gmra.mxu0 %v1357
        %v1442 = vpop.f32.mrf.mxu0
        %v1443 = vadd.f32 %v1287, %v1442
        %v1444 = vpop.f32.mrf.mxu0
        %v1445 = vpop.f32.mrf.mxu0
        %v1446 = vadd.f32 %v1290, %v1445
        %v1447 = vpop.f32.mrf.mxu0
        %1448 = vmatprep.mubr.bf16.mxu0 0
        %1449 = vmatmul.mubr.bf16.gmra.mxu0 %v1360
        %v1450 = vpop.f32.mrf.mxu0
        %v1451 = vadd.f32 %v1295, %v1450
        %v1452 = vpop.f32.mrf.mxu0
        %v1453 = vpop.f32.mrf.mxu0
        %v1454 = vadd.f32 %v1298, %v1453
        %v1455 = vpop.f32.mrf.mxu0
        %1456 = vmatprep.mubr.bf16.mxu0 0
        %1457 = vmatmul.mubr.bf16.gmra.mxu0 %v1363
        %v1458 = vpop.f32.mrf.mxu0
        %v1459 = vadd.f32 %v1303, %v1458
        %v1460 = vpop.f32.mrf.mxu0
        %v1461 = vpop.f32.mrf.mxu0
        %v1462 = vadd.f32 %v1306, %v1461
        %v1463 = vpop.f32.mrf.mxu0
        %1464 = vdwg.mxu0
        %s1465 = scalar_lea.vmem %s229, 4
        %v1466 = vld [vmem:[%s1465] sm:$0x3]
        %v1475 = vunpack.c.l.b16 %v546
        %v1476 = vunpack.c.l.b16 %v547
        %v1477 = vunpack.c.l.b16 %v548
        %v1478 = vunpack.c.l.b16 %v549
        %v1479 = vunpack.c.l.b16 %v550
        %v1480 = vunpack.c.l.b16 %v551
        %v1481 = vunpack.c.l.b16 %v552
        %v1482 = vunpack.c.l.b16 %v553
        %v1483 = vunpack.c.l.b16 %v554
        %v1484 = vunpack.c.l.b16 %v555
        %v1485 = vunpack.c.l.b16 %v556
        %v1486 = vunpack.c.l.b16 %v557
        %v1487 = vunpack.c.l.b16 %v558
        %v1488 = vunpack.c.l.b16 %v559
        %v1489 = vunpack.c.l.b16 %v560
        %v1490 = vunpack.c.l.b16 %v561
        %v1491 = vpack.c.b16 %v1476, %v1475
        %v1492 = vpack.c.b16 %v1478, %v1477
        %v1493 = vpack.c.b16 %v1480, %v1479
        %v1494 = vpack.c.b16 %v1482, %v1481
        %v1495 = vpack.c.b16 %v1484, %v1483
        %v1496 = vpack.c.b16 %v1486, %v1485
        %v1497 = vpack.c.b16 %v1488, %v1487
        %v1498 = vpack.c.b16 %v1490, %v1489
        %v1500 = vsel %vm1183, %v1491, 0
        %v1503 = vsel %vm1183, %v1492, 0
        %v1506 = vsel %vm1183, %v1493, 0
        %v1509 = vsel %vm1183, %v1494, 0
        %v1512 = vsel %vm1183, %v1495, 0
        %v1515 = vsel %vm1183, %v1496, 0
        %v1518 = vsel %vm1183, %v1497, 0
        %v1521 = vsel %vm1183, %v1498, 0
        %v1524 = vsel %vm1208, %v1466, 0
        %1526 = vmatprep.subr.bf16.mxu0 0
        %1527 = vmatpush1.bf16.msra.mxu0 0
        %1528 = vmatprep.subr.bf16.mxu0 0
        %1529 = vmatpush1.bf16.msra.mxu0 0
        %1530 = vmatprep.subr.bf16.mxu0 0
        %1531 = vmatpush1.bf16.msra.mxu0 0
        %1532 = vmatprep.subr.bf16.mxu0 0
        %1533 = vmatpush1.bf16.msra.mxu0 0
        %1534 = vmatprep.subr.bf16.mxu0 0
        %1535 = vmatpush1.bf16.msra.mxu0 0
        %1536 = vmatprep.subr.bf16.mxu0 0
        %1537 = vmatpush1.bf16.msra.mxu0 0
        %1538 = vmatprep.subr.bf16.mxu0 0
        %1539 = vmatpush1.bf16.msra.mxu0 0
        %1540 = vmatprep.subr.bf16.mxu0 0
        %1541 = vmatpush1.bf16.msra.mxu0 %v1524
        %1542 = vmatprep.subr.bf16.mxu0 0
        %1543 = vmatpush2.bf16.msra.mxu0 0
        %1544 = vmatprep.subr.bf16.mxu0 0
        %1545 = vmatpush2.bf16.msra.mxu0 0
        %1546 = vmatprep.subr.bf16.mxu0 0
        %1547 = vmatpush2.bf16.msra.mxu0 0
        %1548 = vmatprep.subr.bf16.mxu0 0
        %1549 = vmatpush2.bf16.msra.mxu0 0
        %1550 = vmatprep.subr.bf16.mxu0 0
        %1551 = vmatpush2.bf16.msra.mxu0 0
        %1552 = vmatprep.subr.bf16.mxu0 0
        %1553 = vmatpush2.bf16.msra.mxu0 0
        %1554 = vmatprep.subr.bf16.mxu0 0
        %1555 = vmatpush2.bf16.msra.mxu0 0
        %1556 = vmatprep.subr.bf16.mxu0 0
        %1557 = vmatpush2.bf16.msra.mxu0 0
        %1558 = vmatprep.mubr.bf16.mxu0 0
        %1559 = vmatmul.mubr.bf16.gmra.mxu0 %v1500
        %v1560 = vpop.f32.mrf.mxu0
        %v1561 = vadd.f32 0.0, %v1560
        %v1562 = vpop.f32.mrf.mxu0
        %v1563 = vpop.f32.mrf.mxu0
        %v1564 = vadd.f32 0.0, %v1563
        %v1565 = vpop.f32.mrf.mxu0
        %1566 = vmatprep.mubr.bf16.mxu0 0
        %1567 = vmatmul.mubr.bf16.gmra.mxu0 %v1503
        %v1568 = vpop.f32.mrf.mxu0
        %v1569 = vadd.f32 0.0, %v1568
        %v1570 = vpop.f32.mrf.mxu0
        %v1571 = vpop.f32.mrf.mxu0
        %v1572 = vadd.f32 0.0, %v1571
        %v1573 = vpop.f32.mrf.mxu0
        %1574 = vmatprep.mubr.bf16.mxu0 0
        %1575 = vmatmul.mubr.bf16.gmra.mxu0 %v1506
        %v1576 = vpop.f32.mrf.mxu0
        %v1577 = vadd.f32 0.0, %v1576
        %v1578 = vpop.f32.mrf.mxu0
        %v1579 = vpop.f32.mrf.mxu0
        %v1580 = vadd.f32 0.0, %v1579
        %v1581 = vpop.f32.mrf.mxu0
        %1582 = vmatprep.mubr.bf16.mxu0 0
        %1583 = vmatmul.mubr.bf16.gmra.mxu0 %v1509
        %v1584 = vpop.f32.mrf.mxu0
        %v1585 = vadd.f32 0.0, %v1584
        %v1586 = vpop.f32.mrf.mxu0
        %v1587 = vpop.f32.mrf.mxu0
        %v1588 = vadd.f32 0.0, %v1587
        %v1589 = vpop.f32.mrf.mxu0
        %1590 = vmatprep.mubr.bf16.mxu0 0
        %1591 = vmatmul.mubr.bf16.gmra.mxu0 %v1512
        %v1592 = vpop.f32.mrf.mxu0
        %v1593 = vadd.f32 0.0, %v1592
        %v1594 = vpop.f32.mrf.mxu0
        %v1595 = vpop.f32.mrf.mxu0
        %v1596 = vadd.f32 0.0, %v1595
        %v1597 = vpop.f32.mrf.mxu0
        %1598 = vmatprep.mubr.bf16.mxu0 0
        %1599 = vmatmul.mubr.bf16.gmra.mxu0 %v1515
        %v1600 = vpop.f32.mrf.mxu0
        %v1601 = vadd.f32 0.0, %v1600
        %v1602 = vpop.f32.mrf.mxu0
        %v1603 = vpop.f32.mrf.mxu0
        %v1604 = vadd.f32 0.0, %v1603
        %v1605 = vpop.f32.mrf.mxu0
        %1606 = vmatprep.mubr.bf16.mxu0 0
        %1607 = vmatmul.mubr.bf16.gmra.mxu0 %v1518
        %v1608 = vpop.f32.mrf.mxu0
        %v1609 = vadd.f32 0.0, %v1608
        %v1610 = vpop.f32.mrf.mxu0
        %v1611 = vpop.f32.mrf.mxu0
        %v1612 = vadd.f32 0.0, %v1611
        %v1613 = vpop.f32.mrf.mxu0
        %1614 = vmatprep.mubr.bf16.mxu0 0
        %1615 = vmatmul.mubr.bf16.gmra.mxu0 %v1521
        %v1616 = vpop.f32.mrf.mxu0
        %v1617 = vadd.f32 0.0, %v1616
        %v1618 = vpop.f32.mrf.mxu0
        %v1619 = vpop.f32.mrf.mxu0
        %v1620 = vadd.f32 0.0, %v1619
        %v1621 = vpop.f32.mrf.mxu0
        %1622 = vdwg.mxu0
        %v1623 = vadd.f32 %v1403, %v1561
        %v1624 = vadd.f32 %v1406, %v1564
        %v1625 = vadd.f32 %v1411, %v1569
        %v1626 = vadd.f32 %v1414, %v1572
        %v1627 = vadd.f32 %v1419, %v1577
        %v1628 = vadd.f32 %v1422, %v1580
        %v1629 = vadd.f32 %v1427, %v1585
        %v1630 = vadd.f32 %v1430, %v1588
        %v1631 = vadd.f32 %v1435, %v1593
        %v1632 = vadd.f32 %v1438, %v1596
        %v1633 = vadd.f32 %v1443, %v1601
        %v1634 = vadd.f32 %v1446, %v1604
        %v1635 = vadd.f32 %v1451, %v1609
        %v1636 = vadd.f32 %v1454, %v1612
        %v1637 = vadd.f32 %v1459, %v1617
        %v1638 = vadd.f32 %v1462, %v1620
        %s1639 = scalar_lea.vmem %s229, 6
        %v1640 = vld [vmem:[%s1639] sm:$0x3]
        %v1641 = vunpack.c.l.b16 %v583
        %v1642 = vunpack.c.l.b16 %v593
        %v1643 = vunpack.c.l.b16 %v607
        %v1644 = vunpack.c.l.b16 %v617
        %v1645 = vunpack.c.l.b16 %v631
        %v1646 = vunpack.c.l.b16 %v641
        %v1647 = vunpack.c.l.b16 %v655
        %v1648 = vunpack.c.l.b16 %v665
        %v1649 = vunpack.c.l.b16 %v679
        %v1650 = vunpack.c.l.b16 %v689
        %v1651 = vunpack.c.l.b16 %v703
        %v1652 = vunpack.c.l.b16 %v713
        %v1653 = vunpack.c.l.b16 %v727
        %v1654 = vunpack.c.l.b16 %v737
        %v1655 = vunpack.c.l.b16 %v751
        %v1656 = vunpack.c.l.b16 %v761
        %v1657 = vpack.c.b16 %v1642, %v1641
        %v1658 = vpack.c.b16 %v1644, %v1643
        %v1659 = vpack.c.b16 %v1646, %v1645
        %v1660 = vpack.c.b16 %v1648, %v1647
        %v1661 = vpack.c.b16 %v1650, %v1649
        %v1662 = vpack.c.b16 %v1652, %v1651
        %v1663 = vpack.c.b16 %v1654, %v1653
        %v1664 = vpack.c.b16 %v1656, %v1655
        %v1666 = vsel %vm1183, %v1657, 0
        %v1669 = vsel %vm1183, %v1658, 0
        %v1672 = vsel %vm1183, %v1659, 0
        %v1675 = vsel %vm1183, %v1660, 0
        %v1678 = vsel %vm1183, %v1661, 0
        %v1681 = vsel %vm1183, %v1662, 0
        %v1684 = vsel %vm1183, %v1663, 0
        %v1687 = vsel %vm1183, %v1664, 0
        %v1690 = vsel %vm1208, %v1640, 0
        %1692 = vmatprep.subr.bf16.mxu0 0
        %1693 = vmatpush1.bf16.msra.mxu0 0
        %1694 = vmatprep.subr.bf16.mxu0 0
        %1695 = vmatpush1.bf16.msra.mxu0 0
        %1696 = vmatprep.subr.bf16.mxu0 0
        %1697 = vmatpush1.bf16.msra.mxu0 0
        %1698 = vmatprep.subr.bf16.mxu0 0
        %1699 = vmatpush1.bf16.msra.mxu0 0
        %1700 = vmatprep.subr.bf16.mxu0 0
        %1701 = vmatpush1.bf16.msra.mxu0 0
        %1702 = vmatprep.subr.bf16.mxu0 0
        %1703 = vmatpush1.bf16.msra.mxu0 0
        %1704 = vmatprep.subr.bf16.mxu0 0
        %1705 = vmatpush1.bf16.msra.mxu0 0
        %1706 = vmatprep.subr.bf16.mxu0 0
        %1707 = vmatpush1.bf16.msra.mxu0 %v1690
        %1708 = vmatprep.subr.bf16.mxu0 0
        %1709 = vmatpush2.bf16.msra.mxu0 0
        %1710 = vmatprep.subr.bf16.mxu0 0
        %1711 = vmatpush2.bf16.msra.mxu0 0
        %1712 = vmatprep.subr.bf16.mxu0 0
        %1713 = vmatpush2.bf16.msra.mxu0 0
        %1714 = vmatprep.subr.bf16.mxu0 0
        %1715 = vmatpush2.bf16.msra.mxu0 0
        %1716 = vmatprep.subr.bf16.mxu0 0
        %1717 = vmatpush2.bf16.msra.mxu0 0
        %1718 = vmatprep.subr.bf16.mxu0 0
        %1719 = vmatpush2.bf16.msra.mxu0 0
        %1720 = vmatprep.subr.bf16.mxu0 0
        %1721 = vmatpush2.bf16.msra.mxu0 0
        %1722 = vmatprep.subr.bf16.mxu0 0
        %1723 = vmatpush2.bf16.msra.mxu0 0
        %1724 = vmatprep.mubr.bf16.mxu0 0
        %1725 = vmatmul.mubr.bf16.gmra.mxu0 %v1666
        %v1726 = vpop.f32.mrf.mxu0
        %v1727 = vadd.f32 0.0, %v1726
        %v1728 = vpop.f32.mrf.mxu0
        %v1729 = vpop.f32.mrf.mxu0
        %v1730 = vadd.f32 0.0, %v1729
        %v1731 = vpop.f32.mrf.mxu0
        %1732 = vmatprep.mubr.bf16.mxu0 0
        %1733 = vmatmul.mubr.bf16.gmra.mxu0 %v1669
        %v1734 = vpop.f32.mrf.mxu0
        %v1735 = vadd.f32 0.0, %v1734
        %v1736 = vpop.f32.mrf.mxu0
        %v1737 = vpop.f32.mrf.mxu0
        %v1738 = vadd.f32 0.0, %v1737
        %v1739 = vpop.f32.mrf.mxu0
        %1740 = vmatprep.mubr.bf16.mxu0 0
        %1741 = vmatmul.mubr.bf16.gmra.mxu0 %v1672
        %v1742 = vpop.f32.mrf.mxu0
        %v1743 = vadd.f32 0.0, %v1742
        %v1744 = vpop.f32.mrf.mxu0
        %v1745 = vpop.f32.mrf.mxu0
        %v1746 = vadd.f32 0.0, %v1745
        %v1747 = vpop.f32.mrf.mxu0
        %1748 = vmatprep.mubr.bf16.mxu0 0
        %1749 = vmatmul.mubr.bf16.gmra.mxu0 %v1675
        %v1750 = vpop.f32.mrf.mxu0
        %v1751 = vadd.f32 0.0, %v1750
        %v1752 = vpop.f32.mrf.mxu0
        %v1753 = vpop.f32.mrf.mxu0
        %v1754 = vadd.f32 0.0, %v1753
        %v1755 = vpop.f32.mrf.mxu0
        %1756 = vmatprep.mubr.bf16.mxu0 0
        %1757 = vmatmul.mubr.bf16.gmra.mxu0 %v1678
        %v1758 = vpop.f32.mrf.mxu0
        %v1759 = vadd.f32 0.0, %v1758
        %v1760 = vpop.f32.mrf.mxu0
        %v1761 = vpop.f32.mrf.mxu0
        %v1762 = vadd.f32 0.0, %v1761
        %v1763 = vpop.f32.mrf.mxu0
        %1764 = vmatprep.mubr.bf16.mxu0 0
        %1765 = vmatmul.mubr.bf16.gmra.mxu0 %v1681
        %v1766 = vpop.f32.mrf.mxu0
        %v1767 = vadd.f32 0.0, %v1766
        %v1768 = vpop.f32.mrf.mxu0
        %v1769 = vpop.f32.mrf.mxu0
        %v1770 = vadd.f32 0.0, %v1769
        %v1771 = vpop.f32.mrf.mxu0
        %1772 = vmatprep.mubr.bf16.mxu0 0
        %1773 = vmatmul.mubr.bf16.gmra.mxu0 %v1684
        %v1774 = vpop.f32.mrf.mxu0
        %v1775 = vadd.f32 0.0, %v1774
        %v1776 = vpop.f32.mrf.mxu0
        %v1777 = vpop.f32.mrf.mxu0
        %v1778 = vadd.f32 0.0, %v1777
        %v1779 = vpop.f32.mrf.mxu0
        %1780 = vmatprep.mubr.bf16.mxu0 0
        %1781 = vmatmul.mubr.bf16.gmra.mxu0 %v1687
        %v1782 = vpop.f32.mrf.mxu0
        %v1783 = vadd.f32 0.0, %v1782
        %v1784 = vpop.f32.mrf.mxu0
        %v1785 = vpop.f32.mrf.mxu0
        %v1786 = vadd.f32 0.0, %v1785
        %v1787 = vpop.f32.mrf.mxu0
        %1788 = vdwg.mxu0
        %v1789 = vadd.f32 %v1623, %v1727
        %v1790 = vadd.f32 %v1624, %v1730
        %v1791 = vadd.f32 %v1625, %v1735
        %v1792 = vadd.f32 %v1626, %v1738
        %v1793 = vadd.f32 %v1627, %v1743
        %v1794 = vadd.f32 %v1628, %v1746
        %v1795 = vadd.f32 %v1629, %v1751
        %v1796 = vadd.f32 %v1630, %v1754
        %v1797 = vadd.f32 %v1631, %v1759
        %v1798 = vadd.f32 %v1632, %v1762
        %v1799 = vadd.f32 %v1633, %v1767
        %v1800 = vadd.f32 %v1634, %v1770
        %v1801 = vadd.f32 %v1635, %v1775
        %v1802 = vadd.f32 %v1636, %v1778
        %v1803 = vadd.f32 %v1637, %v1783
        %v1804 = vadd.f32 %v1638, %v1786
        %v1806 = vlaneseq
        %v1807 = vshrl.u32 %v1806, 7
        %v1808 = vsub.s32 0, %v1807
        %v1809 = vrot.slane %v1155, %v1808
        %v1811 = vadd.f32 %v1789, %v1809
        %v1812 = vadd.f32 %v1790, %v1809
        %v1813 = vadd.f32 %v1791, %v1809
        %v1814 = vadd.f32 %v1792, %v1809
        %v1815 = vadd.f32 %v1793, %v1809
        %v1816 = vadd.f32 %v1794, %v1809
        %v1817 = vadd.f32 %v1795, %v1809
        %v1818 = vadd.f32 %v1796, %v1809
        %v1819 = vadd.f32 %v1797, %v1809
        %v1820 = vadd.f32 %v1798, %v1809
        %v1821 = vadd.f32 %v1799, %v1809
        %v1822 = vadd.f32 %v1800, %v1809
        %v1823 = vadd.f32 %v1801, %v1809
        %v1824 = vadd.f32 %v1802, %v1809
        %v1825 = vadd.f32 %v1803, %v1809
        %v1826 = vadd.f32 %v1804, %v1809
        %1827 = vst.msk [vmem:[%s216] sm:$0xff] %vm1183, %v1811
        %1828 = vst.msk [vmem:[%s216 + $0x8] sm:$0xff] %vm1183, %v1812
        %1829 = vst.msk [vmem:[%s216 + $0x10] sm:$0xff] %vm1183, %v1813
        %1830 = vst.msk [vmem:[%s216 + $0x18] sm:$0xff] %vm1183, %v1814
        %1831 = vst.msk [vmem:[%s216 + $0x20] sm:$0xff] %vm1183, %v1815
        %1832 = vst.msk [vmem:[%s216 + $0x28] sm:$0xff] %vm1183, %v1816
        %1833 = vst.msk [vmem:[%s216 + $0x30] sm:$0xff] %vm1183, %v1817
        %1834 = vst.msk [vmem:[%s216 + $0x38] sm:$0xff] %vm1183, %v1818
        %1835 = vst.msk [vmem:[%s216 + $0x40] sm:$0xff] %vm1183, %v1819
        %1836 = vst.msk [vmem:[%s216 + $0x48] sm:$0xff] %vm1183, %v1820
        %1837 = vst.msk [vmem:[%s216 + $0x50] sm:$0xff] %vm1183, %v1821
        %1838 = vst.msk [vmem:[%s216 + $0x58] sm:$0xff] %vm1183, %v1822
        %1839 = vst.msk [vmem:[%s216 + $0x60] sm:$0xff] %vm1183, %v1823
        %1840 = vst.msk [vmem:[%s216 + $0x68] sm:$0xff] %vm1183, %v1824
        %1841 = vst.msk [vmem:[%s216 + $0x70] sm:$0xff] %vm1183, %v1825
        %1842 = vst.msk [vmem:[%s216 + $0x78] sm:$0xff] %vm1183, %v1826
        %s1843 = scalar_lea.vmem %s229, 8
        %v1844 = vld [vmem:[%s1843] sm:$0x3]
        %s1845 = scalar_lea.vmem %s229, 10
        %v1846 = vld [vmem:[%s1845] sm:$0x3]
        %v1847 = vunpack.c.l.b16 %v492
        %v1848 = vunpack.c.l.b16 %v495
        %v1849 = vunpack.c.l.b16 %v499
        %v1850 = vunpack.c.l.b16 %v502
        %v1851 = vunpack.c.l.b16 %v506
        %v1852 = vunpack.c.l.b16 %v509
        %v1853 = vunpack.c.l.b16 %v513
        %v1854 = vunpack.c.l.b16 %v516
        %v1855 = vunpack.c.l.b16 %v520
        %v1856 = vunpack.c.l.b16 %v523
        %v1857 = vunpack.c.l.b16 %v527
        %v1858 = vunpack.c.l.b16 %v530
        %v1859 = vunpack.c.l.b16 %v534
        %v1860 = vunpack.c.l.b16 %v537
        %v1861 = vunpack.c.l.b16 %v541
        %v1862 = vunpack.c.l.b16 %v544
        %v1863 = vpack.c.b16 %v1848, %v1847
        %v1864 = vpack.c.b16 %v1850, %v1849
        %v1865 = vpack.c.b16 %v1852, %v1851
        %v1866 = vpack.c.b16 %v1854, %v1853
        %v1867 = vpack.c.b16 %v1856, %v1855
        %v1868 = vpack.c.b16 %v1858, %v1857
        %v1869 = vpack.c.b16 %v1860, %v1859
        %v1870 = vpack.c.b16 %v1862, %v1861
        %v1872 = vsel %vm1183, %v1863, 0
        %v1875 = vsel %vm1183, %v1864, 0
        %v1878 = vsel %vm1183, %v1865, 0
        %v1881 = vsel %vm1183, %v1866, 0
        %v1884 = vsel %vm1183, %v1867, 0
        %v1887 = vsel %vm1183, %v1868, 0
        %v1890 = vsel %vm1183, %v1869, 0
        %v1893 = vsel %vm1183, %v1870, 0
        %v1896 = vsel %vm1208, %v1846, 0
        %1898 = vmatprep.subr.bf16.mxu0 0
        %1899 = vmatpush1.bf16.msra.mxu0 0
        %1900 = vmatprep.subr.bf16.mxu0 0
        %1901 = vmatpush1.bf16.msra.mxu0 0
        %1902 = vmatprep.subr.bf16.mxu0 0
        %1903 = vmatpush1.bf16.msra.mxu0 0
        %1904 = vmatprep.subr.bf16.mxu0 0
        %1905 = vmatpush1.bf16.msra.mxu0 0
        %1906 = vmatprep.subr.bf16.mxu0 0
        %1907 = vmatpush1.bf16.msra.mxu0 0
        %1908 = vmatprep.subr.bf16.mxu0 0
        %1909 = vmatpush1.bf16.msra.mxu0 0
        %1910 = vmatprep.subr.bf16.mxu0 0
        %1911 = vmatpush1.bf16.msra.mxu0 0
        %1912 = vmatprep.subr.bf16.mxu0 0
        %1913 = vmatpush1.bf16.msra.mxu0 %v1896
        %1914 = vmatprep.subr.bf16.mxu0 0
        %1915 = vmatpush2.bf16.msra.mxu0 0
        %1916 = vmatprep.subr.bf16.mxu0 0
        %1917 = vmatpush2.bf16.msra.mxu0 0
        %1918 = vmatprep.subr.bf16.mxu0 0
        %1919 = vmatpush2.bf16.msra.mxu0 0
        %1920 = vmatprep.subr.bf16.mxu0 0
        %1921 = vmatpush2.bf16.msra.mxu0 0
        %1922 = vmatprep.subr.bf16.mxu0 0
        %1923 = vmatpush2.bf16.msra.mxu0 0
        %1924 = vmatprep.subr.bf16.mxu0 0
        %1925 = vmatpush2.bf16.msra.mxu0 0
        %1926 = vmatprep.subr.bf16.mxu0 0
        %1927 = vmatpush2.bf16.msra.mxu0 0
        %1928 = vmatprep.subr.bf16.mxu0 0
        %1929 = vmatpush2.bf16.msra.mxu0 0
        %1930 = vmatprep.mubr.bf16.mxu0 0
        %1931 = vmatmul.mubr.bf16.gmra.mxu0 %v1872
        %v1932 = vpop.f32.mrf.mxu0
        %v1933 = vadd.f32 0.0, %v1932
        %v1934 = vpop.f32.mrf.mxu0
        %v1935 = vpop.f32.mrf.mxu0
        %v1936 = vadd.f32 0.0, %v1935
        %v1937 = vpop.f32.mrf.mxu0
        %1938 = vmatprep.mubr.bf16.mxu0 0
        %1939 = vmatmul.mubr.bf16.gmra.mxu0 %v1875
        %v1940 = vpop.f32.mrf.mxu0
        %v1941 = vadd.f32 0.0, %v1940
        %v1942 = vpop.f32.mrf.mxu0
        %v1943 = vpop.f32.mrf.mxu0
        %v1944 = vadd.f32 0.0, %v1943
        %v1945 = vpop.f32.mrf.mxu0
        %1946 = vmatprep.mubr.bf16.mxu0 0
        %1947 = vmatmul.mubr.bf16.gmra.mxu0 %v1878
        %v1948 = vpop.f32.mrf.mxu0
        %v1949 = vadd.f32 0.0, %v1948
        %v1950 = vpop.f32.mrf.mxu0
        %v1951 = vpop.f32.mrf.mxu0
        %v1952 = vadd.f32 0.0, %v1951
        %v1953 = vpop.f32.mrf.mxu0
        %1954 = vmatprep.mubr.bf16.mxu0 0
        %1955 = vmatmul.mubr.bf16.gmra.mxu0 %v1881
        %v1956 = vpop.f32.mrf.mxu0
        %v1957 = vadd.f32 0.0, %v1956
        %v1958 = vpop.f32.mrf.mxu0
        %v1959 = vpop.f32.mrf.mxu0
        %v1960 = vadd.f32 0.0, %v1959
        %v1961 = vpop.f32.mrf.mxu0
        %1962 = vmatprep.mubr.bf16.mxu0 0
        %1963 = vmatmul.mubr.bf16.gmra.mxu0 %v1884
        %v1964 = vpop.f32.mrf.mxu0
        %v1965 = vadd.f32 0.0, %v1964
        %v1966 = vpop.f32.mrf.mxu0
        %v1967 = vpop.f32.mrf.mxu0
        %v1968 = vadd.f32 0.0, %v1967
        %v1969 = vpop.f32.mrf.mxu0
        %1970 = vmatprep.mubr.bf16.mxu0 0
        %1971 = vmatmul.mubr.bf16.gmra.mxu0 %v1887
        %v1972 = vpop.f32.mrf.mxu0
        %v1973 = vadd.f32 0.0, %v1972
        %v1974 = vpop.f32.mrf.mxu0
        %v1975 = vpop.f32.mrf.mxu0
        %v1976 = vadd.f32 0.0, %v1975
        %v1977 = vpop.f32.mrf.mxu0
        %1978 = vmatprep.mubr.bf16.mxu0 0
        %1979 = vmatmul.mubr.bf16.gmra.mxu0 %v1890
        %v1980 = vpop.f32.mrf.mxu0
        %v1981 = vadd.f32 0.0, %v1980
        %v1982 = vpop.f32.mrf.mxu0
        %v1983 = vpop.f32.mrf.mxu0
        %v1984 = vadd.f32 0.0, %v1983
        %v1985 = vpop.f32.mrf.mxu0
        %1986 = vmatprep.mubr.bf16.mxu0 0
        %1987 = vmatmul.mubr.bf16.gmra.mxu0 %v1893
        %v1988 = vpop.f32.mrf.mxu0
        %v1989 = vadd.f32 0.0, %v1988
        %v1990 = vpop.f32.mrf.mxu0
        %v1991 = vpop.f32.mrf.mxu0
        %v1992 = vadd.f32 0.0, %v1991
        %v1993 = vpop.f32.mrf.mxu0
        %1994 = vdwg.mxu0
        %v1996 = vsel %vm1208, %v1844, 0
        %1998 = vmatprep.subr.bf16.mxu0 0
        %1999 = vmatpush1.bf16.msra.mxu0 0
        %2000 = vmatprep.subr.bf16.mxu0 0
        %2001 = vmatpush1.bf16.msra.mxu0 0
        %2002 = vmatprep.subr.bf16.mxu0 0
        %2003 = vmatpush1.bf16.msra.mxu0 0
        %2004 = vmatprep.subr.bf16.mxu0 0
        %2005 = vmatpush1.bf16.msra.mxu0 0
        %2006 = vmatprep.subr.bf16.mxu0 0
        %2007 = vmatpush1.bf16.msra.mxu0 0
        %2008 = vmatprep.subr.bf16.mxu0 0
        %2009 = vmatpush1.bf16.msra.mxu0 0
        %2010 = vmatprep.subr.bf16.mxu0 0
        %2011 = vmatpush1.bf16.msra.mxu0 0
        %2012 = vmatprep.subr.bf16.mxu0 0
        %2013 = vmatpush1.bf16.msra.mxu0 %v1996
        %2014 = vmatprep.subr.bf16.mxu0 0
        %2015 = vmatpush2.bf16.msra.mxu0 0
        %2016 = vmatprep.subr.bf16.mxu0 0
        %2017 = vmatpush2.bf16.msra.mxu0 0
        %2018 = vmatprep.subr.bf16.mxu0 0
        %2019 = vmatpush2.bf16.msra.mxu0 0
        %2020 = vmatprep.subr.bf16.mxu0 0
        %2021 = vmatpush2.bf16.msra.mxu0 0
        %2022 = vmatprep.subr.bf16.mxu0 0
        %2023 = vmatpush2.bf16.msra.mxu0 0
        %2024 = vmatprep.subr.bf16.mxu0 0
        %2025 = vmatpush2.bf16.msra.mxu0 0
        %2026 = vmatprep.subr.bf16.mxu0 0
        %2027 = vmatpush2.bf16.msra.mxu0 0
        %2028 = vmatprep.subr.bf16.mxu0 0
        %2029 = vmatpush2.bf16.msra.mxu0 0
        %2030 = vmatprep.mubr.bf16.mxu0 0
        %2031 = vmatmul.mubr.bf16.gmra.mxu0 %v1185
        %v2032 = vpop.f32.mrf.mxu0
        %v2033 = vadd.f32 %v1933, %v2032
        %v2034 = vpop.f32.mrf.mxu0
        %v2035 = vpop.f32.mrf.mxu0
        %v2036 = vadd.f32 %v1936, %v2035
        %v2037 = vpop.f32.mrf.mxu0
        %2038 = vmatprep.mubr.bf16.mxu0 0
        %2039 = vmatmul.mubr.bf16.gmra.mxu0 %v1188
        %v2040 = vpop.f32.mrf.mxu0
        %v2041 = vadd.f32 %v1941, %v2040
        %v2042 = vpop.f32.mrf.mxu0
        %v2043 = vpop.f32.mrf.mxu0
        %v2044 = vadd.f32 %v1944, %v2043
        %v2045 = vpop.f32.mrf.mxu0
        %2046 = vmatprep.mubr.bf16.mxu0 0
        %2047 = vmatmul.mubr.bf16.gmra.mxu0 %v1191
        %v2048 = vpop.f32.mrf.mxu0
        %v2049 = vadd.f32 %v1949, %v2048
        %v2050 = vpop.f32.mrf.mxu0
        %v2051 = vpop.f32.mrf.mxu0
        %v2052 = vadd.f32 %v1952, %v2051
        %v2053 = vpop.f32.mrf.mxu0
        %2054 = vmatprep.mubr.bf16.mxu0 0
        %2055 = vmatmul.mubr.bf16.gmra.mxu0 %v1194
        %v2056 = vpop.f32.mrf.mxu0
        %v2057 = vadd.f32 %v1957, %v2056
        %v2058 = vpop.f32.mrf.mxu0
        %v2059 = vpop.f32.mrf.mxu0
        %v2060 = vadd.f32 %v1960, %v2059
        %v2061 = vpop.f32.mrf.mxu0
        %2062 = vmatprep.mubr.bf16.mxu0 0
        %2063 = vmatmul.mubr.bf16.gmra.mxu0 %v1197
        %v2064 = vpop.f32.mrf.mxu0
        %v2065 = vadd.f32 %v1965, %v2064
        %v2066 = vpop.f32.mrf.mxu0
        %v2067 = vpop.f32.mrf.mxu0
        %v2068 = vadd.f32 %v1968, %v2067
        %v2069 = vpop.f32.mrf.mxu0
        %2070 = vmatprep.mubr.bf16.mxu0 0
        %2071 = vmatmul.mubr.bf16.gmra.mxu0 %v1200
        %v2072 = vpop.f32.mrf.mxu0
        %v2073 = vadd.f32 %v1973, %v2072
        %v2074 = vpop.f32.mrf.mxu0
        %v2075 = vpop.f32.mrf.mxu0
        %v2076 = vadd.f32 %v1976, %v2075
        %v2077 = vpop.f32.mrf.mxu0
        %2078 = vmatprep.mubr.bf16.mxu0 0
        %2079 = vmatmul.mubr.bf16.gmra.mxu0 %v1203
        %v2080 = vpop.f32.mrf.mxu0
        %v2081 = vadd.f32 %v1981, %v2080
        %v2082 = vpop.f32.mrf.mxu0
        %v2083 = vpop.f32.mrf.mxu0
        %v2084 = vadd.f32 %v1984, %v2083
        %v2085 = vpop.f32.mrf.mxu0
        %2086 = vmatprep.mubr.bf16.mxu0 0
        %2087 = vmatmul.mubr.bf16.gmra.mxu0 %v1206
        %v2088 = vpop.f32.mrf.mxu0
        %v2089 = vadd.f32 %v1989, %v2088
        %v2090 = vpop.f32.mrf.mxu0
        %v2091 = vpop.f32.mrf.mxu0
        %v2092 = vadd.f32 %v1992, %v2091
        %v2093 = vpop.f32.mrf.mxu0
        %2094 = vdwg.mxu0
        %s2095 = scalar_lea.vmem %s229, 12
        %v2096 = vld [vmem:[%s2095] sm:$0x3]
        %v2098 = vsel %vm1208, %v2096, 0
        %2100 = vmatprep.subr.bf16.mxu0 0
        %2101 = vmatpush1.bf16.msra.mxu0 0
        %2102 = vmatprep.subr.bf16.mxu0 0
        %2103 = vmatpush1.bf16.msra.mxu0 0
        %2104 = vmatprep.subr.bf16.mxu0 0
        %2105 = vmatpush1.bf16.msra.mxu0 0
        %2106 = vmatprep.subr.bf16.mxu0 0
        %2107 = vmatpush1.bf16.msra.mxu0 0
        %2108 = vmatprep.subr.bf16.mxu0 0
        %2109 = vmatpush1.bf16.msra.mxu0 0
        %2110 = vmatprep.subr.bf16.mxu0 0
        %2111 = vmatpush1.bf16.msra.mxu0 0
        %2112 = vmatprep.subr.bf16.mxu0 0
        %2113 = vmatpush1.bf16.msra.mxu0 0
        %2114 = vmatprep.subr.bf16.mxu0 0
        %2115 = vmatpush1.bf16.msra.mxu0 %v2098
        %2116 = vmatprep.subr.bf16.mxu0 0
        %2117 = vmatpush2.bf16.msra.mxu0 0
        %2118 = vmatprep.subr.bf16.mxu0 0
        %2119 = vmatpush2.bf16.msra.mxu0 0
        %2120 = vmatprep.subr.bf16.mxu0 0
        %2121 = vmatpush2.bf16.msra.mxu0 0
        %2122 = vmatprep.subr.bf16.mxu0 0
        %2123 = vmatpush2.bf16.msra.mxu0 0
        %2124 = vmatprep.subr.bf16.mxu0 0
        %2125 = vmatpush2.bf16.msra.mxu0 0
        %2126 = vmatprep.subr.bf16.mxu0 0
        %2127 = vmatpush2.bf16.msra.mxu0 0
        %2128 = vmatprep.subr.bf16.mxu0 0
        %2129 = vmatpush2.bf16.msra.mxu0 0
        %2130 = vmatprep.subr.bf16.mxu0 0
        %2131 = vmatpush2.bf16.msra.mxu0 0
        %2132 = vmatprep.mubr.bf16.mxu0 0
        %2133 = vmatmul.mubr.bf16.gmra.mxu0 %v1666
        %v2134 = vpop.f32.mrf.mxu0
        %v2135 = vadd.f32 0.0, %v2134
        %v2136 = vpop.f32.mrf.mxu0
        %v2137 = vpop.f32.mrf.mxu0
        %v2138 = vadd.f32 0.0, %v2137
        %v2139 = vpop.f32.mrf.mxu0
        %2140 = vmatprep.mubr.bf16.mxu0 0
        %2141 = vmatmul.mubr.bf16.gmra.mxu0 %v1669
        %v2142 = vpop.f32.mrf.mxu0
        %v2143 = vadd.f32 0.0, %v2142
        %v2144 = vpop.f32.mrf.mxu0
        %v2145 = vpop.f32.mrf.mxu0
        %v2146 = vadd.f32 0.0, %v2145
        %v2147 = vpop.f32.mrf.mxu0
        %2148 = vmatprep.mubr.bf16.mxu0 0
        %2149 = vmatmul.mubr.bf16.gmra.mxu0 %v1672
        %v2150 = vpop.f32.mrf.mxu0
        %v2151 = vadd.f32 0.0, %v2150
        %v2152 = vpop.f32.mrf.mxu0
        %v2153 = vpop.f32.mrf.mxu0
        %v2154 = vadd.f32 0.0, %v2153
        %v2155 = vpop.f32.mrf.mxu0
        %2156 = vmatprep.mubr.bf16.mxu0 0
        %2157 = vmatmul.mubr.bf16.gmra.mxu0 %v1675
        %v2158 = vpop.f32.mrf.mxu0
        %v2159 = vadd.f32 0.0, %v2158
        %v2160 = vpop.f32.mrf.mxu0
        %v2161 = vpop.f32.mrf.mxu0
        %v2162 = vadd.f32 0.0, %v2161
        %v2163 = vpop.f32.mrf.mxu0
        %2164 = vmatprep.mubr.bf16.mxu0 0
        %2165 = vmatmul.mubr.bf16.gmra.mxu0 %v1678
        %v2166 = vpop.f32.mrf.mxu0
        %v2167 = vadd.f32 0.0, %v2166
        %v2168 = vpop.f32.mrf.mxu0
        %v2169 = vpop.f32.mrf.mxu0
        %v2170 = vadd.f32 0.0, %v2169
        %v2171 = vpop.f32.mrf.mxu0
        %2172 = vmatprep.mubr.bf16.mxu0 0
        %2173 = vmatmul.mubr.bf16.gmra.mxu0 %v1681
        %v2174 = vpop.f32.mrf.mxu0
        %v2175 = vadd.f32 0.0, %v2174
        %v2176 = vpop.f32.mrf.mxu0
        %v2177 = vpop.f32.mrf.mxu0
        %v2178 = vadd.f32 0.0, %v2177
        %v2179 = vpop.f32.mrf.mxu0
        %2180 = vmatprep.mubr.bf16.mxu0 0
        %2181 = vmatmul.mubr.bf16.gmra.mxu0 %v1684
        %v2182 = vpop.f32.mrf.mxu0
        %v2183 = vadd.f32 0.0, %v2182
        %v2184 = vpop.f32.mrf.mxu0
        %v2185 = vpop.f32.mrf.mxu0
        %v2186 = vadd.f32 0.0, %v2185
        %v2187 = vpop.f32.mrf.mxu0
        %2188 = vmatprep.mubr.bf16.mxu0 0
        %2189 = vmatmul.mubr.bf16.gmra.mxu0 %v1687
        %v2190 = vpop.f32.mrf.mxu0
        %v2191 = vadd.f32 0.0, %v2190
        %v2192 = vpop.f32.mrf.mxu0
        %v2193 = vpop.f32.mrf.mxu0
        %v2194 = vadd.f32 0.0, %v2193
        %v2195 = vpop.f32.mrf.mxu0
        %2196 = vdwg.mxu0
        %v2197 = vadd.f32 %v2033, %v2135
        %v2198 = vadd.f32 %v2036, %v2138
        %v2199 = vadd.f32 %v2041, %v2143
        %v2200 = vadd.f32 %v2044, %v2146
        %v2201 = vadd.f32 %v2049, %v2151
        %v2202 = vadd.f32 %v2052, %v2154
        %v2203 = vadd.f32 %v2057, %v2159
        %v2204 = vadd.f32 %v2060, %v2162
        %v2205 = vadd.f32 %v2065, %v2167
        %v2206 = vadd.f32 %v2068, %v2170
        %v2207 = vadd.f32 %v2073, %v2175
        %v2208 = vadd.f32 %v2076, %v2178
        %v2209 = vadd.f32 %v2081, %v2183
        %v2210 = vadd.f32 %v2084, %v2186
        %v2211 = vadd.f32 %v2089, %v2191
        %v2212 = vadd.f32 %v2092, %v2194
        %s2213 = scalar_lea.vmem %s229, 14
        %v2214 = vld [vmem:[%s2213] sm:$0x3]
        %v2215 = vunpack.c.l.b16 %v797
        %v2216 = vunpack.c.l.b16 %v800
        %v2217 = vunpack.c.l.b16 %v804
        %v2218 = vunpack.c.l.b16 %v807
        %v2219 = vunpack.c.l.b16 %v811
        %v2220 = vunpack.c.l.b16 %v814
        %v2221 = vunpack.c.l.b16 %v818
        %v2222 = vunpack.c.l.b16 %v821
        %v2223 = vunpack.c.l.b16 %v825
        %v2224 = vunpack.c.l.b16 %v828
        %v2225 = vunpack.c.l.b16 %v832
        %v2226 = vunpack.c.l.b16 %v835
        %v2227 = vunpack.c.l.b16 %v839
        %v2228 = vunpack.c.l.b16 %v842
        %v2229 = vunpack.c.l.b16 %v846
        %v2230 = vunpack.c.l.b16 %v849
        %v2231 = vpack.c.b16 %v2216, %v2215
        %v2232 = vpack.c.b16 %v2218, %v2217
        %v2233 = vpack.c.b16 %v2220, %v2219
        %v2234 = vpack.c.b16 %v2222, %v2221
        %v2235 = vpack.c.b16 %v2224, %v2223
        %v2236 = vpack.c.b16 %v2226, %v2225
        %v2237 = vpack.c.b16 %v2228, %v2227
        %v2238 = vpack.c.b16 %v2230, %v2229
        %v2240 = vsel %vm1183, %v2231, 0
        %v2243 = vsel %vm1183, %v2232, 0
        %v2246 = vsel %vm1183, %v2233, 0
        %v2249 = vsel %vm1183, %v2234, 0
        %v2252 = vsel %vm1183, %v2235, 0
        %v2255 = vsel %vm1183, %v2236, 0
        %v2258 = vsel %vm1183, %v2237, 0
        %v2261 = vsel %vm1183, %v2238, 0
        %v2264 = vsel %vm1208, %v2214, 0
        %2266 = vmatprep.subr.bf16.mxu0 0
        %2267 = vmatpush1.bf16.msra.mxu0 0
        %2268 = vmatprep.subr.bf16.mxu0 0
        %2269 = vmatpush1.bf16.msra.mxu0 0
        %2270 = vmatprep.subr.bf16.mxu0 0
        %2271 = vmatpush1.bf16.msra.mxu0 0
        %2272 = vmatprep.subr.bf16.mxu0 0
        %2273 = vmatpush1.bf16.msra.mxu0 0
        %2274 = vmatprep.subr.bf16.mxu0 0
        %2275 = vmatpush1.bf16.msra.mxu0 0
        %2276 = vmatprep.subr.bf16.mxu0 0
        %2277 = vmatpush1.bf16.msra.mxu0 0
        %2278 = vmatprep.subr.bf16.mxu0 0
        %2279 = vmatpush1.bf16.msra.mxu0 0
        %2280 = vmatprep.subr.bf16.mxu0 0
        %2281 = vmatpush1.bf16.msra.mxu0 %v2264
        %2282 = vmatprep.subr.bf16.mxu0 0
        %2283 = vmatpush2.bf16.msra.mxu0 0
        %2284 = vmatprep.subr.bf16.mxu0 0
        %2285 = vmatpush2.bf16.msra.mxu0 0
        %2286 = vmatprep.subr.bf16.mxu0 0
        %2287 = vmatpush2.bf16.msra.mxu0 0
        %2288 = vmatprep.subr.bf16.mxu0 0
        %2289 = vmatpush2.bf16.msra.mxu0 0
        %2290 = vmatprep.subr.bf16.mxu0 0
        %2291 = vmatpush2.bf16.msra.mxu0 0
        %2292 = vmatprep.subr.bf16.mxu0 0
        %2293 = vmatpush2.bf16.msra.mxu0 0
        %2294 = vmatprep.subr.bf16.mxu0 0
        %2295 = vmatpush2.bf16.msra.mxu0 0
        %2296 = vmatprep.subr.bf16.mxu0 0
        %2297 = vmatpush2.bf16.msra.mxu0 0
        %2298 = vmatprep.mubr.bf16.mxu0 0
        %2299 = vmatmul.mubr.bf16.gmra.mxu0 %v2240
        %v2300 = vpop.f32.mrf.mxu0
        %v2301 = vadd.f32 0.0, %v2300
        %v2302 = vpop.f32.mrf.mxu0
        %v2303 = vpop.f32.mrf.mxu0
        %v2304 = vadd.f32 0.0, %v2303
        %v2305 = vpop.f32.mrf.mxu0
        %2306 = vmatprep.mubr.bf16.mxu0 0
        %2307 = vmatmul.mubr.bf16.gmra.mxu0 %v2243
        %v2308 = vpop.f32.mrf.mxu0
        %v2309 = vadd.f32 0.0, %v2308
        %v2310 = vpop.f32.mrf.mxu0
        %v2311 = vpop.f32.mrf.mxu0
        %v2312 = vadd.f32 0.0, %v2311
        %v2313 = vpop.f32.mrf.mxu0
        %2314 = vmatprep.mubr.bf16.mxu0 0
        %2315 = vmatmul.mubr.bf16.gmra.mxu0 %v2246
        %v2316 = vpop.f32.mrf.mxu0
        %v2317 = vadd.f32 0.0, %v2316
        %v2318 = vpop.f32.mrf.mxu0
        %v2319 = vpop.f32.mrf.mxu0
        %v2320 = vadd.f32 0.0, %v2319
        %v2321 = vpop.f32.mrf.mxu0
        %2322 = vmatprep.mubr.bf16.mxu0 0
        %2323 = vmatmul.mubr.bf16.gmra.mxu0 %v2249
        %v2324 = vpop.f32.mrf.mxu0
        %v2325 = vadd.f32 0.0, %v2324
        %v2326 = vpop.f32.mrf.mxu0
        %v2327 = vpop.f32.mrf.mxu0
        %v2328 = vadd.f32 0.0, %v2327
        %v2329 = vpop.f32.mrf.mxu0
        %2330 = vmatprep.mubr.bf16.mxu0 0
        %2331 = vmatmul.mubr.bf16.gmra.mxu0 %v2252
        %v2332 = vpop.f32.mrf.mxu0
        %v2333 = vadd.f32 0.0, %v2332
        %v2334 = vpop.f32.mrf.mxu0
        %v2335 = vpop.f32.mrf.mxu0
        %v2336 = vadd.f32 0.0, %v2335
        %v2337 = vpop.f32.mrf.mxu0
        %2338 = vmatprep.mubr.bf16.mxu0 0
        %2339 = vmatmul.mubr.bf16.gmra.mxu0 %v2255
        %v2340 = vpop.f32.mrf.mxu0
        %v2341 = vadd.f32 0.0, %v2340
        %v2342 = vpop.f32.mrf.mxu0
        %v2343 = vpop.f32.mrf.mxu0
        %v2344 = vadd.f32 0.0, %v2343
        %v2345 = vpop.f32.mrf.mxu0
        %2346 = vmatprep.mubr.bf16.mxu0 0
        %2347 = vmatmul.mubr.bf16.gmra.mxu0 %v2258
        %v2348 = vpop.f32.mrf.mxu0
        %v2349 = vadd.f32 0.0, %v2348
        %v2350 = vpop.f32.mrf.mxu0
        %v2351 = vpop.f32.mrf.mxu0
        %v2352 = vadd.f32 0.0, %v2351
        %v2353 = vpop.f32.mrf.mxu0
        %2354 = vmatprep.mubr.bf16.mxu0 0
        %2355 = vmatmul.mubr.bf16.gmra.mxu0 %v2261
        %v2356 = vpop.f32.mrf.mxu0
        %v2357 = vadd.f32 0.0, %v2356
        %v2358 = vpop.f32.mrf.mxu0
        %v2359 = vpop.f32.mrf.mxu0
        %v2360 = vadd.f32 0.0, %v2359
        %v2361 = vpop.f32.mrf.mxu0
        %2362 = vdwg.mxu0
        %v2363 = vadd.f32 %v2197, %v2301
        %v2364 = vadd.f32 %v2198, %v2304
        %v2365 = vadd.f32 %v2199, %v2309
        %v2366 = vadd.f32 %v2200, %v2312
        %v2367 = vadd.f32 %v2201, %v2317
        %v2368 = vadd.f32 %v2202, %v2320
        %v2369 = vadd.f32 %v2203, %v2325
        %v2370 = vadd.f32 %v2204, %v2328
        %v2371 = vadd.f32 %v2205, %v2333
        %v2372 = vadd.f32 %v2206, %v2336
        %v2373 = vadd.f32 %v2207, %v2341
        %v2374 = vadd.f32 %v2208, %v2344
        %v2375 = vadd.f32 %v2209, %v2349
        %v2376 = vadd.f32 %v2210, %v2352
        %v2377 = vadd.f32 %v2211, %v2357
        %v2378 = vadd.f32 %v2212, %v2360
        %v2379 = vadd.f32 %v2363, %v1809
        %v2380 = vadd.f32 %v2364, %v1809
        %v2381 = vadd.f32 %v2365, %v1809
        %v2382 = vadd.f32 %v2366, %v1809
        %v2383 = vadd.f32 %v2367, %v1809
        %v2384 = vadd.f32 %v2368, %v1809
        %v2385 = vadd.f32 %v2369, %v1809
        %v2386 = vadd.f32 %v2370, %v1809
        %v2387 = vadd.f32 %v2371, %v1809
        %v2388 = vadd.f32 %v2372, %v1809
        %v2389 = vadd.f32 %v2373, %v1809
        %v2390 = vadd.f32 %v2374, %v1809
        %v2391 = vadd.f32 %v2375, %v1809
        %v2392 = vadd.f32 %v2376, %v1809
        %v2393 = vadd.f32 %v2377, %v1809
        %v2394 = vadd.f32 %v2378, %v1809
        %s2395 = scalar_lea.vmem %s216, 128 [#allocation2]
        %2396 = vst.msk [vmem:[%s2395] sm:$0xff] %vm1183, %v2379
        %2397 = vst.msk [vmem:[%s2395 + $0x8] sm:$0xff] %vm1183, %v2380
        %2398 = vst.msk [vmem:[%s2395 + $0x10] sm:$0xff] %vm1183, %v2381
        %2399 = vst.msk [vmem:[%s2395 + $0x18] sm:$0xff] %vm1183, %v2382
        %2400 = vst.msk [vmem:[%s2395 + $0x20] sm:$0xff] %vm1183, %v2383
        %2401 = vst.msk [vmem:[%s2395 + $0x28] sm:$0xff] %vm1183, %v2384
        %2402 = vst.msk [vmem:[%s2395 + $0x30] sm:$0xff] %vm1183, %v2385
        %2403 = vst.msk [vmem:[%s2395 + $0x38] sm:$0xff] %vm1183, %v2386
        %2404 = vst.msk [vmem:[%s2395 + $0x40] sm:$0xff] %vm1183, %v2387
        %2405 = vst.msk [vmem:[%s2395 + $0x48] sm:$0xff] %vm1183, %v2388
        %2406 = vst.msk [vmem:[%s2395 + $0x50] sm:$0xff] %vm1183, %v2389
        %2407 = vst.msk [vmem:[%s2395 + $0x58] sm:$0xff] %vm1183, %v2390
        %2408 = vst.msk [vmem:[%s2395 + $0x60] sm:$0xff] %vm1183, %v2391
        %2409 = vst.msk [vmem:[%s2395 + $0x68] sm:$0xff] %vm1183, %v2392
        %2410 = vst.msk [vmem:[%s2395 + $0x70] sm:$0xff] %vm1183, %v2393
        %2411 = vst.msk [vmem:[%s2395 + $0x78] sm:$0xff] %vm1183, %v2394
        %s2412 = scalar_lea.vmem %s229, 16
        %v2413 = vld [vmem:[%s2412] sm:$0x3]
        %s2414 = scalar_lea.vmem %s229, 18
        %v2415 = vld [vmem:[%s2414] sm:$0x3]
        %v2417 = vsel %vm1208, %v2415, 0
        %2419 = vmatprep.subr.bf16.mxu0 0
        %2420 = vmatpush1.bf16.msra.mxu0 0
        %2421 = vmatprep.subr.bf16.mxu0 0
        %2422 = vmatpush1.bf16.msra.mxu0 0
        %2423 = vmatprep.subr.bf16.mxu0 0
        %2424 = vmatpush1.bf16.msra.mxu0 0
        %2425 = vmatprep.subr.bf16.mxu0 0
        %2426 = vmatpush1.bf16.msra.mxu0 0
        %2427 = vmatprep.subr.bf16.mxu0 0
        %2428 = vmatpush1.bf16.msra.mxu0 0
        %2429 = vmatprep.subr.bf16.mxu0 0
        %2430 = vmatpush1.bf16.msra.mxu0 0
        %2431 = vmatprep.subr.bf16.mxu0 0
        %2432 = vmatpush1.bf16.msra.mxu0 0
        %2433 = vmatprep.subr.bf16.mxu0 0
        %2434 = vmatpush1.bf16.msra.mxu0 %v2417
        %2435 = vmatprep.subr.bf16.mxu0 0
        %2436 = vmatpush2.bf16.msra.mxu0 0
        %2437 = vmatprep.subr.bf16.mxu0 0
        %2438 = vmatpush2.bf16.msra.mxu0 0
        %2439 = vmatprep.subr.bf16.mxu0 0
        %2440 = vmatpush2.bf16.msra.mxu0 0
        %2441 = vmatprep.subr.bf16.mxu0 0
        %2442 = vmatpush2.bf16.msra.mxu0 0
        %2443 = vmatprep.subr.bf16.mxu0 0
        %2444 = vmatpush2.bf16.msra.mxu0 0
        %2445 = vmatprep.subr.bf16.mxu0 0
        %2446 = vmatpush2.bf16.msra.mxu0 0
        %2447 = vmatprep.subr.bf16.mxu0 0
        %2448 = vmatpush2.bf16.msra.mxu0 0
        %2449 = vmatprep.subr.bf16.mxu0 0
        %2450 = vmatpush2.bf16.msra.mxu0 0
        %2451 = vmatprep.mubr.bf16.mxu0 0
        %2452 = vmatmul.mubr.bf16.gmra.mxu0 %v1666
        %v2453 = vpop.f32.mrf.mxu0
        %v2454 = vadd.f32 0.0, %v2453
        %v2455 = vpop.f32.mrf.mxu0
        %v2456 = vpop.f32.mrf.mxu0
        %v2457 = vadd.f32 0.0, %v2456
        %v2458 = vpop.f32.mrf.mxu0
        %2459 = vmatprep.mubr.bf16.mxu0 0
        %2460 = vmatmul.mubr.bf16.gmra.mxu0 %v1669
        %v2461 = vpop.f32.mrf.mxu0
        %v2462 = vadd.f32 0.0, %v2461
        %v2463 = vpop.f32.mrf.mxu0
        %v2464 = vpop.f32.mrf.mxu0
        %v2465 = vadd.f32 0.0, %v2464
        %v2466 = vpop.f32.mrf.mxu0
        %2467 = vmatprep.mubr.bf16.mxu0 0
        %2468 = vmatmul.mubr.bf16.gmra.mxu0 %v1672
        %v2469 = vpop.f32.mrf.mxu0
        %v2470 = vadd.f32 0.0, %v2469
        %v2471 = vpop.f32.mrf.mxu0
        %v2472 = vpop.f32.mrf.mxu0
        %v2473 = vadd.f32 0.0, %v2472
        %v2474 = vpop.f32.mrf.mxu0
        %2475 = vmatprep.mubr.bf16.mxu0 0
        %2476 = vmatmul.mubr.bf16.gmra.mxu0 %v1675
        %v2477 = vpop.f32.mrf.mxu0
        %v2478 = vadd.f32 0.0, %v2477
        %v2479 = vpop.f32.mrf.mxu0
        %v2480 = vpop.f32.mrf.mxu0
        %v2481 = vadd.f32 0.0, %v2480
        %v2482 = vpop.f32.mrf.mxu0
        %2483 = vmatprep.mubr.bf16.mxu0 0
        %2484 = vmatmul.mubr.bf16.gmra.mxu0 %v1678
        %v2485 = vpop.f32.mrf.mxu0
        %v2486 = vadd.f32 0.0, %v2485
        %v2487 = vpop.f32.mrf.mxu0
        %v2488 = vpop.f32.mrf.mxu0
        %v2489 = vadd.f32 0.0, %v2488
        %v2490 = vpop.f32.mrf.mxu0
        %2491 = vmatprep.mubr.bf16.mxu0 0
        %2492 = vmatmul.mubr.bf16.gmra.mxu0 %v1681
        %v2493 = vpop.f32.mrf.mxu0
        %v2494 = vadd.f32 0.0, %v2493
        %v2495 = vpop.f32.mrf.mxu0
        %v2496 = vpop.f32.mrf.mxu0
        %v2497 = vadd.f32 0.0, %v2496
        %v2498 = vpop.f32.mrf.mxu0
        %2499 = vmatprep.mubr.bf16.mxu0 0
        %2500 = vmatmul.mubr.bf16.gmra.mxu0 %v1684
        %v2501 = vpop.f32.mrf.mxu0
        %v2502 = vadd.f32 0.0, %v2501
        %v2503 = vpop.f32.mrf.mxu0
        %v2504 = vpop.f32.mrf.mxu0
        %v2505 = vadd.f32 0.0, %v2504
        %v2506 = vpop.f32.mrf.mxu0
        %2507 = vmatprep.mubr.bf16.mxu0 0
        %2508 = vmatmul.mubr.bf16.gmra.mxu0 %v1687
        %v2509 = vpop.f32.mrf.mxu0
        %v2510 = vadd.f32 0.0, %v2509
        %v2511 = vpop.f32.mrf.mxu0
        %v2512 = vpop.f32.mrf.mxu0
        %v2513 = vadd.f32 0.0, %v2512
        %v2514 = vpop.f32.mrf.mxu0
        %2515 = vdwg.mxu0
        %v2517 = vsel %vm1208, %v2413, 0
        %2519 = vmatprep.subr.bf16.mxu0 0
        %2520 = vmatpush1.bf16.msra.mxu0 0
        %2521 = vmatprep.subr.bf16.mxu0 0
        %2522 = vmatpush1.bf16.msra.mxu0 0
        %2523 = vmatprep.subr.bf16.mxu0 0
        %2524 = vmatpush1.bf16.msra.mxu0 0
        %2525 = vmatprep.subr.bf16.mxu0 0
        %2526 = vmatpush1.bf16.msra.mxu0 0
        %2527 = vmatprep.subr.bf16.mxu0 0
        %2528 = vmatpush1.bf16.msra.mxu0 0
        %2529 = vmatprep.subr.bf16.mxu0 0
        %2530 = vmatpush1.bf16.msra.mxu0 0
        %2531 = vmatprep.subr.bf16.mxu0 0
        %2532 = vmatpush1.bf16.msra.mxu0 0
        %2533 = vmatprep.subr.bf16.mxu0 0
        %2534 = vmatpush1.bf16.msra.mxu0 %v2517
        %2535 = vmatprep.subr.bf16.mxu0 0
        %2536 = vmatpush2.bf16.msra.mxu0 0
        %2537 = vmatprep.subr.bf16.mxu0 0
        %2538 = vmatpush2.bf16.msra.mxu0 0
        %2539 = vmatprep.subr.bf16.mxu0 0
        %2540 = vmatpush2.bf16.msra.mxu0 0
        %2541 = vmatprep.subr.bf16.mxu0 0
        %2542 = vmatpush2.bf16.msra.mxu0 0
        %2543 = vmatprep.subr.bf16.mxu0 0
        %2544 = vmatpush2.bf16.msra.mxu0 0
        %2545 = vmatprep.subr.bf16.mxu0 0
        %2546 = vmatpush2.bf16.msra.mxu0 0
        %2547 = vmatprep.subr.bf16.mxu0 0
        %2548 = vmatpush2.bf16.msra.mxu0 0
        %2549 = vmatprep.subr.bf16.mxu0 0
        %2550 = vmatpush2.bf16.msra.mxu0 0
        %2551 = vmatprep.mubr.bf16.mxu0 0
        %2552 = vmatmul.mubr.bf16.gmra.mxu0 %v1500
        %v2553 = vpop.f32.mrf.mxu0
        %v2554 = vadd.f32 %v2454, %v2553
        %v2555 = vpop.f32.mrf.mxu0
        %v2556 = vpop.f32.mrf.mxu0
        %v2557 = vadd.f32 %v2457, %v2556
        %v2558 = vpop.f32.mrf.mxu0
        %2559 = vmatprep.mubr.bf16.mxu0 0
        %2560 = vmatmul.mubr.bf16.gmra.mxu0 %v1503
        %v2561 = vpop.f32.mrf.mxu0
        %v2562 = vadd.f32 %v2462, %v2561
        %v2563 = vpop.f32.mrf.mxu0
        %v2564 = vpop.f32.mrf.mxu0
        %v2565 = vadd.f32 %v2465, %v2564
        %v2566 = vpop.f32.mrf.mxu0
        %2567 = vmatprep.mubr.bf16.mxu0 0
        %2568 = vmatmul.mubr.bf16.gmra.mxu0 %v1506
        %v2569 = vpop.f32.mrf.mxu0
        %v2570 = vadd.f32 %v2470, %v2569
        %v2571 = vpop.f32.mrf.mxu0
        %v2572 = vpop.f32.mrf.mxu0
        %v2573 = vadd.f32 %v2473, %v2572
        %v2574 = vpop.f32.mrf.mxu0
        %2575 = vmatprep.mubr.bf16.mxu0 0
        %2576 = vmatmul.mubr.bf16.gmra.mxu0 %v1509
        %v2577 = vpop.f32.mrf.mxu0
        %v2578 = vadd.f32 %v2478, %v2577
        %v2579 = vpop.f32.mrf.mxu0
        %v2580 = vpop.f32.mrf.mxu0
        %v2581 = vadd.f32 %v2481, %v2580
        %v2582 = vpop.f32.mrf.mxu0
        %2583 = vmatprep.mubr.bf16.mxu0 0
        %2584 = vmatmul.mubr.bf16.gmra.mxu0 %v1512
        %v2585 = vpop.f32.mrf.mxu0
        %v2586 = vadd.f32 %v2486, %v2585
        %v2587 = vpop.f32.mrf.mxu0
        %v2588 = vpop.f32.mrf.mxu0
        %v2589 = vadd.f32 %v2489, %v2588
        %v2590 = vpop.f32.mrf.mxu0
        %2591 = vmatprep.mubr.bf16.mxu0 0
        %2592 = vmatmul.mubr.bf16.gmra.mxu0 %v1515
        %v2593 = vpop.f32.mrf.mxu0
        %v2594 = vadd.f32 %v2494, %v2593
        %v2595 = vpop.f32.mrf.mxu0
        %v2596 = vpop.f32.mrf.mxu0
        %v2597 = vadd.f32 %v2497, %v2596
        %v2598 = vpop.f32.mrf.mxu0
        %2599 = vmatprep.mubr.bf16.mxu0 0
        %2600 = vmatmul.mubr.bf16.gmra.mxu0 %v1518
        %v2601 = vpop.f32.mrf.mxu0
        %v2602 = vadd.f32 %v2502, %v2601
        %v2603 = vpop.f32.mrf.mxu0
        %v2604 = vpop.f32.mrf.mxu0
        %v2605 = vadd.f32 %v2505, %v2604
        %v2606 = vpop.f32.mrf.mxu0
        %2607 = vmatprep.mubr.bf16.mxu0 0
        %2608 = vmatmul.mubr.bf16.gmra.mxu0 %v1521
        %v2609 = vpop.f32.mrf.mxu0
        %v2610 = vadd.f32 %v2510, %v2609
        %v2611 = vpop.f32.mrf.mxu0
        %v2612 = vpop.f32.mrf.mxu0
        %v2613 = vadd.f32 %v2513, %v2612
        %v2614 = vpop.f32.mrf.mxu0
        %2615 = vdwg.mxu0
        %s2616 = scalar_lea.vmem %s229, 20
        %v2617 = vld [vmem:[%s2616] sm:$0x3]
        %v2626 = vunpack.c.l.b16 %v851
        %v2627 = vunpack.c.l.b16 %v852
        %v2628 = vunpack.c.l.b16 %v853
        %v2629 = vunpack.c.l.b16 %v854
        %v2630 = vunpack.c.l.b16 %v855
        %v2631 = vunpack.c.l.b16 %v856
        %v2632 = vunpack.c.l.b16 %v857
        %v2633 = vunpack.c.l.b16 %v858
        %v2634 = vunpack.c.l.b16 %v859
        %v2635 = vunpack.c.l.b16 %v860
        %v2636 = vunpack.c.l.b16 %v861
        %v2637 = vunpack.c.l.b16 %v862
        %v2638 = vunpack.c.l.b16 %v863
        %v2639 = vunpack.c.l.b16 %v864
        %v2640 = vunpack.c.l.b16 %v865
        %v2641 = vunpack.c.l.b16 %v866
        %v2642 = vpack.c.b16 %v2627, %v2626
        %v2643 = vpack.c.b16 %v2629, %v2628
        %v2644 = vpack.c.b16 %v2631, %v2630
        %v2645 = vpack.c.b16 %v2633, %v2632
        %v2646 = vpack.c.b16 %v2635, %v2634
        %v2647 = vpack.c.b16 %v2637, %v2636
        %v2648 = vpack.c.b16 %v2639, %v2638
        %v2649 = vpack.c.b16 %v2641, %v2640
        %v2651 = vsel %vm1183, %v2642, 0
        %v2654 = vsel %vm1183, %v2643, 0
        %v2657 = vsel %vm1183, %v2644, 0
        %v2660 = vsel %vm1183, %v2645, 0
        %v2663 = vsel %vm1183, %v2646, 0
        %v2666 = vsel %vm1183, %v2647, 0
        %v2669 = vsel %vm1183, %v2648, 0
        %v2672 = vsel %vm1183, %v2649, 0
        %v2675 = vsel %vm1208, %v2617, 0
        %2677 = vmatprep.subr.bf16.mxu0 0
        %2678 = vmatpush1.bf16.msra.mxu0 0
        %2679 = vmatprep.subr.bf16.mxu0 0
        %2680 = vmatpush1.bf16.msra.mxu0 0
        %2681 = vmatprep.subr.bf16.mxu0 0
        %2682 = vmatpush1.bf16.msra.mxu0 0
        %2683 = vmatprep.subr.bf16.mxu0 0
        %2684 = vmatpush1.bf16.msra.mxu0 0
        %2685 = vmatprep.subr.bf16.mxu0 0
        %2686 = vmatpush1.bf16.msra.mxu0 0
        %2687 = vmatprep.subr.bf16.mxu0 0
        %2688 = vmatpush1.bf16.msra.mxu0 0
        %2689 = vmatprep.subr.bf16.mxu0 0
        %2690 = vmatpush1.bf16.msra.mxu0 0
        %2691 = vmatprep.subr.bf16.mxu0 0
        %2692 = vmatpush1.bf16.msra.mxu0 %v2675
        %2693 = vmatprep.subr.bf16.mxu0 0
        %2694 = vmatpush2.bf16.msra.mxu0 0
        %2695 = vmatprep.subr.bf16.mxu0 0
        %2696 = vmatpush2.bf16.msra.mxu0 0
        %2697 = vmatprep.subr.bf16.mxu0 0
        %2698 = vmatpush2.bf16.msra.mxu0 0
        %2699 = vmatprep.subr.bf16.mxu0 0
        %2700 = vmatpush2.bf16.msra.mxu0 0
        %2701 = vmatprep.subr.bf16.mxu0 0
        %2702 = vmatpush2.bf16.msra.mxu0 0
        %2703 = vmatprep.subr.bf16.mxu0 0
        %2704 = vmatpush2.bf16.msra.mxu0 0
        %2705 = vmatprep.subr.bf16.mxu0 0
        %2706 = vmatpush2.bf16.msra.mxu0 0
        %2707 = vmatprep.subr.bf16.mxu0 0
        %2708 = vmatpush2.bf16.msra.mxu0 0
        %2709 = vmatprep.mubr.bf16.mxu0 0
        %2710 = vmatmul.mubr.bf16.gmra.mxu0 %v2651
        %v2711 = vpop.f32.mrf.mxu0
        %v2712 = vadd.f32 0.0, %v2711
        %v2713 = vpop.f32.mrf.mxu0
        %v2714 = vpop.f32.mrf.mxu0
        %v2715 = vadd.f32 0.0, %v2714
        %v2716 = vpop.f32.mrf.mxu0
        %2717 = vmatprep.mubr.bf16.mxu0 0
        %2718 = vmatmul.mubr.bf16.gmra.mxu0 %v2654
        %v2719 = vpop.f32.mrf.mxu0
        %v2720 = vadd.f32 0.0, %v2719
        %v2721 = vpop.f32.mrf.mxu0
        %v2722 = vpop.f32.mrf.mxu0
        %v2723 = vadd.f32 0.0, %v2722
        %v2724 = vpop.f32.mrf.mxu0
        %2725 = vmatprep.mubr.bf16.mxu0 0
        %2726 = vmatmul.mubr.bf16.gmra.mxu0 %v2657
        %v2727 = vpop.f32.mrf.mxu0
        %v2728 = vadd.f32 0.0, %v2727
        %v2729 = vpop.f32.mrf.mxu0
        %v2730 = vpop.f32.mrf.mxu0
        %v2731 = vadd.f32 0.0, %v2730
        %v2732 = vpop.f32.mrf.mxu0
        %2733 = vmatprep.mubr.bf16.mxu0 0
        %2734 = vmatmul.mubr.bf16.gmra.mxu0 %v2660
        %v2735 = vpop.f32.mrf.mxu0
        %v2736 = vadd.f32 0.0, %v2735
        %v2737 = vpop.f32.mrf.mxu0
        %v2738 = vpop.f32.mrf.mxu0
        %v2739 = vadd.f32 0.0, %v2738
        %v2740 = vpop.f32.mrf.mxu0
        %2741 = vmatprep.mubr.bf16.mxu0 0
        %2742 = vmatmul.mubr.bf16.gmra.mxu0 %v2663
        %v2743 = vpop.f32.mrf.mxu0
        %v2744 = vadd.f32 0.0, %v2743
        %v2745 = vpop.f32.mrf.mxu0
        %v2746 = vpop.f32.mrf.mxu0
        %v2747 = vadd.f32 0.0, %v2746
        %v2748 = vpop.f32.mrf.mxu0
        %2749 = vmatprep.mubr.bf16.mxu0 0
        %2750 = vmatmul.mubr.bf16.gmra.mxu0 %v2666
        %v2751 = vpop.f32.mrf.mxu0
        %v2752 = vadd.f32 0.0, %v2751
        %v2753 = vpop.f32.mrf.mxu0
        %v2754 = vpop.f32.mrf.mxu0
        %v2755 = vadd.f32 0.0, %v2754
        %v2756 = vpop.f32.mrf.mxu0
        %2757 = vmatprep.mubr.bf16.mxu0 0
        %2758 = vmatmul.mubr.bf16.gmra.mxu0 %v2669
        %v2759 = vpop.f32.mrf.mxu0
        %v2760 = vadd.f32 0.0, %v2759
        %v2761 = vpop.f32.mrf.mxu0
        %v2762 = vpop.f32.mrf.mxu0
        %v2763 = vadd.f32 0.0, %v2762
        %v2764 = vpop.f32.mrf.mxu0
        %2765 = vmatprep.mubr.bf16.mxu0 0
        %2766 = vmatmul.mubr.bf16.gmra.mxu0 %v2672
        %v2767 = vpop.f32.mrf.mxu0
        %v2768 = vadd.f32 0.0, %v2767
        %v2769 = vpop.f32.mrf.mxu0
        %v2770 = vpop.f32.mrf.mxu0
        %v2771 = vadd.f32 0.0, %v2770
        %v2772 = vpop.f32.mrf.mxu0
        %2773 = vdwg.mxu0
        %v2774 = vadd.f32 %v2554, %v2712
        %v2775 = vadd.f32 %v2557, %v2715
        %v2776 = vadd.f32 %v2562, %v2720
        %v2777 = vadd.f32 %v2565, %v2723
        %v2778 = vadd.f32 %v2570, %v2728
        %v2779 = vadd.f32 %v2573, %v2731
        %v2780 = vadd.f32 %v2578, %v2736
        %v2781 = vadd.f32 %v2581, %v2739
        %v2782 = vadd.f32 %v2586, %v2744
        %v2783 = vadd.f32 %v2589, %v2747
        %v2784 = vadd.f32 %v2594, %v2752
        %v2785 = vadd.f32 %v2597, %v2755
        %v2786 = vadd.f32 %v2602, %v2760
        %v2787 = vadd.f32 %v2605, %v2763
        %v2788 = vadd.f32 %v2610, %v2768
        %v2789 = vadd.f32 %v2613, %v2771
        %s2790 = scalar_lea.vmem %s229, 22
        %v2791 = vld [vmem:[%s2790] sm:$0x3]
        %v2792 = vunpack.c.l.b16 %v888
        %v2793 = vunpack.c.l.b16 %v898
        %v2794 = vunpack.c.l.b16 %v912
        %v2795 = vunpack.c.l.b16 %v922
        %v2796 = vunpack.c.l.b16 %v936
        %v2797 = vunpack.c.l.b16 %v946
        %v2798 = vunpack.c.l.b16 %v960
        %v2799 = vunpack.c.l.b16 %v970
        %v2800 = vunpack.c.l.b16 %v984
        %v2801 = vunpack.c.l.b16 %v994
        %v2802 = vunpack.c.l.b16 %v1008
        %v2803 = vunpack.c.l.b16 %v1018
        %v2804 = vunpack.c.l.b16 %v1032
        %v2805 = vunpack.c.l.b16 %v1042
        %v2806 = vunpack.c.l.b16 %v1056
        %v2807 = vunpack.c.l.b16 %v1066
        %v2808 = vpack.c.b16 %v2793, %v2792
        %v2809 = vpack.c.b16 %v2795, %v2794
        %v2810 = vpack.c.b16 %v2797, %v2796
        %v2811 = vpack.c.b16 %v2799, %v2798
        %v2812 = vpack.c.b16 %v2801, %v2800
        %v2813 = vpack.c.b16 %v2803, %v2802
        %v2814 = vpack.c.b16 %v2805, %v2804
        %v2815 = vpack.c.b16 %v2807, %v2806
        %v2817 = vsel %vm1183, %v2808, 0
        %v2820 = vsel %vm1183, %v2809, 0
        %v2823 = vsel %vm1183, %v2810, 0
        %v2826 = vsel %vm1183, %v2811, 0
        %v2829 = vsel %vm1183, %v2812, 0
        %v2832 = vsel %vm1183, %v2813, 0
        %v2835 = vsel %vm1183, %v2814, 0
        %v2838 = vsel %vm1183, %v2815, 0
        %v2841 = vsel %vm1208, %v2791, 0
        %2843 = vmatprep.subr.bf16.mxu0 0
        %2844 = vmatpush1.bf16.msra.mxu0 0
        %2845 = vmatprep.subr.bf16.mxu0 0
        %2846 = vmatpush1.bf16.msra.mxu0 0
        %2847 = vmatprep.subr.bf16.mxu0 0
        %2848 = vmatpush1.bf16.msra.mxu0 0
        %2849 = vmatprep.subr.bf16.mxu0 0
        %2850 = vmatpush1.bf16.msra.mxu0 0
        %2851 = vmatprep.subr.bf16.mxu0 0
        %2852 = vmatpush1.bf16.msra.mxu0 0
        %2853 = vmatprep.subr.bf16.mxu0 0
        %2854 = vmatpush1.bf16.msra.mxu0 0
        %2855 = vmatprep.subr.bf16.mxu0 0
        %2856 = vmatpush1.bf16.msra.mxu0 0
        %2857 = vmatprep.subr.bf16.mxu0 0
        %2858 = vmatpush1.bf16.msra.mxu0 %v2841
        %2859 = vmatprep.subr.bf16.mxu0 0
        %2860 = vmatpush2.bf16.msra.mxu0 0
        %2861 = vmatprep.subr.bf16.mxu0 0
        %2862 = vmatpush2.bf16.msra.mxu0 0
        %2863 = vmatprep.subr.bf16.mxu0 0
        %2864 = vmatpush2.bf16.msra.mxu0 0
        %2865 = vmatprep.subr.bf16.mxu0 0
        %2866 = vmatpush2.bf16.msra.mxu0 0
        %2867 = vmatprep.subr.bf16.mxu0 0
        %2868 = vmatpush2.bf16.msra.mxu0 0
        %2869 = vmatprep.subr.bf16.mxu0 0
        %2870 = vmatpush2.bf16.msra.mxu0 0
        %2871 = vmatprep.subr.bf16.mxu0 0
        %2872 = vmatpush2.bf16.msra.mxu0 0
        %2873 = vmatprep.subr.bf16.mxu0 0
        %2874 = vmatpush2.bf16.msra.mxu0 0
        %2875 = vmatprep.mubr.bf16.mxu0 0
        %2876 = vmatmul.mubr.bf16.gmra.mxu0 %v2817
        %v2877 = vpop.f32.mrf.mxu0
        %v2878 = vadd.f32 0.0, %v2877
        %v2879 = vpop.f32.mrf.mxu0
        %v2880 = vpop.f32.mrf.mxu0
        %v2881 = vadd.f32 0.0, %v2880
        %v2882 = vpop.f32.mrf.mxu0
        %2883 = vmatprep.mubr.bf16.mxu0 0
        %2884 = vmatmul.mubr.bf16.gmra.mxu0 %v2820
        %v2885 = vpop.f32.mrf.mxu0
        %v2886 = vadd.f32 0.0, %v2885
        %v2887 = vpop.f32.mrf.mxu0
        %v2888 = vpop.f32.mrf.mxu0
        %v2889 = vadd.f32 0.0, %v2888
        %v2890 = vpop.f32.mrf.mxu0
        %2891 = vmatprep.mubr.bf16.mxu0 0
        %2892 = vmatmul.mubr.bf16.gmra.mxu0 %v2823
        %v2893 = vpop.f32.mrf.mxu0
        %v2894 = vadd.f32 0.0, %v2893
        %v2895 = vpop.f32.mrf.mxu0
        %v2896 = vpop.f32.mrf.mxu0
        %v2897 = vadd.f32 0.0, %v2896
        %v2898 = vpop.f32.mrf.mxu0
        %2899 = vmatprep.mubr.bf16.mxu0 0
        %2900 = vmatmul.mubr.bf16.gmra.mxu0 %v2826
        %v2901 = vpop.f32.mrf.mxu0
        %v2902 = vadd.f32 0.0, %v2901
        %v2903 = vpop.f32.mrf.mxu0
        %v2904 = vpop.f32.mrf.mxu0
        %v2905 = vadd.f32 0.0, %v2904
        %v2906 = vpop.f32.mrf.mxu0
        %2907 = vmatprep.mubr.bf16.mxu0 0
        %2908 = vmatmul.mubr.bf16.gmra.mxu0 %v2829
        %v2909 = vpop.f32.mrf.mxu0
        %v2910 = vadd.f32 0.0, %v2909
        %v2911 = vpop.f32.mrf.mxu0
        %v2912 = vpop.f32.mrf.mxu0
        %v2913 = vadd.f32 0.0, %v2912
        %v2914 = vpop.f32.mrf.mxu0
        %2915 = vmatprep.mubr.bf16.mxu0 0
        %2916 = vmatmul.mubr.bf16.gmra.mxu0 %v2832
        %v2917 = vpop.f32.mrf.mxu0
        %v2918 = vadd.f32 0.0, %v2917
        %v2919 = vpop.f32.mrf.mxu0
        %v2920 = vpop.f32.mrf.mxu0
        %v2921 = vadd.f32 0.0, %v2920
        %v2922 = vpop.f32.mrf.mxu0
        %2923 = vmatprep.mubr.bf16.mxu0 0
        %2924 = vmatmul.mubr.bf16.gmra.mxu0 %v2835
        %v2925 = vpop.f32.mrf.mxu0
        %v2926 = vadd.f32 0.0, %v2925
        %v2927 = vpop.f32.mrf.mxu0
        %v2928 = vpop.f32.mrf.mxu0
        %v2929 = vadd.f32 0.0, %v2928
        %v2930 = vpop.f32.mrf.mxu0
        %2931 = vmatprep.mubr.bf16.mxu0 0
        %2932 = vmatmul.mubr.bf16.gmra.mxu0 %v2838
        %v2933 = vpop.f32.mrf.mxu0
        %v2934 = vadd.f32 0.0, %v2933
        %v2935 = vpop.f32.mrf.mxu0
        %v2936 = vpop.f32.mrf.mxu0
        %v2937 = vadd.f32 0.0, %v2936
        %v2938 = vpop.f32.mrf.mxu0
        %2939 = vdwg.mxu0
        %v2940 = vadd.f32 %v2774, %v2878
        %v2941 = vadd.f32 %v2775, %v2881
        %v2942 = vadd.f32 %v2776, %v2886
        %v2943 = vadd.f32 %v2777, %v2889
        %v2944 = vadd.f32 %v2778, %v2894
        %v2945 = vadd.f32 %v2779, %v2897
        %v2946 = vadd.f32 %v2780, %v2902
        %v2947 = vadd.f32 %v2781, %v2905
        %v2948 = vadd.f32 %v2782, %v2910
        %v2949 = vadd.f32 %v2783, %v2913
        %v2950 = vadd.f32 %v2784, %v2918
        %v2951 = vadd.f32 %v2785, %v2921
        %v2952 = vadd.f32 %v2786, %v2926
        %v2953 = vadd.f32 %v2787, %v2929
        %v2954 = vadd.f32 %v2788, %v2934
        %v2955 = vadd.f32 %v2789, %v2937
        %v2956 = vadd.f32 %v2940, %v1809
        %v2957 = vadd.f32 %v2941, %v1809
        %v2958 = vadd.f32 %v2942, %v1809
        %v2959 = vadd.f32 %v2943, %v1809
        %v2960 = vadd.f32 %v2944, %v1809
        %v2961 = vadd.f32 %v2945, %v1809
        %v2962 = vadd.f32 %v2946, %v1809
        %v2963 = vadd.f32 %v2947, %v1809
        %v2964 = vadd.f32 %v2948, %v1809
        %v2965 = vadd.f32 %v2949, %v1809
        %v2966 = vadd.f32 %v2950, %v1809
        %v2967 = vadd.f32 %v2951, %v1809
        %v2968 = vadd.f32 %v2952, %v1809
        %v2969 = vadd.f32 %v2953, %v1809
        %v2970 = vadd.f32 %v2954, %v1809
        %v2971 = vadd.f32 %v2955, %v1809
        %s2972 = scalar_lea.vmem %s216, 256 [#allocation2]
        %2973 = vst.msk [vmem:[%s2972] sm:$0xff] %vm1183, %v2956
        %2974 = vst.msk [vmem:[%s2972 + $0x8] sm:$0xff] %vm1183, %v2957
        %2975 = vst.msk [vmem:[%s2972 + $0x10] sm:$0xff] %vm1183, %v2958
        %2976 = vst.msk [vmem:[%s2972 + $0x18] sm:$0xff] %vm1183, %v2959
        %2977 = vst.msk [vmem:[%s2972 + $0x20] sm:$0xff] %vm1183, %v2960
        %2978 = vst.msk [vmem:[%s2972 + $0x28] sm:$0xff] %vm1183, %v2961
        %2979 = vst.msk [vmem:[%s2972 + $0x30] sm:$0xff] %vm1183, %v2962
        %2980 = vst.msk [vmem:[%s2972 + $0x38] sm:$0xff] %vm1183, %v2963
        %2981 = vst.msk [vmem:[%s2972 + $0x40] sm:$0xff] %vm1183, %v2964
        %2982 = vst.msk [vmem:[%s2972 + $0x48] sm:$0xff] %vm1183, %v2965
        %2983 = vst.msk [vmem:[%s2972 + $0x50] sm:$0xff] %vm1183, %v2966
        %2984 = vst.msk [vmem:[%s2972 + $0x58] sm:$0xff] %vm1183, %v2967
        %2985 = vst.msk [vmem:[%s2972 + $0x60] sm:$0xff] %vm1183, %v2968
        %2986 = vst.msk [vmem:[%s2972 + $0x68] sm:$0xff] %vm1183, %v2969
        %2987 = vst.msk [vmem:[%s2972 + $0x70] sm:$0xff] %vm1183, %v2970
        %2988 = vst.msk [vmem:[%s2972 + $0x78] sm:$0xff] %vm1183, %v2971
        %s2989 = scalar_lea.vmem %s229, 24
        %v2990 = vld [vmem:[%s2989] sm:$0x3]
        %s2991 = scalar_lea.vmem %s229, 26
        %v2992 = vld [vmem:[%s2991] sm:$0x3]
        %v2994 = vsel %vm1208, %v2992, 0
        %2996 = vmatprep.subr.bf16.mxu0 0
        %2997 = vmatpush1.bf16.msra.mxu0 0
        %2998 = vmatprep.subr.bf16.mxu0 0
        %2999 = vmatpush1.bf16.msra.mxu0 0
        %3000 = vmatprep.subr.bf16.mxu0 0
        %3001 = vmatpush1.bf16.msra.mxu0 0
        %3002 = vmatprep.subr.bf16.mxu0 0
        %3003 = vmatpush1.bf16.msra.mxu0 0
        %3004 = vmatprep.subr.bf16.mxu0 0
        %3005 = vmatpush1.bf16.msra.mxu0 0
        %3006 = vmatprep.subr.bf16.mxu0 0
        %3007 = vmatpush1.bf16.msra.mxu0 0
        %3008 = vmatprep.subr.bf16.mxu0 0
        %3009 = vmatpush1.bf16.msra.mxu0 0
        %3010 = vmatprep.subr.bf16.mxu0 0
        %3011 = vmatpush1.bf16.msra.mxu0 %v2994
        %3012 = vmatprep.subr.bf16.mxu0 0
        %3013 = vmatpush2.bf16.msra.mxu0 0
        %3014 = vmatprep.subr.bf16.mxu0 0
        %3015 = vmatpush2.bf16.msra.mxu0 0
        %3016 = vmatprep.subr.bf16.mxu0 0
        %3017 = vmatpush2.bf16.msra.mxu0 0
        %3018 = vmatprep.subr.bf16.mxu0 0
        %3019 = vmatpush2.bf16.msra.mxu0 0
        %3020 = vmatprep.subr.bf16.mxu0 0
        %3021 = vmatpush2.bf16.msra.mxu0 0
        %3022 = vmatprep.subr.bf16.mxu0 0
        %3023 = vmatpush2.bf16.msra.mxu0 0
        %3024 = vmatprep.subr.bf16.mxu0 0
        %3025 = vmatpush2.bf16.msra.mxu0 0
        %3026 = vmatprep.subr.bf16.mxu0 0
        %3027 = vmatpush2.bf16.msra.mxu0 0
        %3028 = vmatprep.mubr.bf16.mxu0 0
        %3029 = vmatmul.mubr.bf16.gmra.mxu0 %v2240
        %v3030 = vpop.f32.mrf.mxu0
        %v3031 = vadd.f32 0.0, %v3030
        %v3032 = vpop.f32.mrf.mxu0
        %v3033 = vpop.f32.mrf.mxu0
        %v3034 = vadd.f32 0.0, %v3033
        %v3035 = vpop.f32.mrf.mxu0
        %3036 = vmatprep.mubr.bf16.mxu0 0
        %3037 = vmatmul.mubr.bf16.gmra.mxu0 %v2243
        %v3038 = vpop.f32.mrf.mxu0
        %v3039 = vadd.f32 0.0, %v3038
        %v3040 = vpop.f32.mrf.mxu0
        %v3041 = vpop.f32.mrf.mxu0
        %v3042 = vadd.f32 0.0, %v3041
        %v3043 = vpop.f32.mrf.mxu0
        %3044 = vmatprep.mubr.bf16.mxu0 0
        %3045 = vmatmul.mubr.bf16.gmra.mxu0 %v2246
        %v3046 = vpop.f32.mrf.mxu0
        %v3047 = vadd.f32 0.0, %v3046
        %v3048 = vpop.f32.mrf.mxu0
        %v3049 = vpop.f32.mrf.mxu0
        %v3050 = vadd.f32 0.0, %v3049
        %v3051 = vpop.f32.mrf.mxu0
        %3052 = vmatprep.mubr.bf16.mxu0 0
        %3053 = vmatmul.mubr.bf16.gmra.mxu0 %v2249
        %v3054 = vpop.f32.mrf.mxu0
        %v3055 = vadd.f32 0.0, %v3054
        %v3056 = vpop.f32.mrf.mxu0
        %v3057 = vpop.f32.mrf.mxu0
        %v3058 = vadd.f32 0.0, %v3057
        %v3059 = vpop.f32.mrf.mxu0
        %3060 = vmatprep.mubr.bf16.mxu0 0
        %3061 = vmatmul.mubr.bf16.gmra.mxu0 %v2252
        %v3062 = vpop.f32.mrf.mxu0
        %v3063 = vadd.f32 0.0, %v3062
        %v3064 = vpop.f32.mrf.mxu0
        %v3065 = vpop.f32.mrf.mxu0
        %v3066 = vadd.f32 0.0, %v3065
        %v3067 = vpop.f32.mrf.mxu0
        %3068 = vmatprep.mubr.bf16.mxu0 0
        %3069 = vmatmul.mubr.bf16.gmra.mxu0 %v2255
        %v3070 = vpop.f32.mrf.mxu0
        %v3071 = vadd.f32 0.0, %v3070
        %v3072 = vpop.f32.mrf.mxu0
        %v3073 = vpop.f32.mrf.mxu0
        %v3074 = vadd.f32 0.0, %v3073
        %v3075 = vpop.f32.mrf.mxu0
        %3076 = vmatprep.mubr.bf16.mxu0 0
        %3077 = vmatmul.mubr.bf16.gmra.mxu0 %v2258
        %v3078 = vpop.f32.mrf.mxu0
        %v3079 = vadd.f32 0.0, %v3078
        %v3080 = vpop.f32.mrf.mxu0
        %v3081 = vpop.f32.mrf.mxu0
        %v3082 = vadd.f32 0.0, %v3081
        %v3083 = vpop.f32.mrf.mxu0
        %3084 = vmatprep.mubr.bf16.mxu0 0
        %3085 = vmatmul.mubr.bf16.gmra.mxu0 %v2261
        %v3086 = vpop.f32.mrf.mxu0
        %v3087 = vadd.f32 0.0, %v3086
        %v3088 = vpop.f32.mrf.mxu0
        %v3089 = vpop.f32.mrf.mxu0
        %v3090 = vadd.f32 0.0, %v3089
        %v3091 = vpop.f32.mrf.mxu0
        %3092 = vdwg.mxu0
        %v3094 = vsel %vm1208, %v2990, 0
        %3096 = vmatprep.subr.bf16.mxu0 0
        %3097 = vmatpush1.bf16.msra.mxu0 0
        %3098 = vmatprep.subr.bf16.mxu0 0
        %3099 = vmatpush1.bf16.msra.mxu0 0
        %3100 = vmatprep.subr.bf16.mxu0 0
        %3101 = vmatpush1.bf16.msra.mxu0 0
        %3102 = vmatprep.subr.bf16.mxu0 0
        %3103 = vmatpush1.bf16.msra.mxu0 0
        %3104 = vmatprep.subr.bf16.mxu0 0
        %3105 = vmatpush1.bf16.msra.mxu0 0
        %3106 = vmatprep.subr.bf16.mxu0 0
        %3107 = vmatpush1.bf16.msra.mxu0 0
        %3108 = vmatprep.subr.bf16.mxu0 0
        %3109 = vmatpush1.bf16.msra.mxu0 0
        %3110 = vmatprep.subr.bf16.mxu0 0
        %3111 = vmatpush1.bf16.msra.mxu0 %v3094
        %3112 = vmatprep.subr.bf16.mxu0 0
        %3113 = vmatpush2.bf16.msra.mxu0 0
        %3114 = vmatprep.subr.bf16.mxu0 0
        %3115 = vmatpush2.bf16.msra.mxu0 0
        %3116 = vmatprep.subr.bf16.mxu0 0
        %3117 = vmatpush2.bf16.msra.mxu0 0
        %3118 = vmatprep.subr.bf16.mxu0 0
        %3119 = vmatpush2.bf16.msra.mxu0 0
        %3120 = vmatprep.subr.bf16.mxu0 0
        %3121 = vmatpush2.bf16.msra.mxu0 0
        %3122 = vmatprep.subr.bf16.mxu0 0
        %3123 = vmatpush2.bf16.msra.mxu0 0
        %3124 = vmatprep.subr.bf16.mxu0 0
        %3125 = vmatpush2.bf16.msra.mxu0 0
        %3126 = vmatprep.subr.bf16.mxu0 0
        %3127 = vmatpush2.bf16.msra.mxu0 0
        %3128 = vmatprep.mubr.bf16.mxu0 0
        %3129 = vmatmul.mubr.bf16.gmra.mxu0 %v1666
        %v3130 = vpop.f32.mrf.mxu0
        %v3131 = vadd.f32 %v3031, %v3130
        %v3132 = vpop.f32.mrf.mxu0
        %v3133 = vpop.f32.mrf.mxu0
        %v3134 = vadd.f32 %v3034, %v3133
        %v3135 = vpop.f32.mrf.mxu0
        %3136 = vmatprep.mubr.bf16.mxu0 0
        %3137 = vmatmul.mubr.bf16.gmra.mxu0 %v1669
        %v3138 = vpop.f32.mrf.mxu0
        %v3139 = vadd.f32 %v3039, %v3138
        %v3140 = vpop.f32.mrf.mxu0
        %v3141 = vpop.f32.mrf.mxu0
        %v3142 = vadd.f32 %v3042, %v3141
        %v3143 = vpop.f32.mrf.mxu0
        %3144 = vmatprep.mubr.bf16.mxu0 0
        %3145 = vmatmul.mubr.bf16.gmra.mxu0 %v1672
        %v3146 = vpop.f32.mrf.mxu0
        %v3147 = vadd.f32 %v3047, %v3146
        %v3148 = vpop.f32.mrf.mxu0
        %v3149 = vpop.f32.mrf.mxu0
        %v3150 = vadd.f32 %v3050, %v3149
        %v3151 = vpop.f32.mrf.mxu0
        %3152 = vmatprep.mubr.bf16.mxu0 0
        %3153 = vmatmul.mubr.bf16.gmra.mxu0 %v1675
        %v3154 = vpop.f32.mrf.mxu0
        %v3155 = vadd.f32 %v3055, %v3154
        %v3156 = vpop.f32.mrf.mxu0
        %v3157 = vpop.f32.mrf.mxu0
        %v3158 = vadd.f32 %v3058, %v3157
        %v3159 = vpop.f32.mrf.mxu0
        %3160 = vmatprep.mubr.bf16.mxu0 0
        %3161 = vmatmul.mubr.bf16.gmra.mxu0 %v1678
        %v3162 = vpop.f32.mrf.mxu0
        %v3163 = vadd.f32 %v3063, %v3162
        %v3164 = vpop.f32.mrf.mxu0
        %v3165 = vpop.f32.mrf.mxu0
        %v3166 = vadd.f32 %v3066, %v3165
        %v3167 = vpop.f32.mrf.mxu0
        %3168 = vmatprep.mubr.bf16.mxu0 0
        %3169 = vmatmul.mubr.bf16.gmra.mxu0 %v1681
        %v3170 = vpop.f32.mrf.mxu0
        %v3171 = vadd.f32 %v3071, %v3170
        %v3172 = vpop.f32.mrf.mxu0
        %v3173 = vpop.f32.mrf.mxu0
        %v3174 = vadd.f32 %v3074, %v3173
        %v3175 = vpop.f32.mrf.mxu0
        %3176 = vmatprep.mubr.bf16.mxu0 0
        %3177 = vmatmul.mubr.bf16.gmra.mxu0 %v1684
        %v3178 = vpop.f32.mrf.mxu0
        %v3179 = vadd.f32 %v3079, %v3178
        %v3180 = vpop.f32.mrf.mxu0
        %v3181 = vpop.f32.mrf.mxu0
        %v3182 = vadd.f32 %v3082, %v3181
        %v3183 = vpop.f32.mrf.mxu0
        %3184 = vmatprep.mubr.bf16.mxu0 0
        %3185 = vmatmul.mubr.bf16.gmra.mxu0 %v1687
        %v3186 = vpop.f32.mrf.mxu0
        %v3187 = vadd.f32 %v3087, %v3186
        %v3188 = vpop.f32.mrf.mxu0
        %v3189 = vpop.f32.mrf.mxu0
        %v3190 = vadd.f32 %v3090, %v3189
        %v3191 = vpop.f32.mrf.mxu0
        %3192 = vdwg.mxu0
        %s3193 = scalar_lea.vmem %s229, 28
        %v3194 = vld [vmem:[%s3193] sm:$0x3]
        %v3196 = vsel %vm1208, %v3194, 0
        %3198 = vmatprep.subr.bf16.mxu0 0
        %3199 = vmatpush1.bf16.msra.mxu0 0
        %3200 = vmatprep.subr.bf16.mxu0 0
        %3201 = vmatpush1.bf16.msra.mxu0 0
        %3202 = vmatprep.subr.bf16.mxu0 0
        %3203 = vmatpush1.bf16.msra.mxu0 0
        %3204 = vmatprep.subr.bf16.mxu0 0
        %3205 = vmatpush1.bf16.msra.mxu0 0
        %3206 = vmatprep.subr.bf16.mxu0 0
        %3207 = vmatpush1.bf16.msra.mxu0 0
        %3208 = vmatprep.subr.bf16.mxu0 0
        %3209 = vmatpush1.bf16.msra.mxu0 0
        %3210 = vmatprep.subr.bf16.mxu0 0
        %3211 = vmatpush1.bf16.msra.mxu0 0
        %3212 = vmatprep.subr.bf16.mxu0 0
        %3213 = vmatpush1.bf16.msra.mxu0 %v3196
        %3214 = vmatprep.subr.bf16.mxu0 0
        %3215 = vmatpush2.bf16.msra.mxu0 0
        %3216 = vmatprep.subr.bf16.mxu0 0
        %3217 = vmatpush2.bf16.msra.mxu0 0
        %3218 = vmatprep.subr.bf16.mxu0 0
        %3219 = vmatpush2.bf16.msra.mxu0 0
        %3220 = vmatprep.subr.bf16.mxu0 0
        %3221 = vmatpush2.bf16.msra.mxu0 0
        %3222 = vmatprep.subr.bf16.mxu0 0
        %3223 = vmatpush2.bf16.msra.mxu0 0
        %3224 = vmatprep.subr.bf16.mxu0 0
        %3225 = vmatpush2.bf16.msra.mxu0 0
        %3226 = vmatprep.subr.bf16.mxu0 0
        %3227 = vmatpush2.bf16.msra.mxu0 0
        %3228 = vmatprep.subr.bf16.mxu0 0
        %3229 = vmatpush2.bf16.msra.mxu0 0
        %3230 = vmatprep.mubr.bf16.mxu0 0
        %3231 = vmatmul.mubr.bf16.gmra.mxu0 %v2817
        %v3232 = vpop.f32.mrf.mxu0
        %v3233 = vadd.f32 0.0, %v3232
        %v3234 = vpop.f32.mrf.mxu0
        %v3235 = vpop.f32.mrf.mxu0
        %v3236 = vadd.f32 0.0, %v3235
        %v3237 = vpop.f32.mrf.mxu0
        %3238 = vmatprep.mubr.bf16.mxu0 0
        %3239 = vmatmul.mubr.bf16.gmra.mxu0 %v2820
        %v3240 = vpop.f32.mrf.mxu0
        %v3241 = vadd.f32 0.0, %v3240
        %v3242 = vpop.f32.mrf.mxu0
        %v3243 = vpop.f32.mrf.mxu0
        %v3244 = vadd.f32 0.0, %v3243
        %v3245 = vpop.f32.mrf.mxu0
        %3246 = vmatprep.mubr.bf16.mxu0 0
        %3247 = vmatmul.mubr.bf16.gmra.mxu0 %v2823
        %v3248 = vpop.f32.mrf.mxu0
        %v3249 = vadd.f32 0.0, %v3248
        %v3250 = vpop.f32.mrf.mxu0
        %v3251 = vpop.f32.mrf.mxu0
        %v3252 = vadd.f32 0.0, %v3251
        %v3253 = vpop.f32.mrf.mxu0
        %3254 = vmatprep.mubr.bf16.mxu0 0
        %3255 = vmatmul.mubr.bf16.gmra.mxu0 %v2826
        %v3256 = vpop.f32.mrf.mxu0
        %v3257 = vadd.f32 0.0, %v3256
        %v3258 = vpop.f32.mrf.mxu0
        %v3259 = vpop.f32.mrf.mxu0
        %v3260 = vadd.f32 0.0, %v3259
        %v3261 = vpop.f32.mrf.mxu0
        %3262 = vmatprep.mubr.bf16.mxu0 0
        %3263 = vmatmul.mubr.bf16.gmra.mxu0 %v2829
        %v3264 = vpop.f32.mrf.mxu0
        %v3265 = vadd.f32 0.0, %v3264
        %v3266 = vpop.f32.mrf.mxu0
        %v3267 = vpop.f32.mrf.mxu0
        %v3268 = vadd.f32 0.0, %v3267
        %v3269 = vpop.f32.mrf.mxu0
        %3270 = vmatprep.mubr.bf16.mxu0 0
        %3271 = vmatmul.mubr.bf16.gmra.mxu0 %v2832
        %v3272 = vpop.f32.mrf.mxu0
        %v3273 = vadd.f32 0.0, %v3272
        %v3274 = vpop.f32.mrf.mxu0
        %v3275 = vpop.f32.mrf.mxu0
        %v3276 = vadd.f32 0.0, %v3275
        %v3277 = vpop.f32.mrf.mxu0
        %3278 = vmatprep.mubr.bf16.mxu0 0
        %3279 = vmatmul.mubr.bf16.gmra.mxu0 %v2835
        %v3280 = vpop.f32.mrf.mxu0
        %v3281 = vadd.f32 0.0, %v3280
        %v3282 = vpop.f32.mrf.mxu0
        %v3283 = vpop.f32.mrf.mxu0
        %v3284 = vadd.f32 0.0, %v3283
        %v3285 = vpop.f32.mrf.mxu0
        %3286 = vmatprep.mubr.bf16.mxu0 0
        %3287 = vmatmul.mubr.bf16.gmra.mxu0 %v2838
        %v3288 = vpop.f32.mrf.mxu0
        %v3289 = vadd.f32 0.0, %v3288
        %v3290 = vpop.f32.mrf.mxu0
        %v3291 = vpop.f32.mrf.mxu0
        %v3292 = vadd.f32 0.0, %v3291
        %v3293 = vpop.f32.mrf.mxu0
        %3294 = vdwg.mxu0
        %v3295 = vadd.f32 %v3131, %v3233
        %v3296 = vadd.f32 %v3134, %v3236
        %v3297 = vadd.f32 %v3139, %v3241
        %v3298 = vadd.f32 %v3142, %v3244
        %v3299 = vadd.f32 %v3147, %v3249
        %v3300 = vadd.f32 %v3150, %v3252
        %v3301 = vadd.f32 %v3155, %v3257
        %v3302 = vadd.f32 %v3158, %v3260
        %v3303 = vadd.f32 %v3163, %v3265
        %v3304 = vadd.f32 %v3166, %v3268
        %v3305 = vadd.f32 %v3171, %v3273
        %v3306 = vadd.f32 %v3174, %v3276
        %v3307 = vadd.f32 %v3179, %v3281
        %v3308 = vadd.f32 %v3182, %v3284
        %v3309 = vadd.f32 %v3187, %v3289
        %v3310 = vadd.f32 %v3190, %v3292
        %s3311 = scalar_lea.vmem %s229, 30
        %v3312 = vld [vmem:[%s3311] sm:$0x3]
        %v3313 = vunpack.c.l.b16 %v1102
        %v3314 = vunpack.c.l.b16 %v1105
        %v3315 = vunpack.c.l.b16 %v1109
        %v3316 = vunpack.c.l.b16 %v1112
        %v3317 = vunpack.c.l.b16 %v1116
        %v3318 = vunpack.c.l.b16 %v1119
        %v3319 = vunpack.c.l.b16 %v1123
        %v3320 = vunpack.c.l.b16 %v1126
        %v3321 = vunpack.c.l.b16 %v1130
        %v3322 = vunpack.c.l.b16 %v1133
        %v3323 = vunpack.c.l.b16 %v1137
        %v3324 = vunpack.c.l.b16 %v1140
        %v3325 = vunpack.c.l.b16 %v1144
        %v3326 = vunpack.c.l.b16 %v1147
        %v3327 = vunpack.c.l.b16 %v1151
        %v3328 = vunpack.c.l.b16 %v1154
        %v3329 = vpack.c.b16 %v3314, %v3313
        %v3330 = vpack.c.b16 %v3316, %v3315
        %v3331 = vpack.c.b16 %v3318, %v3317
        %v3332 = vpack.c.b16 %v3320, %v3319
        %v3333 = vpack.c.b16 %v3322, %v3321
        %v3334 = vpack.c.b16 %v3324, %v3323
        %v3335 = vpack.c.b16 %v3326, %v3325
        %v3336 = vpack.c.b16 %v3328, %v3327
        %v3338 = vsel %vm1183, %v3329, 0
        %v3341 = vsel %vm1183, %v3330, 0
        %v3344 = vsel %vm1183, %v3331, 0
        %v3347 = vsel %vm1183, %v3332, 0
        %v3350 = vsel %vm1183, %v3333, 0
        %v3353 = vsel %vm1183, %v3334, 0
        %v3356 = vsel %vm1183, %v3335, 0
        %v3359 = vsel %vm1183, %v3336, 0
        %v3362 = vsel %vm1208, %v3312, 0
        %3364 = vmatprep.subr.bf16.mxu0 0
        %3365 = vmatpush1.bf16.msra.mxu0 0
        %3366 = vmatprep.subr.bf16.mxu0 0
        %3367 = vmatpush1.bf16.msra.mxu0 0
        %3368 = vmatprep.subr.bf16.mxu0 0
        %3369 = vmatpush1.bf16.msra.mxu0 0
        %3370 = vmatprep.subr.bf16.mxu0 0
        %3371 = vmatpush1.bf16.msra.mxu0 0
        %3372 = vmatprep.subr.bf16.mxu0 0
        %3373 = vmatpush1.bf16.msra.mxu0 0
        %3374 = vmatprep.subr.bf16.mxu0 0
        %3375 = vmatpush1.bf16.msra.mxu0 0
        %3376 = vmatprep.subr.bf16.mxu0 0
        %3377 = vmatpush1.bf16.msra.mxu0 0
        %3378 = vmatprep.subr.bf16.mxu0 0
        %3379 = vmatpush1.bf16.msra.mxu0 %v3362
        %3380 = vmatprep.subr.bf16.mxu0 0
        %3381 = vmatpush2.bf16.msra.mxu0 0
        %3382 = vmatprep.subr.bf16.mxu0 0
        %3383 = vmatpush2.bf16.msra.mxu0 0
        %3384 = vmatprep.subr.bf16.mxu0 0
        %3385 = vmatpush2.bf16.msra.mxu0 0
        %3386 = vmatprep.subr.bf16.mxu0 0
        %3387 = vmatpush2.bf16.msra.mxu0 0
        %3388 = vmatprep.subr.bf16.mxu0 0
        %3389 = vmatpush2.bf16.msra.mxu0 0
        %3390 = vmatprep.subr.bf16.mxu0 0
        %3391 = vmatpush2.bf16.msra.mxu0 0
        %3392 = vmatprep.subr.bf16.mxu0 0
        %3393 = vmatpush2.bf16.msra.mxu0 0
        %3394 = vmatprep.subr.bf16.mxu0 0
        %3395 = vmatpush2.bf16.msra.mxu0 0
        %3396 = vmatprep.mubr.bf16.mxu0 0
        %3397 = vmatmul.mubr.bf16.gmra.mxu0 %v3338
        %v3398 = vpop.f32.mrf.mxu0
        %v3399 = vadd.f32 0.0, %v3398
        %v3400 = vpop.f32.mrf.mxu0
        %v3401 = vpop.f32.mrf.mxu0
        %v3402 = vadd.f32 0.0, %v3401
        %v3403 = vpop.f32.mrf.mxu0
        %3404 = vmatprep.mubr.bf16.mxu0 0
        %3405 = vmatmul.mubr.bf16.gmra.mxu0 %v3341
        %v3406 = vpop.f32.mrf.mxu0
        %v3407 = vadd.f32 0.0, %v3406
        %v3408 = vpop.f32.mrf.mxu0
        %v3409 = vpop.f32.mrf.mxu0
        %v3410 = vadd.f32 0.0, %v3409
        %v3411 = vpop.f32.mrf.mxu0
        %3412 = vmatprep.mubr.bf16.mxu0 0
        %3413 = vmatmul.mubr.bf16.gmra.mxu0 %v3344
        %v3414 = vpop.f32.mrf.mxu0
        %v3415 = vadd.f32 0.0, %v3414
        %v3416 = vpop.f32.mrf.mxu0
        %v3417 = vpop.f32.mrf.mxu0
        %v3418 = vadd.f32 0.0, %v3417
        %v3419 = vpop.f32.mrf.mxu0
        %3420 = vmatprep.mubr.bf16.mxu0 0
        %3421 = vmatmul.mubr.bf16.gmra.mxu0 %v3347
        %v3422 = vpop.f32.mrf.mxu0
        %v3423 = vadd.f32 0.0, %v3422
        %v3424 = vpop.f32.mrf.mxu0
        %v3425 = vpop.f32.mrf.mxu0
        %v3426 = vadd.f32 0.0, %v3425
        %v3427 = vpop.f32.mrf.mxu0
        %3428 = vmatprep.mubr.bf16.mxu0 0
        %3429 = vmatmul.mubr.bf16.gmra.mxu0 %v3350
        %v3430 = vpop.f32.mrf.mxu0
        %v3431 = vadd.f32 0.0, %v3430
        %v3432 = vpop.f32.mrf.mxu0
        %v3433 = vpop.f32.mrf.mxu0
        %v3434 = vadd.f32 0.0, %v3433
        %v3435 = vpop.f32.mrf.mxu0
        %3436 = vmatprep.mubr.bf16.mxu0 0
        %3437 = vmatmul.mubr.bf16.gmra.mxu0 %v3353
        %v3438 = vpop.f32.mrf.mxu0
        %v3439 = vadd.f32 0.0, %v3438
        %v3440 = vpop.f32.mrf.mxu0
        %v3441 = vpop.f32.mrf.mxu0
        %v3442 = vadd.f32 0.0, %v3441
        %v3443 = vpop.f32.mrf.mxu0
        %3444 = vmatprep.mubr.bf16.mxu0 0
        %3445 = vmatmul.mubr.bf16.gmra.mxu0 %v3356
        %v3446 = vpop.f32.mrf.mxu0
        %v3447 = vadd.f32 0.0, %v3446
        %v3448 = vpop.f32.mrf.mxu0
        %v3449 = vpop.f32.mrf.mxu0
        %v3450 = vadd.f32 0.0, %v3449
        %v3451 = vpop.f32.mrf.mxu0
        %3452 = vmatprep.mubr.bf16.mxu0 0
        %3453 = vmatmul.mubr.bf16.gmra.mxu0 %v3359
        %v3454 = vpop.f32.mrf.mxu0
        %v3455 = vadd.f32 0.0, %v3454
        %v3456 = vpop.f32.mrf.mxu0
        %v3457 = vpop.f32.mrf.mxu0
        %v3458 = vadd.f32 0.0, %v3457
        %v3459 = vpop.f32.mrf.mxu0
        %3460 = vdwg.mxu0
        %v3461 = vadd.f32 %v3295, %v3399
        %v3462 = vadd.f32 %v3296, %v3402
        %v3463 = vadd.f32 %v3297, %v3407
        %v3464 = vadd.f32 %v3298, %v3410
        %v3465 = vadd.f32 %v3299, %v3415
        %v3466 = vadd.f32 %v3300, %v3418
        %v3467 = vadd.f32 %v3301, %v3423
        %v3468 = vadd.f32 %v3302, %v3426
        %v3469 = vadd.f32 %v3303, %v3431
        %v3470 = vadd.f32 %v3304, %v3434
        %v3471 = vadd.f32 %v3305, %v3439
        %v3472 = vadd.f32 %v3306, %v3442
        %v3473 = vadd.f32 %v3307, %v3447
        %v3474 = vadd.f32 %v3308, %v3450
        %v3475 = vadd.f32 %v3309, %v3455
        %v3476 = vadd.f32 %v3310, %v3458
        %v3477 = vadd.f32 %v3461, %v1809
        %v3478 = vadd.f32 %v3462, %v1809
        %v3479 = vadd.f32 %v3463, %v1809
        %v3480 = vadd.f32 %v3464, %v1809
        %v3481 = vadd.f32 %v3465, %v1809
        %v3482 = vadd.f32 %v3466, %v1809
        %v3483 = vadd.f32 %v3467, %v1809
        %v3484 = vadd.f32 %v3468, %v1809
        %v3485 = vadd.f32 %v3469, %v1809
        %v3486 = vadd.f32 %v3470, %v1809
        %v3487 = vadd.f32 %v3471, %v1809
        %v3488 = vadd.f32 %v3472, %v1809
        %v3489 = vadd.f32 %v3473, %v1809
        %v3490 = vadd.f32 %v3474, %v1809
        %v3491 = vadd.f32 %v3475, %v1809
        %v3492 = vadd.f32 %v3476, %v1809
        %s3493 = scalar_lea.vmem %s216, 384 [#allocation2]
        %3494 = vst.msk [vmem:[%s3493] sm:$0xff] %vm1183, %v3477
        %3495 = vst.msk [vmem:[%s3493 + $0x8] sm:$0xff] %vm1183, %v3478
        %3496 = vst.msk [vmem:[%s3493 + $0x10] sm:$0xff] %vm1183, %v3479
        %3497 = vst.msk [vmem:[%s3493 + $0x18] sm:$0xff] %vm1183, %v3480
        %3498 = vst.msk [vmem:[%s3493 + $0x20] sm:$0xff] %vm1183, %v3481
        %3499 = vst.msk [vmem:[%s3493 + $0x28] sm:$0xff] %vm1183, %v3482
        %3500 = vst.msk [vmem:[%s3493 + $0x30] sm:$0xff] %vm1183, %v3483
        %3501 = vst.msk [vmem:[%s3493 + $0x38] sm:$0xff] %vm1183, %v3484
        %3502 = vst.msk [vmem:[%s3493 + $0x40] sm:$0xff] %vm1183, %v3485
        %3503 = vst.msk [vmem:[%s3493 + $0x48] sm:$0xff] %vm1183, %v3486
        %3504 = vst.msk [vmem:[%s3493 + $0x50] sm:$0xff] %vm1183, %v3487
        %3505 = vst.msk [vmem:[%s3493 + $0x58] sm:$0xff] %vm1183, %v3488
        %3506 = vst.msk [vmem:[%s3493 + $0x60] sm:$0xff] %vm1183, %v3489
        %3507 = vst.msk [vmem:[%s3493 + $0x68] sm:$0xff] %vm1183, %v3490
        %3508 = vst.msk [vmem:[%s3493 + $0x70] sm:$0xff] %vm1183, %v3491
        %3509 = vst.msk [vmem:[%s3493 + $0x78] sm:$0xff] %vm1183, %v3492
        %s3510 = sand.u32 %s127, 1
        %s3511 = sand.u32 %s127, 1
        %s3512 = smul.addr %s3511, 512
        %s3513 = scalar_lea.vmem [#allocation2], %s3512
        // Predicated region
        $region33: #{upsample_forward.1} parent=31 // pred_check
          %p3514 = pneg %p137
        $region34: #{upsample_forward.1} parent=31 // pred_check_branch
          %3516 = sbr.rel (%p3514) target = $region36
        $region35: #{upsample_forward.1} parent=31 // pred_region
          %s3517 = smul.u32 16, %s20
          %s3518 = sadd.s32 %s21, %s3517
          %s3519 = smul.addr %s19, 128
          %s3520 = sadd.s32 %s3518, %s3519
          %s3521 = smul.addr %s3520, 8
          %s3522 = scalar_lea.vmem %s3, %s3521
          // Predicated region
          $region37: #{upsample_forward.1} parent=35 // pred_check
            _
          $region38: #{upsample_forward.1} parent=35 // pred_check_branch
            %3524 = sbr.rel (0) target = $region40
          $region39: #{upsample_forward.1} parent=35 // pred_region
            // Predicated region
            $region41: #{upsample_forward.1} parent=39 // pred_check
              _
            $region42: #{upsample_forward.1} parent=39 // pred_check_branch
              %3526 = sbr.rel (0) target = $region44
            $region43: #{upsample_forward.1} parent=39 // pred_region
              // Predicated region
              $region56: #{upsample_forward.1} parent=43 // pred_check
                _
              $region57: #{upsample_forward.1} parent=43 // pred_check_branch
                %3668 = sbr.rel (0) target = $region59
              $region58: #{upsample_forward.1} parent=43 // pred_region
                loop: start=0, step=1, limit=1
                $region60: #{upsample_forward.1} parent=58 // loop_pre_header
                  _
                $region61: #{upsample_forward.1} parent=58 // loop_header
                  %s3670 = sphi 0, %s3674
                  %p3671 = scmp.ge.s32.totalorder %s3670, 1
                  %s3675 = sphi %s3513, %s3513
                  %s3676 = sphi %s3522, %s3522
                $region62: #{upsample_forward.1} parent=58 // loop_header_branch
                  %3673 = sbr.rel (%p3671) target = $region66
                $region63: #{upsample_forward.1} parent=58 // loop_body
                  %v3677 = vld [vmem:[%s3675] sm:$0xff]
                  %3678 = vst [vmem:[%s3676] sm:$0xff] %v3677
                  %v3679 = vld [vmem:[%s3675 + $0x8] sm:$0xff]
                  %3680 = vst [vmem:[%s3676 + $0x8] sm:$0xff] %v3679
                  %v3681 = vld [vmem:[%s3675 + $0x10] sm:$0xff]
                  %3682 = vst [vmem:[%s3676 + $0x10] sm:$0xff] %v3681
                  %v3683 = vld [vmem:[%s3675 + $0x18] sm:$0xff]
                  %3684 = vst [vmem:[%s3676 + $0x18] sm:$0xff] %v3683
                  %v3685 = vld [vmem:[%s3675 + $0x20] sm:$0xff]
                  %3686 = vst [vmem:[%s3676 + $0x20] sm:$0xff] %v3685
                  %v3687 = vld [vmem:[%s3675 + $0x28] sm:$0xff]
                  %3688 = vst [vmem:[%s3676 + $0x28] sm:$0xff] %v3687
                  %v3689 = vld [vmem:[%s3675 + $0x30] sm:$0xff]
                  %3690 = vst [vmem:[%s3676 + $0x30] sm:$0xff] %v3689
                  %v3691 = vld [vmem:[%s3675 + $0x38] sm:$0xff]
                  %3692 = vst [vmem:[%s3676 + $0x38] sm:$0xff] %v3691
                  %v3693 = vld [vmem:[%s3675 + $0x40] sm:$0xff]
                  %3694 = vst [vmem:[%s3676 + $0x40] sm:$0xff] %v3693
                  %v3695 = vld [vmem:[%s3675 + $0x48] sm:$0xff]
                  %3696 = vst [vmem:[%s3676 + $0x48] sm:$0xff] %v3695
                  %v3697 = vld [vmem:[%s3675 + $0x50] sm:$0xff]
                  %3698 = vst [vmem:[%s3676 + $0x50] sm:$0xff] %v3697
                  %v3699 = vld [vmem:[%s3675 + $0x58] sm:$0xff]
                  %3700 = vst [vmem:[%s3676 + $0x58] sm:$0xff] %v3699
                  %v3701 = vld [vmem:[%s3675 + $0x60] sm:$0xff]
                  %3702 = vst [vmem:[%s3676 + $0x60] sm:$0xff] %v3701
                  %v3703 = vld [vmem:[%s3675 + $0x68] sm:$0xff]
                  %3704 = vst [vmem:[%s3676 + $0x68] sm:$0xff] %v3703
                  %v3705 = vld [vmem:[%s3675 + $0x70] sm:$0xff]
                  %3706 = vst [vmem:[%s3676 + $0x70] sm:$0xff] %v3705
                  %v3707 = vld [vmem:[%s3675 + $0x78] sm:$0xff]
                  %3708 = vst [vmem:[%s3676 + $0x78] sm:$0xff] %v3707
                  %v3709 = vld [vmem:[%s3675 + $0x80] sm:$0xff]
                  %3710 = vst [vmem:[%s3676 + $0x100] sm:$0xff] %v3709
                  %v3711 = vld [vmem:[%s3675 + $0x88] sm:$0xff]
                  %3712 = vst [vmem:[%s3676 + $0x108] sm:$0xff] %v3711
                  %v3713 = vld [vmem:[%s3675 + $0x90] sm:$0xff]
                  %3714 = vst [vmem:[%s3676 + $0x110] sm:$0xff] %v3713
                  %v3715 = vld [vmem:[%s3675 + $0x98] sm:$0xff]
                  %3716 = vst [vmem:[%s3676 + $0x118] sm:$0xff] %v3715
                  %v3717 = vld [vmem:[%s3675 + $0xa0] sm:$0xff]
                  %3718 = vst [vmem:[%s3676 + $0x120] sm:$0xff] %v3717
                  %v3719 = vld [vmem:[%s3675 + $0xa8] sm:$0xff]
                  %3720 = vst [vmem:[%s3676 + $0x128] sm:$0xff] %v3719
                  %v3721 = vld [vmem:[%s3675 + $0xb0] sm:$0xff]
                  %3722 = vst [vmem:[%s3676 + $0x130] sm:$0xff] %v3721
                  %v3723 = vld [vmem:[%s3675 + $0xb8] sm:$0xff]
                  %3724 = vst [vmem:[%s3676 + $0x138] sm:$0xff] %v3723
                  %v3725 = vld [vmem:[%s3675 + $0xc0] sm:$0xff]
                  %3726 = vst [vmem:[%s3676 + $0x140] sm:$0xff] %v3725
                  %v3727 = vld [vmem:[%s3675 + $0xc8] sm:$0xff]
                  %3728 = vst [vmem:[%s3676 + $0x148] sm:$0xff] %v3727
                  %v3729 = vld [vmem:[%s3675 + $0xd0] sm:$0xff]
                  %3730 = vst [vmem:[%s3676 + $0x150] sm:$0xff] %v3729
                  %v3731 = vld [vmem:[%s3675 + $0xd8] sm:$0xff]
                  %3732 = vst [vmem:[%s3676 + $0x158] sm:$0xff] %v3731
                  %v3733 = vld [vmem:[%s3675 + $0xe0] sm:$0xff]
                  %3734 = vst [vmem:[%s3676 + $0x160] sm:$0xff] %v3733
                  %v3735 = vld [vmem:[%s3675 + $0xe8] sm:$0xff]
                  %3736 = vst [vmem:[%s3676 + $0x168] sm:$0xff] %v3735
                  %v3737 = vld [vmem:[%s3675 + $0xf0] sm:$0xff]
                  %3738 = vst [vmem:[%s3676 + $0x170] sm:$0xff] %v3737
                  %v3739 = vld [vmem:[%s3675 + $0xf8] sm:$0xff]
                  %3740 = vst [vmem:[%s3676 + $0x178] sm:$0xff] %v3739
                  %v3741 = vld [vmem:[%s3675 + $0x100] sm:$0xff]
                  %3742 = vst [vmem:[%s3676 + $0x200] sm:$0xff] %v3741
                  %v3743 = vld [vmem:[%s3675 + $0x108] sm:$0xff]
                  %3744 = vst [vmem:[%s3676 + $0x208] sm:$0xff] %v3743
                  %v3745 = vld [vmem:[%s3675 + $0x110] sm:$0xff]
                  %3746 = vst [vmem:[%s3676 + $0x210] sm:$0xff] %v3745
                  %v3747 = vld [vmem:[%s3675 + $0x118] sm:$0xff]
                  %3748 = vst [vmem:[%s3676 + $0x218] sm:$0xff] %v3747
                  %v3749 = vld [vmem:[%s3675 + $0x120] sm:$0xff]
                  %3750 = vst [vmem:[%s3676 + $0x220] sm:$0xff] %v3749
                  %v3751 = vld [vmem:[%s3675 + $0x128] sm:$0xff]
                  %3752 = vst [vmem:[%s3676 + $0x228] sm:$0xff] %v3751
                  %v3753 = vld [vmem:[%s3675 + $0x130] sm:$0xff]
                  %3754 = vst [vmem:[%s3676 + $0x230] sm:$0xff] %v3753
                  %v3755 = vld [vmem:[%s3675 + $0x138] sm:$0xff]
                  %3756 = vst [vmem:[%s3676 + $0x238] sm:$0xff] %v3755
                  %v3757 = vld [vmem:[%s3675 + $0x140] sm:$0xff]
                  %3758 = vst [vmem:[%s3676 + $0x240] sm:$0xff] %v3757
                  %v3759 = vld [vmem:[%s3675 + $0x148] sm:$0xff]
                  %3760 = vst [vmem:[%s3676 + $0x248] sm:$0xff] %v3759
                  %v3761 = vld [vmem:[%s3675 + $0x150] sm:$0xff]
                  %3762 = vst [vmem:[%s3676 + $0x250] sm:$0xff] %v3761
                  %v3763 = vld [vmem:[%s3675 + $0x158] sm:$0xff]
                  %3764 = vst [vmem:[%s3676 + $0x258] sm:$0xff] %v3763
                  %v3765 = vld [vmem:[%s3675 + $0x160] sm:$0xff]
                  %3766 = vst [vmem:[%s3676 + $0x260] sm:$0xff] %v3765
                  %v3767 = vld [vmem:[%s3675 + $0x168] sm:$0xff]
                  %3768 = vst [vmem:[%s3676 + $0x268] sm:$0xff] %v3767
                  %v3769 = vld [vmem:[%s3675 + $0x170] sm:$0xff]
                  %3770 = vst [vmem:[%s3676 + $0x270] sm:$0xff] %v3769
                  %v3771 = vld [vmem:[%s3675 + $0x178] sm:$0xff]
                  %3772 = vst [vmem:[%s3676 + $0x278] sm:$0xff] %v3771
                  %v3773 = vld [vmem:[%s3675 + $0x180] sm:$0xff]
                  %3774 = vst [vmem:[%s3676 + $0x300] sm:$0xff] %v3773
                  %v3775 = vld [vmem:[%s3675 + $0x188] sm:$0xff]
                  %3776 = vst [vmem:[%s3676 + $0x308] sm:$0xff] %v3775
                  %v3777 = vld [vmem:[%s3675 + $0x190] sm:$0xff]
                  %3778 = vst [vmem:[%s3676 + $0x310] sm:$0xff] %v3777
                  %v3779 = vld [vmem:[%s3675 + $0x198] sm:$0xff]
                  %3780 = vst [vmem:[%s3676 + $0x318] sm:$0xff] %v3779
                  %v3781 = vld [vmem:[%s3675 + $0x1a0] sm:$0xff]
                  %3782 = vst [vmem:[%s3676 + $0x320] sm:$0xff] %v3781
                  %v3783 = vld [vmem:[%s3675 + $0x1a8] sm:$0xff]
                  %3784 = vst [vmem:[%s3676 + $0x328] sm:$0xff] %v3783
                  %v3785 = vld [vmem:[%s3675 + $0x1b0] sm:$0xff]
                  %3786 = vst [vmem:[%s3676 + $0x330] sm:$0xff] %v3785
                  %v3787 = vld [vmem:[%s3675 + $0x1b8] sm:$0xff]
                  %3788 = vst [vmem:[%s3676 + $0x338] sm:$0xff] %v3787
                  %v3789 = vld [vmem:[%s3675 + $0x1c0] sm:$0xff]
                  %3790 = vst [vmem:[%s3676 + $0x340] sm:$0xff] %v3789
                  %v3791 = vld [vmem:[%s3675 + $0x1c8] sm:$0xff]
                  %3792 = vst [vmem:[%s3676 + $0x348] sm:$0xff] %v3791
                  %v3793 = vld [vmem:[%s3675 + $0x1d0] sm:$0xff]
                  %3794 = vst [vmem:[%s3676 + $0x350] sm:$0xff] %v3793
                  %v3795 = vld [vmem:[%s3675 + $0x1d8] sm:$0xff]
                  %3796 = vst [vmem:[%s3676 + $0x358] sm:$0xff] %v3795
                  %v3797 = vld [vmem:[%s3675 + $0x1e0] sm:$0xff]
                  %3798 = vst [vmem:[%s3676 + $0x360] sm:$0xff] %v3797
                  %v3799 = vld [vmem:[%s3675 + $0x1e8] sm:$0xff]
                  %3800 = vst [vmem:[%s3676 + $0x368] sm:$0xff] %v3799
                  %v3801 = vld [vmem:[%s3675 + $0x1f0] sm:$0xff]
                  %3802 = vst [vmem:[%s3676 + $0x370] sm:$0xff] %v3801
                  %v3803 = vld [vmem:[%s3675 + $0x1f8] sm:$0xff]
                  %3804 = vst [vmem:[%s3676 + $0x378] sm:$0xff] %v3803
                $region64: #{upsample_forward.1} parent=58 // loop_footer
                  %s3674 = sadd.s32 1, %s3670
                $region65: #{upsample_forward.1} parent=58 // loop_footer_branch
                  %3669 = sbr.rel target = $region61
                $region66: #{upsample_forward.1} parent=58 // loop_exit
                  _
              $region59: #{upsample_forward.1} parent=43 // pred_fallthru
                _
              // Predicated region
              $region67: #{upsample_forward.1} parent=43 // pred_check
                _
              $region68: #{upsample_forward.1} parent=43 // pred_check_branch
                %3806 = sbr.rel target = $region70
              $region69: #{upsample_forward.1} parent=43 // pred_region
                _
              $region70: #{upsample_forward.1} parent=43 // pred_fallthru
                _
            $region44: #{upsample_forward.1} parent=39 // pred_fallthru
              _
            // Predicated region
            $region45: #{upsample_forward.1} parent=39 // pred_check
              _
            $region46: #{upsample_forward.1} parent=39 // pred_check_branch
              %3528 = sbr.rel target = $region48
            $region47: #{upsample_forward.1} parent=39 // pred_region
              %s3530 = ssub.s32 256, 1
              loop: start=0, step=1, limit=1
              $region49: #{upsample_forward.1} parent=47 // loop_pre_header
                _
              $region50: #{upsample_forward.1} parent=47 // loop_header
                %s3532 = sphi 0, %s3536
                %p3533 = scmp.ge.s32.totalorder %s3532, 1
                %s3537 = sphi %s3513, %s3513
                %s3538 = sphi %s3522, %s3522
              $region51: #{upsample_forward.1} parent=47 // loop_header_branch
                %3535 = sbr.rel (%p3533) target = $region55
              $region52: #{upsample_forward.1} parent=47 // loop_body
                %v3539 = vld [vmem:[%s3537] sm:%s3530]
                %3540 = vst [vmem:[%s3538] sm:%s3530] %v3539
                %v3541 = vld [vmem:[%s3537 + $0x8] sm:%s3530]
                %3542 = vst [vmem:[%s3538 + $0x8] sm:%s3530] %v3541
                %v3543 = vld [vmem:[%s3537 + $0x10] sm:%s3530]
                %3544 = vst [vmem:[%s3538 + $0x10] sm:%s3530] %v3543
                %v3545 = vld [vmem:[%s3537 + $0x18] sm:%s3530]
                %3546 = vst [vmem:[%s3538 + $0x18] sm:%s3530] %v3545
                %v3547 = vld [vmem:[%s3537 + $0x20] sm:%s3530]
                %3548 = vst [vmem:[%s3538 + $0x20] sm:%s3530] %v3547
                %v3549 = vld [vmem:[%s3537 + $0x28] sm:%s3530]
                %3550 = vst [vmem:[%s3538 + $0x28] sm:%s3530] %v3549
                %v3551 = vld [vmem:[%s3537 + $0x30] sm:%s3530]
                %3552 = vst [vmem:[%s3538 + $0x30] sm:%s3530] %v3551
                %v3553 = vld [vmem:[%s3537 + $0x38] sm:%s3530]
                %3554 = vst [vmem:[%s3538 + $0x38] sm:%s3530] %v3553
                %v3555 = vld [vmem:[%s3537 + $0x40] sm:%s3530]
                %3556 = vst [vmem:[%s3538 + $0x40] sm:%s3530] %v3555
                %v3557 = vld [vmem:[%s3537 + $0x48] sm:%s3530]
                %3558 = vst [vmem:[%s3538 + $0x48] sm:%s3530] %v3557
                %v3559 = vld [vmem:[%s3537 + $0x50] sm:%s3530]
                %3560 = vst [vmem:[%s3538 + $0x50] sm:%s3530] %v3559
                %v3561 = vld [vmem:[%s3537 + $0x58] sm:%s3530]
                %3562 = vst [vmem:[%s3538 + $0x58] sm:%s3530] %v3561
                %v3563 = vld [vmem:[%s3537 + $0x60] sm:%s3530]
                %3564 = vst [vmem:[%s3538 + $0x60] sm:%s3530] %v3563
                %v3565 = vld [vmem:[%s3537 + $0x68] sm:%s3530]
                %3566 = vst [vmem:[%s3538 + $0x68] sm:%s3530] %v3565
                %v3567 = vld [vmem:[%s3537 + $0x70] sm:%s3530]
                %3568 = vst [vmem:[%s3538 + $0x70] sm:%s3530] %v3567
                %v3569 = vld [vmem:[%s3537 + $0x78] sm:%s3530]
                %3570 = vst [vmem:[%s3538 + $0x78] sm:%s3530] %v3569
                %v3571 = vld [vmem:[%s3537 + $0x80] sm:%s3530]
                %3572 = vst [vmem:[%s3538 + $0x100] sm:%s3530] %v3571
                %v3573 = vld [vmem:[%s3537 + $0x88] sm:%s3530]
                %3574 = vst [vmem:[%s3538 + $0x108] sm:%s3530] %v3573
                %v3575 = vld [vmem:[%s3537 + $0x90] sm:%s3530]
                %3576 = vst [vmem:[%s3538 + $0x110] sm:%s3530] %v3575
                %v3577 = vld [vmem:[%s3537 + $0x98] sm:%s3530]
                %3578 = vst [vmem:[%s3538 + $0x118] sm:%s3530] %v3577
                %v3579 = vld [vmem:[%s3537 + $0xa0] sm:%s3530]
                %3580 = vst [vmem:[%s3538 + $0x120] sm:%s3530] %v3579
                %v3581 = vld [vmem:[%s3537 + $0xa8] sm:%s3530]
                %3582 = vst [vmem:[%s3538 + $0x128] sm:%s3530] %v3581
                %v3583 = vld [vmem:[%s3537 + $0xb0] sm:%s3530]
                %3584 = vst [vmem:[%s3538 + $0x130] sm:%s3530] %v3583
                %v3585 = vld [vmem:[%s3537 + $0xb8] sm:%s3530]
                %3586 = vst [vmem:[%s3538 + $0x138] sm:%s3530] %v3585
                %v3587 = vld [vmem:[%s3537 + $0xc0] sm:%s3530]
                %3588 = vst [vmem:[%s3538 + $0x140] sm:%s3530] %v3587
                %v3589 = vld [vmem:[%s3537 + $0xc8] sm:%s3530]
                %3590 = vst [vmem:[%s3538 + $0x148] sm:%s3530] %v3589
                %v3591 = vld [vmem:[%s3537 + $0xd0] sm:%s3530]
                %3592 = vst [vmem:[%s3538 + $0x150] sm:%s3530] %v3591
                %v3593 = vld [vmem:[%s3537 + $0xd8] sm:%s3530]
                %3594 = vst [vmem:[%s3538 + $0x158] sm:%s3530] %v3593
                %v3595 = vld [vmem:[%s3537 + $0xe0] sm:%s3530]
                %3596 = vst [vmem:[%s3538 + $0x160] sm:%s3530] %v3595
                %v3597 = vld [vmem:[%s3537 + $0xe8] sm:%s3530]
                %3598 = vst [vmem:[%s3538 + $0x168] sm:%s3530] %v3597
                %v3599 = vld [vmem:[%s3537 + $0xf0] sm:%s3530]
                %3600 = vst [vmem:[%s3538 + $0x170] sm:%s3530] %v3599
                %v3601 = vld [vmem:[%s3537 + $0xf8] sm:%s3530]
                %3602 = vst [vmem:[%s3538 + $0x178] sm:%s3530] %v3601
                %v3603 = vld [vmem:[%s3537 + $0x100] sm:%s3530]
                %3604 = vst [vmem:[%s3538 + $0x200] sm:%s3530] %v3603
                %v3605 = vld [vmem:[%s3537 + $0x108] sm:%s3530]
                %3606 = vst [vmem:[%s3538 + $0x208] sm:%s3530] %v3605
                %v3607 = vld [vmem:[%s3537 + $0x110] sm:%s3530]
                %3608 = vst [vmem:[%s3538 + $0x210] sm:%s3530] %v3607
                %v3609 = vld [vmem:[%s3537 + $0x118] sm:%s3530]
                %3610 = vst [vmem:[%s3538 + $0x218] sm:%s3530] %v3609
                %v3611 = vld [vmem:[%s3537 + $0x120] sm:%s3530]
                %3612 = vst [vmem:[%s3538 + $0x220] sm:%s3530] %v3611
                %v3613 = vld [vmem:[%s3537 + $0x128] sm:%s3530]
                %3614 = vst [vmem:[%s3538 + $0x228] sm:%s3530] %v3613
                %v3615 = vld [vmem:[%s3537 + $0x130] sm:%s3530]
                %3616 = vst [vmem:[%s3538 + $0x230] sm:%s3530] %v3615
                %v3617 = vld [vmem:[%s3537 + $0x138] sm:%s3530]
                %3618 = vst [vmem:[%s3538 + $0x238] sm:%s3530] %v3617
                %v3619 = vld [vmem:[%s3537 + $0x140] sm:%s3530]
                %3620 = vst [vmem:[%s3538 + $0x240] sm:%s3530] %v3619
                %v3621 = vld [vmem:[%s3537 + $0x148] sm:%s3530]
                %3622 = vst [vmem:[%s3538 + $0x248] sm:%s3530] %v3621
                %v3623 = vld [vmem:[%s3537 + $0x150] sm:%s3530]
                %3624 = vst [vmem:[%s3538 + $0x250] sm:%s3530] %v3623
                %v3625 = vld [vmem:[%s3537 + $0x158] sm:%s3530]
                %3626 = vst [vmem:[%s3538 + $0x258] sm:%s3530] %v3625
                %v3627 = vld [vmem:[%s3537 + $0x160] sm:%s3530]
                %3628 = vst [vmem:[%s3538 + $0x260] sm:%s3530] %v3627
                %v3629 = vld [vmem:[%s3537 + $0x168] sm:%s3530]
                %3630 = vst [vmem:[%s3538 + $0x268] sm:%s3530] %v3629
                %v3631 = vld [vmem:[%s3537 + $0x170] sm:%s3530]
                %3632 = vst [vmem:[%s3538 + $0x270] sm:%s3530] %v3631
                %v3633 = vld [vmem:[%s3537 + $0x178] sm:%s3530]
                %3634 = vst [vmem:[%s3538 + $0x278] sm:%s3530] %v3633
                %v3635 = vld [vmem:[%s3537 + $0x180] sm:%s3530]
                %3636 = vst [vmem:[%s3538 + $0x300] sm:%s3530] %v3635
                %v3637 = vld [vmem:[%s3537 + $0x188] sm:%s3530]
                %3638 = vst [vmem:[%s3538 + $0x308] sm:%s3530] %v3637
                %v3639 = vld [vmem:[%s3537 + $0x190] sm:%s3530]
                %3640 = vst [vmem:[%s3538 + $0x310] sm:%s3530] %v3639
                %v3641 = vld [vmem:[%s3537 + $0x198] sm:%s3530]
                %3642 = vst [vmem:[%s3538 + $0x318] sm:%s3530] %v3641
                %v3643 = vld [vmem:[%s3537 + $0x1a0] sm:%s3530]
                %3644 = vst [vmem:[%s3538 + $0x320] sm:%s3530] %v3643
                %v3645 = vld [vmem:[%s3537 + $0x1a8] sm:%s3530]
                %3646 = vst [vmem:[%s3538 + $0x328] sm:%s3530] %v3645
                %v3647 = vld [vmem:[%s3537 + $0x1b0] sm:%s3530]
                %3648 = vst [vmem:[%s3538 + $0x330] sm:%s3530] %v3647
                %v3649 = vld [vmem:[%s3537 + $0x1b8] sm:%s3530]
                %3650 = vst [vmem:[%s3538 + $0x338] sm:%s3530] %v3649
                %v3651 = vld [vmem:[%s3537 + $0x1c0] sm:%s3530]
                %3652 = vst [vmem:[%s3538 + $0x340] sm:%s3530] %v3651
                %v3653 = vld [vmem:[%s3537 + $0x1c8] sm:%s3530]
                %3654 = vst [vmem:[%s3538 + $0x348] sm:%s3530] %v3653
                %v3655 = vld [vmem:[%s3537 + $0x1d0] sm:%s3530]
                %3656 = vst [vmem:[%s3538 + $0x350] sm:%s3530] %v3655
                %v3657 = vld [vmem:[%s3537 + $0x1d8] sm:%s3530]
                %3658 = vst [vmem:[%s3538 + $0x358] sm:%s3530] %v3657
                %v3659 = vld [vmem:[%s3537 + $0x1e0] sm:%s3530]
                %3660 = vst [vmem:[%s3538 + $0x360] sm:%s3530] %v3659
                %v3661 = vld [vmem:[%s3537 + $0x1e8] sm:%s3530]
                %3662 = vst [vmem:[%s3538 + $0x368] sm:%s3530] %v3661
                %v3663 = vld [vmem:[%s3537 + $0x1f0] sm:%s3530]
                %3664 = vst [vmem:[%s3538 + $0x370] sm:%s3530] %v3663
                %v3665 = vld [vmem:[%s3537 + $0x1f8] sm:%s3530]
                %3666 = vst [vmem:[%s3538 + $0x378] sm:%s3530] %v3665
              $region53: #{upsample_forward.1} parent=47 // loop_footer
                %s3536 = sadd.s32 1, %s3532
              $region54: #{upsample_forward.1} parent=47 // loop_footer_branch
                %3531 = sbr.rel target = $region50
              $region55: #{upsample_forward.1} parent=47 // loop_exit
                _
            $region48: #{upsample_forward.1} parent=39 // pred_fallthru
              _
          $region40: #{upsample_forward.1} parent=35 // pred_fallthru
            _
          %3807 = vnop
        $region36: #{upsample_forward.1} parent=31 // pred_fallthru
          _
      $region32: #{upsample_forward.1} parent=5 // pred_fallthru
        _
      %p3808 = scmp.le.s32.totalorder 2, %s9
      // Predicated region
      $region71: #{upsample_forward.1} parent=5 // pred_check
        %p3809 = pneg %p3808
      $region72: #{upsample_forward.1} parent=5 // pred_check_branch
        %3811 = sbr.rel (%p3809) target = $region74
      $region73: #{upsample_forward.1} parent=5 // pred_region
        %s3812 = ssub.s32 %s9, 2
        // Predicated region
        $region75: #{upsample_forward.1} parent=73 // pred_check
          %p3813 = pneg %p143
        $region76: #{upsample_forward.1} parent=73 // pred_check_branch
          %3815 = sbr.rel (%p3813) target = $region78
        $region77: #{upsample_forward.1} parent=73 // pred_region
          %s3816 = sand.u32 %s128, 1
          %s3817 = sand.u32 %s128, 1
          %s3818 = smul.addr %s3817, 512
          %s3819 = scalar_lea.vmem [#allocation2], %s3818
        $region78: #{upsample_forward.1} parent=73 // pred_fallthru
          _
      $region74: #{upsample_forward.1} parent=5 // pred_fallthru
        _
    $region6: #{upsample_forward.1} parent=1 // loop_footer
      %s13 = sadd.s32 1, %s9
    $region7: #{upsample_forward.1} parent=1 // loop_footer_branch
      %8 = sbr.rel target = $region3
    $region8: #{upsample_forward.1} parent=1 // loop_exit
      _

</llo_original>
